<compile_context>
chip_gen: v6e
topology: v6e:2x2x1
jax: 0.10.0
libtpu: 0.0.40
codegen_flags: <defaults>
</compile_context>

<pallas_src>
import numpy as np
import jax
import jax.numpy as jnp
from jax.experimental import pallas as pl
from jax.experimental.pallas import tpu as pltpu

# ----------------------- config (consistent with H_DYNA forward) -------------
B = 2             # batch
T_HIST = 6        # history_len
HORIZON = 3       # args.horizon
N_NODES = 4       # args.num_nodes
INPUT_DIM = 2     # args.input_dim
OUTPUT_DIM = 2    # args.output_dim (decoder output is fed back as next input)
HIDDEN = 16       # args.rnn_units
EMBED = 8         # args.embed_dim
PATTERN = 8       # args.pattern_dim
M_GLOBAL, S_GLOBAL = 6, 4
M_LOCAL, S_LOCAL = 10, 8
M_TOT = M_LOCAL + M_GLOBAL
BN = B * N_NODES
SH = S_LOCAL * HIDDEN          # 128 -> the history buffer is exactly one f32 vreg


def adaptive_pool_matrix(s_in, s_out):
    """Matrix P (s_out, s_in) s.t. P @ x == F.adaptive_avg_pool1d(x)."""
    P = np.zeros((s_out, s_in), np.float32)
    for i in range(s_out):
        start = (i * s_in) // s_out
        end = -((-(i + 1) * s_in) // s_out)   # ceil
        P[i, start:end] = 1.0 / (end - start)
    return P


# ----------------------------- Pallas kernel ---------------------------------
def hdyna_kernel(src_ref, bank_ref, bbias_ref, cstack_ref, mask_ref,
                 wxzr_ref, bzr_ref, wxc_ref, bc_ref,
                 whzr_ref, whc_ref,
                 wdzr_ref, bdzr_ref, wdc_ref, bdc_ref,
                 woblk_ref, boblk_ref, out_ref):
    # src_ref:    (T*BN, Din)      time/batch/node folded into the sublane axis
    # bank_ref:   (S*H, M_tot)     query MLP + adaptive pool folded into both banks
    # bbias_ref:  (1, M_tot)       bq folded into the banks
    # cstack_ref: (N*M_tot, H)     mean-readout x node-specific weights, per node
    # mask_ref:   (BN, N*M_tot)    0/1 row -> node-block selector
    # wxzr/wxc:   (Din, 2H)/(Din, H)  x-part of z/r and candidate gates (+ biases)
    # whzr/whc:   (H, 2H)/(H, H)   h-part of z/r and candidate gates
    # wdzr/wdc:   (H, 2H)/(H, H)   output head folded into the decoder x-path
    # woblk:      (HORIZON*H, HORIZON*Dout) block-diagonal output head
    # out_ref:    (BN, HORIZON*Dout)
    f32 = jnp.float32
    tbn = src_ref.shape[0]
    sh, mtot = bank_ref.shape
    hidden = whc_ref.shape[0]
    bn = out_ref.shape[0]
    t_hist = tbn // bn
    n_nodes = cstack_ref.shape[0] // mtot
    horizon = woblk_ref.shape[0] // hidden

    # ---- constants / broadcasts hoisted ONCE (no re-emitted broadcast_in_dim) ---
    bbias = jnp.broadcast_to(bbias_ref[...], (bn, mtot))        # (BN, M_tot)
    bdzr = jnp.broadcast_to(bdzr_ref[...], (bn, 2 * hidden))    # (BN, 2H)
    bdc = jnp.broadcast_to(bdc_ref[...], (bn, hidden))          # (BN, H)
    node_mask = mask_ref[...]                                   # (BN, N*M_tot)
    # segment mask for the single whole-vreg masked softmax
    lane_m = jax.lax.broadcasted_iota(jnp.int32, (bn, mtot), 1)
    is_local = lane_m < M_LOCAL
    # tail-lane mask for the history shift
    lane_s = jax.lax.broadcasted_iota(jnp.int32, (bn, sh), 1)
    tail = lane_s >= (sh - hidden)
    zeros_head = jnp.zeros((bn, sh - hidden), f32)

    # ---- encoder x-path hoisted OUT of the serial recurrence -------------------
    src2 = src_ref[...]                                                     # (T*BN, Din)
    gzr_all = (jnp.dot(src2, wxzr_ref[...], preferred_element_type=f32)
               + bzr_ref[...])                                              # (T*BN, 2H)
    gc_all = (jnp.dot(src2, wxc_ref[...], preferred_element_type=f32)
              + bc_ref[...])                                                # (T*BN, H)

    def push_hist(hist, h):
        # hist <- [hist[:, H:], h] : explicit XLU rotate + tail-lane select.
        rolled = pltpu.roll(hist, shift=sh - hidden, axis=1)
        h_tail = jnp.concatenate([zeros_head, h], axis=-1)      # h placed in last H lanes
        return jnp.where(tail, h_tail, rolled)

    def cell_step(gzr, gc, h, hist):
        # ---- DynamicCausalMemoryNetwork: both bank similarities in ONE matmul.
        # bank / cstack reloaded from VMEM per step (idle vld slots) so the big
        # lane-padded constants are not pinned across the unrolled chain.
        sim = jnp.dot(hist, bank_ref[...], preferred_element_type=f32) + bbias  # (BN, M_tot)
        # two segment softmaxes as one masked whole-vreg softmax (exact divide)
        m_l = jnp.max(jnp.where(is_local, sim, -jnp.inf), axis=-1, keepdims=True)
        m_g = jnp.max(jnp.where(is_local, -jnp.inf, sim), axis=-1, keepdims=True)
        e = jnp.exp(sim - jnp.where(is_local, m_l, m_g))
        s_l = jnp.sum(jnp.where(is_local, e, 0.0), axis=-1, keepdims=True)
        s_g = jnp.sum(jnp.where(is_local, 0.0, e), axis=-1, keepdims=True)
        attn = e / jnp.where(is_local, s_l, s_g)                                # (BN, M_tot)
        # mean readout + node-specific weight mixing as one masked MXU matmul
        attn_rep = jnp.concatenate([attn] * n_nodes, axis=-1) * node_mask       # (BN, N*M_tot)
        context = jnp.dot(attn_rep, cstack_ref[...], preferred_element_type=f32)

        # ---- GRU-style gates (x-part precomputed off the chain) ----
        gh = jnp.dot(h, whzr_ref[...], preferred_element_type=f32)              # (BN, 2H)
        zr = jax.nn.sigmoid(gzr + gh)
        z = zr[:, :hidden]
        r = zr[:, hidden:]
        cand = jnp.tanh(gc
                        + jnp.dot(r * h, whc_ref[...], preferred_element_type=f32)
                        + context)
        return h + z * (cand - h)                  # == (1 - z) * h + z * cand

    h = jnp.zeros((bn, hidden), f32)
    hist = jnp.zeros((bn, sh), f32)

    # encoder rollout (only h-dependent work remains inside the chain)
    for t in range(t_hist):
        gzr = gzr_all[t * bn:(t + 1) * bn, :]
        gc = gc_all[t * bn:(t + 1) * bn, :]
        h = cell_step(gzr, gc, h, hist)
        hist = push_hist(hist, h)

    # decoder rollout.  Step 0 re-feeds the last source frame, so it reuses the
    # last encoder x-path slice (gzr/gc above).  For later steps the output head
    # is folded into the x-path (gx_{t+1} = h_t @ (wo@wx) + (bo@wx + bx)), so
    # `out` never sits on the recurrence; outputs are produced after the loop.
    h_dec = []
    for t in range(horizon):
        h = cell_step(gzr, gc, h, hist)
        h_dec.append(h)
        if t + 1 < horizon:
            hist = push_hist(hist, h)
            gzr = jnp.dot(h, wdzr_ref[...], preferred_element_type=f32) + bdzr
            gc = jnp.dot(h, wdc_ref[...], preferred_element_type=f32) + bdc

    # all HORIZON outputs with one block-diagonal matmul, single lane-packed store
    hs = jnp.concatenate(h_dec, axis=-1)                                        # (BN, 3H)
    out = jnp.dot(hs, woblk_ref[...], preferred_element_type=f32) + boblk_ref[...]
    out_ref[...] = out.astype(out_ref.dtype)


# ------------------------------ wrapper ---------------------------------------
def hdyna_pallas(source, kp):
    b, t, n, din = source.shape
    # fold (time, batch, node) into rows: row = t*B*N + b*N + n (sublane axis)
    src2 = jnp.transpose(source, (1, 0, 2, 3)).reshape(t * b * n, din)
    out = pl.pallas_call(
        hdyna_kernel,
        out_shape=jax.ShapeDtypeStruct((b * n, HORIZON * OUTPUT_DIM), jnp.float32),
        # No grid: the 9-step recurrence is serial and resident data is <100 KiB,
        # so one invocation on one TensorCore is the right shape on v5e/v6e/v7x.
        # If B*N ever grows to ~64+ rows, add a leading batch grid axis with
        # dimension_semantics=("parallel",) to use the second v7x core.
    )(src2,
      kp["bank_cat"], kp["bias_cat"], kp["c_stack"], kp["node_mask"],
      kp["wx_zr"], kp["b_zr"], kp["wx_c"], kp["b_c"],
      kp["wh_zr"], kp["wh_c"],
      kp["wd_zr"], kp["bd_zr"], kp["wd_c"], kp["bd_c"],
      kp["wo_blk"], kp["bo_blk"])
    return out.reshape(b, n, HORIZON, OUTPUT_DIM).transpose(0, 2, 1, 3)


# --------------------------- pure-JAX reference --------------------------------
def hdyna_reference(source, p):
    pool = jnp.asarray(adaptive_pool_matrix(S_LOCAL, S_GLOBAL))

    def dcn(history):
        q = jnp.einsum('bnsh,hp->bnsp', history, p["wq_t"]) + p["bq"][0]
        sim_l = jnp.einsum('bnsp,msp->bnm', q, p["local_bank"])
        attn_l = jax.nn.softmax(sim_l, axis=-1)
        q_g = jnp.einsum('gs,bnsp->bngp', pool, q)            # adaptive avg pool 1d
        sim_g = jnp.einsum('bngp,mgp->bnm', q_g, p["global_bank"])
        attn_g = jax.nn.softmax(sim_g, axis=-1)
        ctx_l = jnp.einsum('bnm,msp->bnsp', attn_l, p["local_bank"]).mean(axis=2)
        ctx_g = jnp.einsum('bnm,mgp->bngp', attn_g, p["global_bank"]).mean(axis=2)
        fused = jnp.concatenate([ctx_l, ctx_g], axis=-1)
        node_w = jnp.einsum('nd,dfh->nfh', p["node_embedding"], p["weight_pool"])
        return jnp.einsum('bnd,ndh->bnh', fused, node_w)

    def cell(x_t, h, hist):
        ctx = dcn(hist)
        comb = jnp.concatenate([x_t, h], axis=-1)
        z = jax.nn.sigmoid(comb @ p["wz_t"] + p["bz"][0])
        r = jax.nn.sigmoid(comb @ p["wr_t"] + p["br"][0])
        comb_c = jnp.concatenate([x_t, r * h], axis=-1)
        cand = jnp.tanh(comb_c @ p["wc_t"] + p["bc"][0] + ctx)
        return (1.0 - z) * h + z * cand

    b = source.shape[0]
    h = jnp.zeros((b, N_NODES, HIDDEN), jnp.float32)
    hist = jnp.zeros((b, N_NODES, S_LOCAL, HIDDEN), jnp.float32)
    for t in range(T_HIST):
        h = cell(source[:, t], h, hist)
        hist = jnp.concatenate([hist[:, :, 1:], h[:, :, None, :]], axis=2)
    outs = []
    dec_in = source[:, -1]
    for _ in range(HORIZON):
        h = cell(dec_in, h, hist)
        hist = jnp.concatenate([hist[:, :, 1:], h[:, :, None, :]], axis=2)
        out = h @ p["wo_t"] + p["bo"][0]
        outs.append(out)
        dec_in = out
    return jnp.stack(outs, axis=1)


# ------------------------------ params ------------------------------------------
def init_params(key):
    ks = jax.random.split(key, 16)
    nrm = lambda k, shape, s=1.0: (jax.random.normal(k, shape, jnp.float32) * s)
    return {
        "local_bank": nrm(ks[0], (M_LOCAL, S_LOCAL, PATTERN)),
        "global_bank": nrm(ks[1], (M_GLOBAL, S_GLOBAL, PATTERN)),
        "node_embedding": nrm(ks[2], (N_NODES, EMBED)),
        "weight_pool": nrm(ks[3], (EMBED, 2 * PATTERN, HIDDEN), 0.1),
        "wq_t": nrm(ks[4], (HIDDEN, PATTERN), 0.1),
        "bq": nrm(ks[5], (1, PATTERN), 0.1),
        "wz_t": nrm(ks[6], (INPUT_DIM + HIDDEN, HIDDEN), 0.1),
        "bz": nrm(ks[7], (1, HIDDEN), 0.1),
        "wr_t": nrm(ks[8], (INPUT_DIM + HIDDEN, HIDDEN), 0.1),
        "br": nrm(ks[9], (1, HIDDEN), 0.1),
        "wc_t": nrm(ks[10], (INPUT_DIM + HIDDEN, HIDDEN), 0.1),
        "bc": nrm(ks[11], (1, HIDDEN), 0.1),
        "wo_t": nrm(ks[12], (HIDDEN, OUTPUT_DIM), 0.1),
        "bo": nrm(ks[13], (1, OUTPUT_DIM), 0.1),
    }


def prep_kernel_params(p):
    """Input-independent parameter folding (done once, in plain JAX)."""
    assert INPUT_DIM == OUTPUT_DIM, "decoder feedback folds wo into the x-path"
    pool = jnp.asarray(adaptive_pool_matrix(S_LOCAL, S_GLOBAL))                  # (S_g, S_l)
    gbank_eff = jnp.einsum('gs,mgp->msp', pool, p["global_bank"])                # pool folded

    wq, bq = p["wq_t"], p["bq"][0]
    # query MLP folded into both banks: sim = hist_flat @ bank_cat + bias_cat
    lbank_w = jnp.einsum('hp,msp->shm', wq, p["local_bank"]).reshape(S_LOCAL * HIDDEN, M_LOCAL)
    gbank_w = jnp.einsum('hp,msp->shm', wq, gbank_eff).reshape(S_LOCAL * HIDDEN, M_GLOBAL)
    bank_cat = jnp.concatenate([lbank_w, gbank_w], axis=-1)                      # (S*H, M_tot)
    lbias = jnp.einsum('p,msp->m', bq, p["local_bank"])
    gbias = jnp.einsum('p,msp->m', bq, gbank_eff)
    bias_cat = jnp.concatenate([lbias, gbias])[None, :]                          # (1, M_tot)

    # mean readout + node-specific weight mixing fused into one stacked matrix
    lmean = p["local_bank"].mean(axis=1)
    gmean = p["global_bank"].mean(axis=1)
    mean_blk = jnp.zeros((M_TOT, 2 * PATTERN), jnp.float32)
    mean_blk = mean_blk.at[:M_LOCAL, :PATTERN].set(lmean)
    mean_blk = mean_blk.at[M_LOCAL:, PATTERN:].set(gmean)
    node_w = jnp.einsum('nd,dfh->nfh', p["node_embedding"], p["weight_pool"])
    c_stack = jnp.einsum('mf,nfh->nmh', mean_blk, node_w).reshape(N_NODES * M_TOT, HIDDEN)

    # 0/1 mask selecting the node block of c_stack for each folded row b*N + n
    mask = np.zeros((BN, N_NODES * M_TOT), np.float32)
    for bi in range(B):
        for ni in range(N_NODES):
            mask[bi * N_NODES + ni, ni * M_TOT:(ni + 1) * M_TOT] = 1.0

    din = INPUT_DIM
    wz_x, wz_h = p["wz_t"][:din], p["wz_t"][din:]
    wr_x, wr_h = p["wr_t"][:din], p["wr_t"][din:]
    wc_x, wc_h = p["wc_t"][:din], p["wc_t"][din:]
    wx_zr = jnp.concatenate([wz_x, wr_x], axis=-1)                               # (Din, 2H)
    b_zr = jnp.concatenate([p["bz"], p["br"]], axis=-1)                          # (1, 2H)
    wx_c, b_c = wc_x, p["bc"]                                                    # (Din, H)
    wh_zr = jnp.concatenate([wz_h, wr_h], axis=-1)                               # (H, 2H)
    wh_c = wc_h                                                                  # (H, H)

    wo, bo = p["wo_t"], p["bo"]
    # decoder feedback folding: gx_{t+1} = h_t @ (wo @ wx) + (bo @ wx + bx)
    wd_zr = wo @ wx_zr
    bd_zr = bo @ wx_zr + b_zr
    wd_c = wo @ wx_c
    bd_c = bo @ wx_c + b_c

    # block-diagonal output head: all HORIZON outputs in one matmul off the chain
    wo_blk = jnp.zeros((HORIZON * HIDDEN, HORIZON * OUTPUT_DIM), jnp.float32)
    for t in range(HORIZON):
        wo_blk = wo_blk.at[t * HIDDEN:(t + 1) * HIDDEN,
                           t * OUTPUT_DIM:(t + 1) * OUTPUT_DIM].set(wo)
    bo_blk = jnp.tile(bo, (1, HORIZON))

    return {
        "bank_cat": bank_cat, "bias_cat": bias_cat,
        "c_stack": c_stack, "node_mask": jnp.asarray(mask),
        "wx_zr": wx_zr, "b_zr": b_zr, "wx_c": wx_c, "b_c": b_c,
        "wh_zr": wh_zr, "wh_c": wh_c,
        "wd_zr": wd_zr, "bd_zr": bd_zr, "wd_c": wd_c, "bd_c": bd_c,
        "wo_blk": wo_blk, "bo_blk": bo_blk,
    }


if __name__ == "__main__":
    key = jax.random.PRNGKey(0)
    kp_key, src_key = jax.random.split(key)
    params = init_params(kp_key)
    kparams = prep_kernel_params(params)

    source = jax.random.normal(src_key, (B, T_HIST, N_NODES, INPUT_DIM), jnp.float32)

    out = jax.block_until_ready(jax.jit(hdyna_pallas)(source, kparams))
    ref = jax.block_until_ready(hdyna_reference(source, params))

    assert out.shape == (B, HORIZON, N_NODES, OUTPUT_DIM), out.shape
    assert np.allclose(np.asarray(out), np.asarray(ref), atol=2e-2, rtol=2e-2), (
        "mismatch vs pure-JAX reference")
    print("KERNEL_OK")
</pallas_src>

<mosaic_0001>
module attributes {stable_mosaic.version = 11 : i64} {
  func.func @hdyna_kernel(%arg0: memref<48x2xf32, #tpu.memory_space<vmem>>, %arg1: memref<128x16xf32, #tpu.memory_space<vmem>>, %arg2: memref<1x16xf32, #tpu.memory_space<vmem>>, %arg3: memref<64x16xf32, #tpu.memory_space<vmem>>, %arg4: memref<8x64xf32, #tpu.memory_space<vmem>>, %arg5: memref<2x32xf32, #tpu.memory_space<vmem>>, %arg6: memref<1x32xf32, #tpu.memory_space<vmem>>, %arg7: memref<2x16xf32, #tpu.memory_space<vmem>>, %arg8: memref<1x16xf32, #tpu.memory_space<vmem>>, %arg9: memref<16x32xf32, #tpu.memory_space<vmem>>, %arg10: memref<16x16xf32, #tpu.memory_space<vmem>>, %arg11: memref<16x32xf32, #tpu.memory_space<vmem>>, %arg12: memref<1x32xf32, #tpu.memory_space<vmem>>, %arg13: memref<16x16xf32, #tpu.memory_space<vmem>>, %arg14: memref<1x16xf32, #tpu.memory_space<vmem>>, %arg15: memref<48x6xf32, #tpu.memory_space<vmem>>, %arg16: memref<1x6xf32, #tpu.memory_space<vmem>>, %arg17: memref<8x6xf32, #tpu.memory_space<vmem>>) attributes {dimension_semantics = [], scalar_prefetch = 0 : i64, scratch_operands = 0 : i64, tpu.core_type = #tpu.core_type<tc>} {
    %c0 = arith.constant 0 : index
    %c0_0 = arith.constant 0 : index
    %0 = vector.load %arg2[%c0, %c0_0] : memref<1x16xf32, #tpu.memory_space<vmem>>, vector<1x16xf32>
    %1 = vector.shape_cast %0 : vector<1x16xf32> to vector<1x16xf32>
    %2 = vector.broadcast %1 : vector<1x16xf32> to vector<8x16xf32>
    %c0_1 = arith.constant 0 : index
    %c0_2 = arith.constant 0 : index
    %3 = vector.load %arg12[%c0_1, %c0_2] : memref<1x32xf32, #tpu.memory_space<vmem>>, vector<1x32xf32>
    %4 = vector.shape_cast %3 : vector<1x32xf32> to vector<1x32xf32>
    %5 = vector.broadcast %4 : vector<1x32xf32> to vector<8x32xf32>
    %c0_3 = arith.constant 0 : index
    %c0_4 = arith.constant 0 : index
    %6 = vector.load %arg14[%c0_3, %c0_4] : memref<1x16xf32, #tpu.memory_space<vmem>>, vector<1x16xf32>
    %7 = vector.shape_cast %6 : vector<1x16xf32> to vector<1x16xf32>
    %8 = vector.broadcast %7 : vector<1x16xf32> to vector<8x16xf32>
    %c0_5 = arith.constant 0 : index
    %c0_6 = arith.constant 0 : index
    %9 = vector.load %arg4[%c0_5, %c0_6] : memref<8x64xf32, #tpu.memory_space<vmem>>, vector<8x64xf32>
    %10 = tpu.iota {dimensions = array<i32: 1>} : vector<8x16xi32>
    %c10_i32 = arith.constant 10 : i32
    %11 = vector.broadcast %c10_i32 : i32 to vector<8x16xi32>
    %12 = arith.cmpi slt, %10, %11 : vector<8x16xi32>
    %13 = tpu.iota {dimensions = array<i32: 1>} : vector<8x128xi32>
    %c112_i32 = arith.constant 112 : i32
    %14 = vector.broadcast %c112_i32 : i32 to vector<8x128xi32>
    %15 = arith.cmpi sge, %13, %14 : vector<8x128xi32>
    %cst = arith.constant 0.000000e+00 : f32
    %16 = vector.broadcast %cst : f32 to vector<8x112xf32>
    %c0_7 = arith.constant 0 : index
    %c0_8 = arith.constant 0 : index
    %17 = vector.load %arg0[%c0_7, %c0_8] : memref<48x2xf32, #tpu.memory_space<vmem>>, vector<48x2xf32>
    %c0_9 = arith.constant 0 : index
    %c0_10 = arith.constant 0 : index
    %18 = vector.load %arg5[%c0_9, %c0_10] : memref<2x32xf32, #tpu.memory_space<vmem>>, vector<2x32xf32>
    %cst_11 = arith.constant dense<0.000000e+00> : vector<48x32xf32>
    %19 = tpu.matmul %17, %18, %cst_11 {dimension_numbers = #tpu.dot_dimension_numbers<[1], [0], [0], [1], [0, 0, 1, 1], [], []>} : vector<48x2xf32>, vector<2x32xf32>, vector<48x32xf32> -> vector<48x32xf32>
    %c0_12 = arith.constant 0 : index
    %c0_13 = arith.constant 0 : index
    %20 = vector.load %arg6[%c0_12, %c0_13] : memref<1x32xf32, #tpu.memory_space<vmem>>, vector<1x32xf32>
    %21 = vector.broadcast %20 : vector<1x32xf32> to vector<48x32xf32>
    %22 = arith.addf %19, %21 : vector<48x32xf32>
    %c0_14 = arith.constant 0 : index
    %c0_15 = arith.constant 0 : index
    %23 = vector.load %arg7[%c0_14, %c0_15] : memref<2x16xf32, #tpu.memory_space<vmem>>, vector<2x16xf32>
    %cst_16 = arith.constant dense<0.000000e+00> : vector<48x16xf32>
    %24 = tpu.matmul %17, %23, %cst_16 {dimension_numbers = #tpu.dot_dimension_numbers<[1], [0], [0], [1], [0, 0, 1, 1], [], []>} : vector<48x2xf32>, vector<2x16xf32>, vector<48x16xf32> -> vector<48x16xf32>
    %c0_17 = arith.constant 0 : index
    %c0_18 = arith.constant 0 : index
    %25 = vector.load %arg8[%c0_17, %c0_18] : memref<1x16xf32, #tpu.memory_space<vmem>>, vector<1x16xf32>
    %26 = vector.broadcast %25 : vector<1x16xf32> to vector<48x16xf32>
    %27 = arith.addf %24, %26 : vector<48x16xf32>
    %cst_19 = arith.constant 0.000000e+00 : f32
    %28 = vector.broadcast %cst_19 : f32 to vector<8x16xf32>
    %cst_20 = arith.constant 0.000000e+00 : f32
    %29 = vector.broadcast %cst_20 : f32 to vector<8x128xf32>
    %30 = vector.extract_strided_slice %22 {offsets = [0, 0], sizes = [8, 32], strides = [1, 1]} : vector<48x32xf32> to vector<8x32xf32>
    %31 = vector.extract_strided_slice %27 {offsets = [0, 0], sizes = [8, 16], strides = [1, 1]} : vector<48x16xf32> to vector<8x16xf32>
    %c0_21 = arith.constant 0 : index
    %c0_22 = arith.constant 0 : index
    %32 = vector.load %arg1[%c0_21, %c0_22] : memref<128x16xf32, #tpu.memory_space<vmem>>, vector<128x16xf32>
    %cst_23 = arith.constant dense<0.000000e+00> : vector<8x16xf32>
    %33 = tpu.matmul %29, %32, %cst_23 {dimension_numbers = #tpu.dot_dimension_numbers<[1], [0], [0], [1], [0, 0, 1, 1], [], []>} : vector<8x128xf32>, vector<128x16xf32>, vector<8x16xf32> -> vector<8x16xf32>
    %34 = arith.addf %33, %2 : vector<8x16xf32>
    %cst_24 = arith.constant 0xFF800000 : f32
    %35 = vector.broadcast %cst_24 : f32 to vector<8x16xf32>
    %36 = arith.select %12, %34, %35 : vector<8x16xi1>, vector<8x16xf32>
    %cst_25 = arith.constant dense<0xFF800000> : vector<8xf32>
    %37 = vector.multi_reduction <maximumf>, %36, %cst_25 [1] : vector<8x16xf32> to vector<8xf32>
    %38 = vector.shape_cast %37 : vector<8xf32> to vector<8x1xf32>
    %cst_26 = arith.constant 0xFF800000 : f32
    %39 = vector.broadcast %cst_26 : f32 to vector<8x16xf32>
    %40 = arith.select %12, %39, %34 : vector<8x16xi1>, vector<8x16xf32>
    %cst_27 = arith.constant dense<0xFF800000> : vector<8xf32>
    %41 = vector.multi_reduction <maximumf>, %40, %cst_27 [1] : vector<8x16xf32> to vector<8xf32>
    %42 = vector.shape_cast %41 : vector<8xf32> to vector<8x1xf32>
    %43 = vector.shape_cast %38 : vector<8x1xf32> to vector<8x1xf32>
    %44 = vector.broadcast %43 : vector<8x1xf32> to vector<8x16xf32>
    %45 = vector.shape_cast %42 : vector<8x1xf32> to vector<8x1xf32>
    %46 = vector.broadcast %45 : vector<8x1xf32> to vector<8x16xf32>
    %47 = arith.select %12, %44, %46 : vector<8x16xi1>, vector<8x16xf32>
    %48 = arith.subf %34, %47 : vector<8x16xf32>
    %49 = math.exp %48 : vector<8x16xf32>
    %cst_28 = arith.constant 0.000000e+00 : f32
    %50 = vector.broadcast %cst_28 : f32 to vector<8x16xf32>
    %51 = arith.select %12, %49, %50 : vector<8x16xi1>, vector<8x16xf32>
    %cst_29 = arith.constant dense<0.000000e+00> : vector<8xf32>
    %52 = vector.multi_reduction <add>, %51, %cst_29 [1] : vector<8x16xf32> to vector<8xf32>
    %53 = vector.shape_cast %52 : vector<8xf32> to vector<8x1xf32>
    %cst_30 = arith.constant 0.000000e+00 : f32
    %54 = vector.broadcast %cst_30 : f32 to vector<8x16xf32>
    %55 = arith.select %12, %54, %49 : vector<8x16xi1>, vector<8x16xf32>
    %cst_31 = arith.constant dense<0.000000e+00> : vector<8xf32>
    %56 = vector.multi_reduction <add>, %55, %cst_31 [1] : vector<8x16xf32> to vector<8xf32>
    %57 = vector.shape_cast %56 : vector<8xf32> to vector<8x1xf32>
    %58 = vector.shape_cast %53 : vector<8x1xf32> to vector<8x1xf32>
    %59 = vector.broadcast %58 : vector<8x1xf32> to vector<8x16xf32>
    %60 = vector.shape_cast %57 : vector<8x1xf32> to vector<8x1xf32>
    %61 = vector.broadcast %60 : vector<8x1xf32> to vector<8x16xf32>
    %62 = arith.select %12, %59, %61 : vector<8x16xi1>, vector<8x16xf32>
    %63 = arith.divf %49, %62 : vector<8x16xf32>
    %64 = tpu.concatenate %63, %63, %63, %63 in 1 : vector<8x16xf32>, vector<8x16xf32>, vector<8x16xf32>, vector<8x16xf32> -> vector<8x64xf32>
    %65 = arith.mulf %64, %9 : vector<8x64xf32>
    %c0_32 = arith.constant 0 : index
    %c0_33 = arith.constant 0 : index
    %66 = vector.load %arg3[%c0_32, %c0_33] : memref<64x16xf32, #tpu.memory_space<vmem>>, vector<64x16xf32>
    %cst_34 = arith.constant dense<0.000000e+00> : vector<8x16xf32>
    %67 = tpu.matmul %65, %66, %cst_34 {dimension_numbers = #tpu.dot_dimension_numbers<[1], [0], [0], [1], [0, 0, 1, 1], [], []>} : vector<8x64xf32>, vector<64x16xf32>, vector<8x16xf32> -> vector<8x16xf32>
    %c0_35 = arith.constant 0 : index
    %c0_36 = arith.constant 0 : index
    %68 = vector.load %arg9[%c0_35, %c0_36] : memref<16x32xf32, #tpu.memory_space<vmem>>, vector<16x32xf32>
    %cst_37 = arith.constant dense<0.000000e+00> : vector<8x32xf32>
    %69 = tpu.matmul %28, %68, %cst_37 {dimension_numbers = #tpu.dot_dimension_numbers<[1], [0], [0], [1], [0, 0, 1, 1], [], []>} : vector<8x16xf32>, vector<16x32xf32>, vector<8x32xf32> -> vector<8x32xf32>
    %70 = arith.addf %30, %69 : vector<8x32xf32>
    %71 = arith.negf %70 : vector<8x32xf32>
    %72 = math.exp %71 : vector<8x32xf32>
    %cst_38 = arith.constant 1.000000e+00 : f32
    %73 = vector.broadcast %cst_38 : f32 to vector<8x32xf32>
    %74 = arith.addf %73, %72 : vector<8x32xf32>
    %75 = arith.divf %73, %74 : vector<8x32xf32>
    %76 = vector.extract_strided_slice %75 {offsets = [0, 0], sizes = [8, 16], strides = [1, 1]} : vector<8x32xf32> to vector<8x16xf32>
    %77 = vector.extract_strided_slice %75 {offsets = [0, 16], sizes = [8, 16], strides = [1, 1]} : vector<8x32xf32> to vector<8x16xf32>
    %78 = arith.mulf %77, %28 : vector<8x16xf32>
    %c0_39 = arith.constant 0 : index
    %c0_40 = arith.constant 0 : index
    %79 = vector.load %arg10[%c0_39, %c0_40] : memref<16x16xf32, #tpu.memory_space<vmem>>, vector<16x16xf32>
    %cst_41 = arith.constant dense<0.000000e+00> : vector<8x16xf32>
    %80 = tpu.matmul %78, %79, %cst_41 {dimension_numbers = #tpu.dot_dimension_numbers<[1], [0], [0], [1], [0, 0, 1, 1], [], []>} : vector<8x16xf32>, vector<16x16xf32>, vector<8x16xf32> -> vector<8x16xf32>
    %81 = arith.addf %31, %80 : vector<8x16xf32>
    %82 = arith.addf %81, %67 : vector<8x16xf32>
    %83 = math.tanh %82 : vector<8x16xf32>
    %84 = arith.subf %83, %28 : vector<8x16xf32>
    %85 = arith.mulf %76, %84 : vector<8x16xf32>
    %86 = arith.addf %28, %85 : vector<8x16xf32>
    %c112_i32_42 = arith.constant 112 : i32
    %87 = tpu.dynamic_rotate %29 by %c112_i32_42 dim 1 : vector<8x128xf32>, i32 -> vector<8x128xf32>
    %88 = tpu.concatenate %16, %86 in 1 : vector<8x112xf32>, vector<8x16xf32> -> vector<8x128xf32>
    %89 = arith.select %15, %88, %87 : vector<8x128xi1>, vector<8x128xf32>
    %90 = vector.extract_strided_slice %22 {offsets = [8, 0], sizes = [8, 32], strides = [1, 1]} : vector<48x32xf32> to vector<8x32xf32>
    %91 = vector.extract_strided_slice %27 {offsets = [8, 0], sizes = [8, 16], strides = [1, 1]} : vector<48x16xf32> to vector<8x16xf32>
    %c0_43 = arith.constant 0 : index
    %c0_44 = arith.constant 0 : index
    %92 = vector.load %arg1[%c0_43, %c0_44] : memref<128x16xf32, #tpu.memory_space<vmem>>, vector<128x16xf32>
    %cst_45 = arith.constant dense<0.000000e+00> : vector<8x16xf32>
    %93 = tpu.matmul %89, %92, %cst_45 {dimension_numbers = #tpu.dot_dimension_numbers<[1], [0], [0], [1], [0, 0, 1, 1], [], []>} : vector<8x128xf32>, vector<128x16xf32>, vector<8x16xf32> -> vector<8x16xf32>
    %94 = arith.addf %93, %2 : vector<8x16xf32>
    %cst_46 = arith.constant 0xFF800000 : f32
    %95 = vector.broadcast %cst_46 : f32 to vector<8x16xf32>
    %96 = arith.select %12, %94, %95 : vector<8x16xi1>, vector<8x16xf32>
    %cst_47 = arith.constant dense<0xFF800000> : vector<8xf32>
    %97 = vector.multi_reduction <maximumf>, %96, %cst_47 [1] : vector<8x16xf32> to vector<8xf32>
    %98 = vector.shape_cast %97 : vector<8xf32> to vector<8x1xf32>
    %cst_48 = arith.constant 0xFF800000 : f32
    %99 = vector.broadcast %cst_48 : f32 to vector<8x16xf32>
    %100 = arith.select %12, %99, %94 : vector<8x16xi1>, vector<8x16xf32>
    %cst_49 = arith.constant dense<0xFF800000> : vector<8xf32>
    %101 = vector.multi_reduction <maximumf>, %100, %cst_49 [1] : vector<8x16xf32> to vector<8xf32>
    %102 = vector.shape_cast %101 : vector<8xf32> to vector<8x1xf32>
    %103 = vector.shape_cast %98 : vector<8x1xf32> to vector<8x1xf32>
    %104 = vector.broadcast %103 : vector<8x1xf32> to vector<8x16xf32>
    %105 = vector.shape_cast %102 : vector<8x1xf32> to vector<8x1xf32>
    %106 = vector.broadcast %105 : vector<8x1xf32> to vector<8x16xf32>
    %107 = arith.select %12, %104, %106 : vector<8x16xi1>, vector<8x16xf32>
    %108 = arith.subf %94, %107 : vector<8x16xf32>
    %109 = math.exp %108 : vector<8x16xf32>
    %cst_50 = arith.constant 0.000000e+00 : f32
    %110 = vector.broadcast %cst_50 : f32 to vector<8x16xf32>
    %111 = arith.select %12, %109, %110 : vector<8x16xi1>, vector<8x16xf32>
    %cst_51 = arith.constant dense<0.000000e+00> : vector<8xf32>
    %112 = vector.multi_reduction <add>, %111, %cst_51 [1] : vector<8x16xf32> to vector<8xf32>
    %113 = vector.shape_cast %112 : vector<8xf32> to vector<8x1xf32>
    %cst_52 = arith.constant 0.000000e+00 : f32
    %114 = vector.broadcast %cst_52 : f32 to vector<8x16xf32>
    %115 = arith.select %12, %114, %109 : vector<8x16xi1>, vector<8x16xf32>
    %cst_53 = arith.constant dense<0.000000e+00> : vector<8xf32>
    %116 = vector.multi_reduction <add>, %115, %cst_53 [1] : vector<8x16xf32> to vector<8xf32>
    %117 = vector.shape_cast %116 : vector<8xf32> to vector<8x1xf32>
    %118 = vector.shape_cast %113 : vector<8x1xf32> to vector<8x1xf32>
    %119 = vector.broadcast %118 : vector<8x1xf32> to vector<8x16xf32>
    %120 = vector.shape_cast %117 : vector<8x1xf32> to vector<8x1xf32>
    %121 = vector.broadcast %120 : vector<8x1xf32> to vector<8x16xf32>
    %122 = arith.select %12, %119, %121 : vector<8x16xi1>, vector<8x16xf32>
    %123 = arith.divf %109, %122 : vector<8x16xf32>
    %124 = tpu.concatenate %123, %123, %123, %123 in 1 : vector<8x16xf32>, vector<8x16xf32>, vector<8x16xf32>, vector<8x16xf32> -> vector<8x64xf32>
    %125 = arith.mulf %124, %9 : vector<8x64xf32>
    %c0_54 = arith.constant 0 : index
    %c0_55 = arith.constant 0 : index
    %126 = vector.load %arg3[%c0_54, %c0_55] : memref<64x16xf32, #tpu.memory_space<vmem>>, vector<64x16xf32>
    %cst_56 = arith.constant dense<0.000000e+00> : vector<8x16xf32>
    %127 = tpu.matmul %125, %126, %cst_56 {dimension_numbers = #tpu.dot_dimension_numbers<[1], [0], [0], [1], [0, 0, 1, 1], [], []>} : vector<8x64xf32>, vector<64x16xf32>, vector<8x16xf32> -> vector<8x16xf32>
    %c0_57 = arith.constant 0 : index
    %c0_58 = arith.constant 0 : index
    %128 = vector.load %arg9[%c0_57, %c0_58] : memref<16x32xf32, #tpu.memory_space<vmem>>, vector<16x32xf32>
    %cst_59 = arith.constant dense<0.000000e+00> : vector<8x32xf32>
    %129 = tpu.matmul %86, %128, %cst_59 {dimension_numbers = #tpu.dot_dimension_numbers<[1], [0], [0], [1], [0, 0, 1, 1], [], []>} : vector<8x16xf32>, vector<16x32xf32>, vector<8x32xf32> -> vector<8x32xf32>
    %130 = arith.addf %90, %129 : vector<8x32xf32>
    %131 = arith.negf %130 : vector<8x32xf32>
    %132 = math.exp %131 : vector<8x32xf32>
    %cst_60 = arith.constant 1.000000e+00 : f32
    %133 = vector.broadcast %cst_60 : f32 to vector<8x32xf32>
    %134 = arith.addf %133, %132 : vector<8x32xf32>
    %135 = arith.divf %133, %134 : vector<8x32xf32>
    %136 = vector.extract_strided_slice %135 {offsets = [0, 0], sizes = [8, 16], strides = [1, 1]} : vector<8x32xf32> to vector<8x16xf32>
    %137 = vector.extract_strided_slice %135 {offsets = [0, 16], sizes = [8, 16], strides = [1, 1]} : vector<8x32xf32> to vector<8x16xf32>
    %138 = arith.mulf %137, %86 : vector<8x16xf32>
    %c0_61 = arith.constant 0 : index
    %c0_62 = arith.constant 0 : index
    %139 = vector.load %arg10[%c0_61, %c0_62] : memref<16x16xf32, #tpu.memory_space<vmem>>, vector<16x16xf32>
    %cst_63 = arith.constant dense<0.000000e+00> : vector<8x16xf32>
    %140 = tpu.matmul %138, %139, %cst_63 {dimension_numbers = #tpu.dot_dimension_numbers<[1], [0], [0], [1], [0, 0, 1, 1], [], []>} : vector<8x16xf32>, vector<16x16xf32>, vector<8x16xf32> -> vector<8x16xf32>
    %141 = arith.addf %91, %140 : vector<8x16xf32>
    %142 = arith.addf %141, %127 : vector<8x16xf32>
    %143 = math.tanh %142 : vector<8x16xf32>
    %144 = arith.subf %143, %86 : vector<8x16xf32>
    %145 = arith.mulf %136, %144 : vector<8x16xf32>
    %146 = arith.addf %86, %145 : vector<8x16xf32>
    %c112_i32_64 = arith.constant 112 : i32
    %147 = tpu.dynamic_rotate %89 by %c112_i32_64 dim 1 : vector<8x128xf32>, i32 -> vector<8x128xf32>
    %148 = tpu.concatenate %16, %146 in 1 : vector<8x112xf32>, vector<8x16xf32> -> vector<8x128xf32>
    %149 = arith.select %15, %148, %147 : vector<8x128xi1>, vector<8x128xf32>
    %150 = vector.extract_strided_slice %22 {offsets = [16, 0], sizes = [8, 32], strides = [1, 1]} : vector<48x32xf32> to vector<8x32xf32>
    %151 = vector.extract_strided_slice %27 {offsets = [16, 0], sizes = [8, 16], strides = [1, 1]} : vector<48x16xf32> to vector<8x16xf32>
    %c0_65 = arith.constant 0 : index
    %c0_66 = arith.constant 0 : index
    %152 = vector.load %arg1[%c0_65, %c0_66] : memref<128x16xf32, #tpu.memory_space<vmem>>, vector<128x16xf32>
    %cst_67 = arith.constant dense<0.000000e+00> : vector<8x16xf32>
    %153 = tpu.matmul %149, %152, %cst_67 {dimension_numbers = #tpu.dot_dimension_numbers<[1], [0], [0], [1], [0, 0, 1, 1], [], []>} : vector<8x128xf32>, vector<128x16xf32>, vector<8x16xf32> -> vector<8x16xf32>
    %154 = arith.addf %153, %2 : vector<8x16xf32>
    %cst_68 = arith.constant 0xFF800000 : f32
    %155 = vector.broadcast %cst_68 : f32 to vector<8x16xf32>
    %156 = arith.select %12, %154, %155 : vector<8x16xi1>, vector<8x16xf32>
    %cst_69 = arith.constant dense<0xFF800000> : vector<8xf32>
    %157 = vector.multi_reduction <maximumf>, %156, %cst_69 [1] : vector<8x16xf32> to vector<8xf32>
    %158 = vector.shape_cast %157 : vector<8xf32> to vector<8x1xf32>
    %cst_70 = arith.constant 0xFF800000 : f32
    %159 = vector.broadcast %cst_70 : f32 to vector<8x16xf32>
    %160 = arith.select %12, %159, %154 : vector<8x16xi1>, vector<8x16xf32>
    %cst_71 = arith.constant dense<0xFF800000> : vector<8xf32>
    %161 = vector.multi_reduction <maximumf>, %160, %cst_71 [1] : vector<8x16xf32> to vector<8xf32>
    %162 = vector.shape_cast %161 : vector<8xf32> to vector<8x1xf32>
    %163 = vector.shape_cast %158 : vector<8x1xf32> to vector<8x1xf32>
    %164 = vector.broadcast %163 : vector<8x1xf32> to vector<8x16xf32>
    %165 = vector.shape_cast %162 : vector<8x1xf32> to vector<8x1xf32>
    %166 = vector.broadcast %165 : vector<8x1xf32> to vector<8x16xf32>
    %167 = arith.select %12, %164, %166 : vector<8x16xi1>, vector<8x16xf32>
    %168 = arith.subf %154, %167 : vector<8x16xf32>
    %169 = math.exp %168 : vector<8x16xf32>
    %cst_72 = arith.constant 0.000000e+00 : f32
    %170 = vector.broadcast %cst_72 : f32 to vector<8x16xf32>
    %171 = arith.select %12, %169, %170 : vector<8x16xi1>, vector<8x16xf32>
    %cst_73 = arith.constant dense<0.000000e+00> : vector<8xf32>
    %172 = vector.multi_reduction <add>, %171, %cst_73 [1] : vector<8x16xf32> to vector<8xf32>
    %173 = vector.shape_cast %172 : vector<8xf32> to vector<8x1xf32>
    %cst_74 = arith.constant 0.000000e+00 : f32
    %174 = vector.broadcast %cst_74 : f32 to vector<8x16xf32>
    %175 = arith.select %12, %174, %169 : vector<8x16xi1>, vector<8x16xf32>
    %cst_75 = arith.constant dense<0.000000e+00> : vector<8xf32>
    %176 = vector.multi_reduction <add>, %175, %cst_75 [1] : vector<8x16xf32> to vector<8xf32>
    %177 = vector.shape_cast %176 : vector<8xf32> to vector<8x1xf32>
    %178 = vector.shape_cast %173 : vector<8x1xf32> to vector<8x1xf32>
    %179 = vector.broadcast %178 : vector<8x1xf32> to vector<8x16xf32>
    %180 = vector.shape_cast %177 : vector<8x1xf32> to vector<8x1xf32>
    %181 = vector.broadcast %180 : vector<8x1xf32> to vector<8x16xf32>
    %182 = arith.select %12, %179, %181 : vector<8x16xi1>, vector<8x16xf32>
    %183 = arith.divf %169, %182 : vector<8x16xf32>
    %184 = tpu.concatenate %183, %183, %183, %183 in 1 : vector<8x16xf32>, vector<8x16xf32>, vector<8x16xf32>, vector<8x16xf32> -> vector<8x64xf32>
    %185 = arith.mulf %184, %9 : vector<8x64xf32>
    %c0_76 = arith.constant 0 : index
    %c0_77 = arith.constant 0 : index
    %186 = vector.load %arg3[%c0_76, %c0_77] : memref<64x16xf32, #tpu.memory_space<vmem>>, vector<64x16xf32>
    %cst_78 = arith.constant dense<0.000000e+00> : vector<8x16xf32>
    %187 = tpu.matmul %185, %186, %cst_78 {dimension_numbers = #tpu.dot_dimension_numbers<[1], [0], [0], [1], [0, 0, 1, 1], [], []>} : vector<8x64xf32>, vector<64x16xf32>, vector<8x16xf32> -> vector<8x16xf32>
    %c0_79 = arith.constant 0 : index
    %c0_80 = arith.constant 0 : index
    %188 = vector.load %arg9[%c0_79, %c0_80] : memref<16x32xf32, #tpu.memory_space<vmem>>, vector<16x32xf32>
    %cst_81 = arith.constant dense<0.000000e+00> : vector<8x32xf32>
    %189 = tpu.matmul %146, %188, %cst_81 {dimension_numbers = #tpu.dot_dimension_numbers<[1], [0], [0], [1], [0, 0, 1, 1], [], []>} : vector<8x16xf32>, vector<16x32xf32>, vector<8x32xf32> -> vector<8x32xf32>
    %190 = arith.addf %150, %189 : vector<8x32xf32>
    %191 = arith.negf %190 : vector<8x32xf32>
    %192 = math.exp %191 : vector<8x32xf32>
    %cst_82 = arith.constant 1.000000e+00 : f32
    %193 = vector.broadcast %cst_82 : f32 to vector<8x32xf32>
    %194 = arith.addf %193, %192 : vector<8x32xf32>
    %195 = arith.divf %193, %194 : vector<8x32xf32>
    %196 = vector.extract_strided_slice %195 {offsets = [0, 0], sizes = [8, 16], strides = [1, 1]} : vector<8x32xf32> to vector<8x16xf32>
    %197 = vector.extract_strided_slice %195 {offsets = [0, 16], sizes = [8, 16], strides = [1, 1]} : vector<8x32xf32> to vector<8x16xf32>
    %198 = arith.mulf %197, %146 : vector<8x16xf32>
    %c0_83 = arith.constant 0 : index
    %c0_84 = arith.constant 0 : index
    %199 = vector.load %arg10[%c0_83, %c0_84] : memref<16x16xf32, #tpu.memory_space<vmem>>, vector<16x16xf32>
    %cst_85 = arith.constant dense<0.000000e+00> : vector<8x16xf32>
    %200 = tpu.matmul %198, %199, %cst_85 {dimension_numbers = #tpu.dot_dimension_numbers<[1], [0], [0], [1], [0, 0, 1, 1], [], []>} : vector<8x16xf32>, vector<16x16xf32>, vector<8x16xf32> -> vector<8x16xf32>
    %201 = arith.addf %151, %200 : vector<8x16xf32>
    %202 = arith.addf %201, %187 : vector<8x16xf32>
    %203 = math.tanh %202 : vector<8x16xf32>
    %204 = arith.subf %203, %146 : vector<8x16xf32>
    %205 = arith.mulf %196, %204 : vector<8x16xf32>
    %206 = arith.addf %146, %205 : vector<8x16xf32>
    %c112_i32_86 = arith.constant 112 : i32
    %207 = tpu.dynamic_rotate %149 by %c112_i32_86 dim 1 : vector<8x128xf32>, i32 -> vector<8x128xf32>
    %208 = tpu.concatenate %16, %206 in 1 : vector<8x112xf32>, vector<8x16xf32> -> vector<8x128xf32>
    %209 = arith.select %15, %208, %207 : vector<8x128xi1>, vector<8x128xf32>
    %210 = vector.extract_strided_slice %22 {offsets = [24, 0], sizes = [8, 32], strides = [1, 1]} : vector<48x32xf32> to vector<8x32xf32>
    %211 = vector.extract_strided_slice %27 {offsets = [24, 0], sizes = [8, 16], strides = [1, 1]} : vector<48x16xf32> to vector<8x16xf32>
    %c0_87 = arith.constant 0 : index
    %c0_88 = arith.constant 0 : index
    %212 = vector.load %arg1[%c0_87, %c0_88] : memref<128x16xf32, #tpu.memory_space<vmem>>, vector<128x16xf32>
    %cst_89 = arith.constant dense<0.000000e+00> : vector<8x16xf32>
    %213 = tpu.matmul %209, %212, %cst_89 {dimension_numbers = #tpu.dot_dimension_numbers<[1], [0], [0], [1], [0, 0, 1, 1], [], []>} : vector<8x128xf32>, vector<128x16xf32>, vector<8x16xf32> -> vector<8x16xf32>
    %214 = arith.addf %213, %2 : vector<8x16xf32>
    %cst_90 = arith.constant 0xFF800000 : f32
    %215 = vector.broadcast %cst_90 : f32 to vector<8x16xf32>
    %216 = arith.select %12, %214, %215 : vector<8x16xi1>, vector<8x16xf32>
    %cst_91 = arith.constant dense<0xFF800000> : vector<8xf32>
    %217 = vector.multi_reduction <maximumf>, %216, %cst_91 [1] : vector<8x16xf32> to vector<8xf32>
    %218 = vector.shape_cast %217 : vector<8xf32> to vector<8x1xf32>
    %cst_92 = arith.constant 0xFF800000 : f32
    %219 = vector.broadcast %cst_92 : f32 to vector<8x16xf32>
    %220 = arith.select %12, %219, %214 : vector<8x16xi1>, vector<8x16xf32>
    %cst_93 = arith.constant dense<0xFF800000> : vector<8xf32>
    %221 = vector.multi_reduction <maximumf>, %220, %cst_93 [1] : vector<8x16xf32> to vector<8xf32>
    %222 = vector.shape_cast %221 : vector<8xf32> to vector<8x1xf32>
    %223 = vector.shape_cast %218 : vector<8x1xf32> to vector<8x1xf32>
    %224 = vector.broadcast %223 : vector<8x1xf32> to vector<8x16xf32>
    %225 = vector.shape_cast %222 : vector<8x1xf32> to vector<8x1xf32>
    %226 = vector.broadcast %225 : vector<8x1xf32> to vector<8x16xf32>
    %227 = arith.select %12, %224, %226 : vector<8x16xi1>, vector<8x16xf32>
    %228 = arith.subf %214, %227 : vector<8x16xf32>
    %229 = math.exp %228 : vector<8x16xf32>
    %cst_94 = arith.constant 0.000000e+00 : f32
    %230 = vector.broadcast %cst_94 : f32 to vector<8x16xf32>
    %231 = arith.select %12, %229, %230 : vector<8x16xi1>, vector<8x16xf32>
    %cst_95 = arith.constant dense<0.000000e+00> : vector<8xf32>
    %232 = vector.multi_reduction <add>, %231, %cst_95 [1] : vector<8x16xf32> to vector<8xf32>
    %233 = vector.shape_cast %232 : vector<8xf32> to vector<8x1xf32>
    %cst_96 = arith.constant 0.000000e+00 : f32
    %234 = vector.broadcast %cst_96 : f32 to vector<8x16xf32>
    %235 = arith.select %12, %234, %229 : vector<8x16xi1>, vector<8x16xf32>
    %cst_97 = arith.constant dense<0.000000e+00> : vector<8xf32>
    %236 = vector.multi_reduction <add>, %235, %cst_97 [1] : vector<8x16xf32> to vector<8xf32>
    %237 = vector.shape_cast %236 : vector<8xf32> to vector<8x1xf32>
    %238 = vector.shape_cast %233 : vector<8x1xf32> to vector<8x1xf32>
    %239 = vector.broadcast %238 : vector<8x1xf32> to vector<8x16xf32>
    %240 = vector.shape_cast %237 : vector<8x1xf32> to vector<8x1xf32>
    %241 = vector.broadcast %240 : vector<8x1xf32> to vector<8x16xf32>
    %242 = arith.select %12, %239, %241 : vector<8x16xi1>, vector<8x16xf32>
    %243 = arith.divf %229, %242 : vector<8x16xf32>
    %244 = tpu.concatenate %243, %243, %243, %243 in 1 : vector<8x16xf32>, vector<8x16xf32>, vector<8x16xf32>, vector<8x16xf32> -> vector<8x64xf32>
    %245 = arith.mulf %244, %9 : vector<8x64xf32>
    %c0_98 = arith.constant 0 : index
    %c0_99 = arith.constant 0 : index
    %246 = vector.load %arg3[%c0_98, %c0_99] : memref<64x16xf32, #tpu.memory_space<vmem>>, vector<64x16xf32>
    %cst_100 = arith.constant dense<0.000000e+00> : vector<8x16xf32>
    %247 = tpu.matmul %245, %246, %cst_100 {dimension_numbers = #tpu.dot_dimension_numbers<[1], [0], [0], [1], [0, 0, 1, 1], [], []>} : vector<8x64xf32>, vector<64x16xf32>, vector<8x16xf32> -> vector<8x16xf32>
    %c0_101 = arith.constant 0 : index
    %c0_102 = arith.constant 0 : index
    %248 = vector.load %arg9[%c0_101, %c0_102] : memref<16x32xf32, #tpu.memory_space<vmem>>, vector<16x32xf32>
    %cst_103 = arith.constant dense<0.000000e+00> : vector<8x32xf32>
    %249 = tpu.matmul %206, %248, %cst_103 {dimension_numbers = #tpu.dot_dimension_numbers<[1], [0], [0], [1], [0, 0, 1, 1], [], []>} : vector<8x16xf32>, vector<16x32xf32>, vector<8x32xf32> -> vector<8x32xf32>
    %250 = arith.addf %210, %249 : vector<8x32xf32>
    %251 = arith.negf %250 : vector<8x32xf32>
    %252 = math.exp %251 : vector<8x32xf32>
    %cst_104 = arith.constant 1.000000e+00 : f32
    %253 = vector.broadcast %cst_104 : f32 to vector<8x32xf32>
    %254 = arith.addf %253, %252 : vector<8x32xf32>
    %255 = arith.divf %253, %254 : vector<8x32xf32>
    %256 = vector.extract_strided_slice %255 {offsets = [0, 0], sizes = [8, 16], strides = [1, 1]} : vector<8x32xf32> to vector<8x16xf32>
    %257 = vector.extract_strided_slice %255 {offsets = [0, 16], sizes = [8, 16], strides = [1, 1]} : vector<8x32xf32> to vector<8x16xf32>
    %258 = arith.mulf %257, %206 : vector<8x16xf32>
    %c0_105 = arith.constant 0 : index
    %c0_106 = arith.constant 0 : index
    %259 = vector.load %arg10[%c0_105, %c0_106] : memref<16x16xf32, #tpu.memory_space<vmem>>, vector<16x16xf32>
    %cst_107 = arith.constant dense<0.000000e+00> : vector<8x16xf32>
    %260 = tpu.matmul %258, %259, %cst_107 {dimension_numbers = #tpu.dot_dimension_numbers<[1], [0], [0], [1], [0, 0, 1, 1], [], []>} : vector<8x16xf32>, vector<16x16xf32>, vector<8x16xf32> -> vector<8x16xf32>
    %261 = arith.addf %211, %260 : vector<8x16xf32>
    %262 = arith.addf %261, %247 : vector<8x16xf32>
    %263 = math.tanh %262 : vector<8x16xf32>
    %264 = arith.subf %263, %206 : vector<8x16xf32>
    %265 = arith.mulf %256, %264 : vector<8x16xf32>
    %266 = arith.addf %206, %265 : vector<8x16xf32>
    %c112_i32_108 = arith.constant 112 : i32
    %267 = tpu.dynamic_rotate %209 by %c112_i32_108 dim 1 : vector<8x128xf32>, i32 -> vector<8x128xf32>
    %268 = tpu.concatenate %16, %266 in 1 : vector<8x112xf32>, vector<8x16xf32> -> vector<8x128xf32>
    %269 = arith.select %15, %268, %267 : vector<8x128xi1>, vector<8x128xf32>
    %270 = vector.extract_strided_slice %22 {offsets = [32, 0], sizes = [8, 32], strides = [1, 1]} : vector<48x32xf32> to vector<8x32xf32>
    %271 = vector.extract_strided_slice %27 {offsets = [32, 0], sizes = [8, 16], strides = [1, 1]} : vector<48x16xf32> to vector<8x16xf32>
    %c0_109 = arith.constant 0 : index
    %c0_110 = arith.constant 0 : index
    %272 = vector.load %arg1[%c0_109, %c0_110] : memref<128x16xf32, #tpu.memory_space<vmem>>, vector<128x16xf32>
    %cst_111 = arith.constant dense<0.000000e+00> : vector<8x16xf32>
    %273 = tpu.matmul %269, %272, %cst_111 {dimension_numbers = #tpu.dot_dimension_numbers<[1], [0], [0], [1], [0, 0, 1, 1], [], []>} : vector<8x128xf32>, vector<128x16xf32>, vector<8x16xf32> -> vector<8x16xf32>
    %274 = arith.addf %273, %2 : vector<8x16xf32>
    %cst_112 = arith.constant 0xFF800000 : f32
    %275 = vector.broadcast %cst_112 : f32 to vector<8x16xf32>
    %276 = arith.select %12, %274, %275 : vector<8x16xi1>, vector<8x16xf32>
    %cst_113 = arith.constant dense<0xFF800000> : vector<8xf32>
    %277 = vector.multi_reduction <maximumf>, %276, %cst_113 [1] : vector<8x16xf32> to vector<8xf32>
    %278 = vector.shape_cast %277 : vector<8xf32> to vector<8x1xf32>
    %cst_114 = arith.constant 0xFF800000 : f32
    %279 = vector.broadcast %cst_114 : f32 to vector<8x16xf32>
    %280 = arith.select %12, %279, %274 : vector<8x16xi1>, vector<8x16xf32>
    %cst_115 = arith.constant dense<0xFF800000> : vector<8xf32>
    %281 = vector.multi_reduction <maximumf>, %280, %cst_115 [1] : vector<8x16xf32> to vector<8xf32>
    %282 = vector.shape_cast %281 : vector<8xf32> to vector<8x1xf32>
    %283 = vector.shape_cast %278 : vector<8x1xf32> to vector<8x1xf32>
    %284 = vector.broadcast %283 : vector<8x1xf32> to vector<8x16xf32>
    %285 = vector.shape_cast %282 : vector<8x1xf32> to vector<8x1xf32>
    %286 = vector.broadcast %285 : vector<8x1xf32> to vector<8x16xf32>
    %287 = arith.select %12, %284, %286 : vector<8x16xi1>, vector<8x16xf32>
    %288 = arith.subf %274, %287 : vector<8x16xf32>
    %289 = math.exp %288 : vector<8x16xf32>
    %cst_116 = arith.constant 0.000000e+00 : f32
    %290 = vector.broadcast %cst_116 : f32 to vector<8x16xf32>
    %291 = arith.select %12, %289, %290 : vector<8x16xi1>, vector<8x16xf32>
    %cst_117 = arith.constant dense<0.000000e+00> : vector<8xf32>
    %292 = vector.multi_reduction <add>, %291, %cst_117 [1] : vector<8x16xf32> to vector<8xf32>
    %293 = vector.shape_cast %292 : vector<8xf32> to vector<8x1xf32>
    %cst_118 = arith.constant 0.000000e+00 : f32
    %294 = vector.broadcast %cst_118 : f32 to vector<8x16xf32>
    %295 = arith.select %12, %294, %289 : vector<8x16xi1>, vector<8x16xf32>
    %cst_119 = arith.constant dense<0.000000e+00> : vector<8xf32>
    %296 = vector.multi_reduction <add>, %295, %cst_119 [1] : vector<8x16xf32> to vector<8xf32>
    %297 = vector.shape_cast %296 : vector<8xf32> to vector<8x1xf32>
    %298 = vector.shape_cast %293 : vector<8x1xf32> to vector<8x1xf32>
    %299 = vector.broadcast %298 : vector<8x1xf32> to vector<8x16xf32>
    %300 = vector.shape_cast %297 : vector<8x1xf32> to vector<8x1xf32>
    %301 = vector.broadcast %300 : vector<8x1xf32> to vector<8x16xf32>
    %302 = arith.select %12, %299, %301 : vector<8x16xi1>, vector<8x16xf32>
    %303 = arith.divf %289, %302 : vector<8x16xf32>
    %304 = tpu.concatenate %303, %303, %303, %303 in 1 : vector<8x16xf32>, vector<8x16xf32>, vector<8x16xf32>, vector<8x16xf32> -> vector<8x64xf32>
    %305 = arith.mulf %304, %9 : vector<8x64xf32>
    %c0_120 = arith.constant 0 : index
    %c0_121 = arith.constant 0 : index
    %306 = vector.load %arg3[%c0_120, %c0_121] : memref<64x16xf32, #tpu.memory_space<vmem>>, vector<64x16xf32>
    %cst_122 = arith.constant dense<0.000000e+00> : vector<8x16xf32>
    %307 = tpu.matmul %305, %306, %cst_122 {dimension_numbers = #tpu.dot_dimension_numbers<[1], [0], [0], [1], [0, 0, 1, 1], [], []>} : vector<8x64xf32>, vector<64x16xf32>, vector<8x16xf32> -> vector<8x16xf32>
    %c0_123 = arith.constant 0 : index
    %c0_124 = arith.constant 0 : index
    %308 = vector.load %arg9[%c0_123, %c0_124] : memref<16x32xf32, #tpu.memory_space<vmem>>, vector<16x32xf32>
    %cst_125 = arith.constant dense<0.000000e+00> : vector<8x32xf32>
    %309 = tpu.matmul %266, %308, %cst_125 {dimension_numbers = #tpu.dot_dimension_numbers<[1], [0], [0], [1], [0, 0, 1, 1], [], []>} : vector<8x16xf32>, vector<16x32xf32>, vector<8x32xf32> -> vector<8x32xf32>
    %310 = arith.addf %270, %309 : vector<8x32xf32>
    %311 = arith.negf %310 : vector<8x32xf32>
    %312 = math.exp %311 : vector<8x32xf32>
    %cst_126 = arith.constant 1.000000e+00 : f32
    %313 = vector.broadcast %cst_126 : f32 to vector<8x32xf32>
    %314 = arith.addf %313, %312 : vector<8x32xf32>
    %315 = arith.divf %313, %314 : vector<8x32xf32>
    %316 = vector.extract_strided_slice %315 {offsets = [0, 0], sizes = [8, 16], strides = [1, 1]} : vector<8x32xf32> to vector<8x16xf32>
    %317 = vector.extract_strided_slice %315 {offsets = [0, 16], sizes = [8, 16], strides = [1, 1]} : vector<8x32xf32> to vector<8x16xf32>
    %318 = arith.mulf %317, %266 : vector<8x16xf32>
    %c0_127 = arith.constant 0 : index
    %c0_128 = arith.constant 0 : index
    %319 = vector.load %arg10[%c0_127, %c0_128] : memref<16x16xf32, #tpu.memory_space<vmem>>, vector<16x16xf32>
    %cst_129 = arith.constant dense<0.000000e+00> : vector<8x16xf32>
    %320 = tpu.matmul %318, %319, %cst_129 {dimension_numbers = #tpu.dot_dimension_numbers<[1], [0], [0], [1], [0, 0, 1, 1], [], []>} : vector<8x16xf32>, vector<16x16xf32>, vector<8x16xf32> -> vector<8x16xf32>
    %321 = arith.addf %271, %320 : vector<8x16xf32>
    %322 = arith.addf %321, %307 : vector<8x16xf32>
    %323 = math.tanh %322 : vector<8x16xf32>
    %324 = arith.subf %323, %266 : vector<8x16xf32>
    %325 = arith.mulf %316, %324 : vector<8x16xf32>
    %326 = arith.addf %266, %325 : vector<8x16xf32>
    %c112_i32_130 = arith.constant 112 : i32
    %327 = tpu.dynamic_rotate %269 by %c112_i32_130 dim 1 : vector<8x128xf32>, i32 -> vector<8x128xf32>
    %328 = tpu.concatenate %16, %326 in 1 : vector<8x112xf32>, vector<8x16xf32> -> vector<8x128xf32>
    %329 = arith.select %15, %328, %327 : vector<8x128xi1>, vector<8x128xf32>
    %330 = vector.extract_strided_slice %22 {offsets = [40, 0], sizes = [8, 32], strides = [1, 1]} : vector<48x32xf32> to vector<8x32xf32>
    %331 = vector.extract_strided_slice %27 {offsets = [40, 0], sizes = [8, 16], strides = [1, 1]} : vector<48x16xf32> to vector<8x16xf32>
    %c0_131 = arith.constant 0 : index
    %c0_132 = arith.constant 0 : index
    %332 = vector.load %arg1[%c0_131, %c0_132] : memref<128x16xf32, #tpu.memory_space<vmem>>, vector<128x16xf32>
    %cst_133 = arith.constant dense<0.000000e+00> : vector<8x16xf32>
    %333 = tpu.matmul %329, %332, %cst_133 {dimension_numbers = #tpu.dot_dimension_numbers<[1], [0], [0], [1], [0, 0, 1, 1], [], []>} : vector<8x128xf32>, vector<128x16xf32>, vector<8x16xf32> -> vector<8x16xf32>
    %334 = arith.addf %333, %2 : vector<8x16xf32>
    %cst_134 = arith.constant 0xFF800000 : f32
    %335 = vector.broadcast %cst_134 : f32 to vector<8x16xf32>
    %336 = arith.select %12, %334, %335 : vector<8x16xi1>, vector<8x16xf32>
    %cst_135 = arith.constant dense<0xFF800000> : vector<8xf32>
    %337 = vector.multi_reduction <maximumf>, %336, %cst_135 [1] : vector<8x16xf32> to vector<8xf32>
    %338 = vector.shape_cast %337 : vector<8xf32> to vector<8x1xf32>
    %cst_136 = arith.constant 0xFF800000 : f32
    %339 = vector.broadcast %cst_136 : f32 to vector<8x16xf32>
    %340 = arith.select %12, %339, %334 : vector<8x16xi1>, vector<8x16xf32>
    %cst_137 = arith.constant dense<0xFF800000> : vector<8xf32>
    %341 = vector.multi_reduction <maximumf>, %340, %cst_137 [1] : vector<8x16xf32> to vector<8xf32>
    %342 = vector.shape_cast %341 : vector<8xf32> to vector<8x1xf32>
    %343 = vector.shape_cast %338 : vector<8x1xf32> to vector<8x1xf32>
    %344 = vector.broadcast %343 : vector<8x1xf32> to vector<8x16xf32>
    %345 = vector.shape_cast %342 : vector<8x1xf32> to vector<8x1xf32>
    %346 = vector.broadcast %345 : vector<8x1xf32> to vector<8x16xf32>
    %347 = arith.select %12, %344, %346 : vector<8x16xi1>, vector<8x16xf32>
    %348 = arith.subf %334, %347 : vector<8x16xf32>
    %349 = math.exp %348 : vector<8x16xf32>
    %cst_138 = arith.constant 0.000000e+00 : f32
    %350 = vector.broadcast %cst_138 : f32 to vector<8x16xf32>
    %351 = arith.select %12, %349, %350 : vector<8x16xi1>, vector<8x16xf32>
    %cst_139 = arith.constant dense<0.000000e+00> : vector<8xf32>
    %352 = vector.multi_reduction <add>, %351, %cst_139 [1] : vector<8x16xf32> to vector<8xf32>
    %353 = vector.shape_cast %352 : vector<8xf32> to vector<8x1xf32>
    %cst_140 = arith.constant 0.000000e+00 : f32
    %354 = vector.broadcast %cst_140 : f32 to vector<8x16xf32>
    %355 = arith.select %12, %354, %349 : vector<8x16xi1>, vector<8x16xf32>
    %cst_141 = arith.constant dense<0.000000e+00> : vector<8xf32>
    %356 = vector.multi_reduction <add>, %355, %cst_141 [1] : vector<8x16xf32> to vector<8xf32>
    %357 = vector.shape_cast %356 : vector<8xf32> to vector<8x1xf32>
    %358 = vector.shape_cast %353 : vector<8x1xf32> to vector<8x1xf32>
    %359 = vector.broadcast %358 : vector<8x1xf32> to vector<8x16xf32>
    %360 = vector.shape_cast %357 : vector<8x1xf32> to vector<8x1xf32>
    %361 = vector.broadcast %360 : vector<8x1xf32> to vector<8x16xf32>
    %362 = arith.select %12, %359, %361 : vector<8x16xi1>, vector<8x16xf32>
    %363 = arith.divf %349, %362 : vector<8x16xf32>
    %364 = tpu.concatenate %363, %363, %363, %363 in 1 : vector<8x16xf32>, vector<8x16xf32>, vector<8x16xf32>, vector<8x16xf32> -> vector<8x64xf32>
    %365 = arith.mulf %364, %9 : vector<8x64xf32>
    %c0_142 = arith.constant 0 : index
    %c0_143 = arith.constant 0 : index
    %366 = vector.load %arg3[%c0_142, %c0_143] : memref<64x16xf32, #tpu.memory_space<vmem>>, vector<64x16xf32>
    %cst_144 = arith.constant dense<0.000000e+00> : vector<8x16xf32>
    %367 = tpu.matmul %365, %366, %cst_144 {dimension_numbers = #tpu.dot_dimension_numbers<[1], [0], [0], [1], [0, 0, 1, 1], [], []>} : vector<8x64xf32>, vector<64x16xf32>, vector<8x16xf32> -> vector<8x16xf32>
    %c0_145 = arith.constant 0 : index
    %c0_146 = arith.constant 0 : index
    %368 = vector.load %arg9[%c0_145, %c0_146] : memref<16x32xf32, #tpu.memory_space<vmem>>, vector<16x32xf32>
    %cst_147 = arith.constant dense<0.000000e+00> : vector<8x32xf32>
    %369 = tpu.matmul %326, %368, %cst_147 {dimension_numbers = #tpu.dot_dimension_numbers<[1], [0], [0], [1], [0, 0, 1, 1], [], []>} : vector<8x16xf32>, vector<16x32xf32>, vector<8x32xf32> -> vector<8x32xf32>
    %370 = arith.addf %330, %369 : vector<8x32xf32>
    %371 = arith.negf %370 : vector<8x32xf32>
    %372 = math.exp %371 : vector<8x32xf32>
    %cst_148 = arith.constant 1.000000e+00 : f32
    %373 = vector.broadcast %cst_148 : f32 to vector<8x32xf32>
    %374 = arith.addf %373, %372 : vector<8x32xf32>
    %375 = arith.divf %373, %374 : vector<8x32xf32>
    %376 = vector.extract_strided_slice %375 {offsets = [0, 0], sizes = [8, 16], strides = [1, 1]} : vector<8x32xf32> to vector<8x16xf32>
    %377 = vector.extract_strided_slice %375 {offsets = [0, 16], sizes = [8, 16], strides = [1, 1]} : vector<8x32xf32> to vector<8x16xf32>
    %378 = arith.mulf %377, %326 : vector<8x16xf32>
    %c0_149 = arith.constant 0 : index
    %c0_150 = arith.constant 0 : index
    %379 = vector.load %arg10[%c0_149, %c0_150] : memref<16x16xf32, #tpu.memory_space<vmem>>, vector<16x16xf32>
    %cst_151 = arith.constant dense<0.000000e+00> : vector<8x16xf32>
    %380 = tpu.matmul %378, %379, %cst_151 {dimension_numbers = #tpu.dot_dimension_numbers<[1], [0], [0], [1], [0, 0, 1, 1], [], []>} : vector<8x16xf32>, vector<16x16xf32>, vector<8x16xf32> -> vector<8x16xf32>
    %381 = arith.addf %331, %380 : vector<8x16xf32>
    %382 = arith.addf %381, %367 : vector<8x16xf32>
    %383 = math.tanh %382 : vector<8x16xf32>
    %384 = arith.subf %383, %326 : vector<8x16xf32>
    %385 = arith.mulf %376, %384 : vector<8x16xf32>
    %386 = arith.addf %326, %385 : vector<8x16xf32>
    %c112_i32_152 = arith.constant 112 : i32
    %387 = tpu.dynamic_rotate %329 by %c112_i32_152 dim 1 : vector<8x128xf32>, i32 -> vector<8x128xf32>
    %388 = tpu.concatenate %16, %386 in 1 : vector<8x112xf32>, vector<8x16xf32> -> vector<8x128xf32>
    %389 = arith.select %15, %388, %387 : vector<8x128xi1>, vector<8x128xf32>
    %c0_153 = arith.constant 0 : index
    %c0_154 = arith.constant 0 : index
    %390 = vector.load %arg1[%c0_153, %c0_154] : memref<128x16xf32, #tpu.memory_space<vmem>>, vector<128x16xf32>
    %cst_155 = arith.constant dense<0.000000e+00> : vector<8x16xf32>
    %391 = tpu.matmul %389, %390, %cst_155 {dimension_numbers = #tpu.dot_dimension_numbers<[1], [0], [0], [1], [0, 0, 1, 1], [], []>} : vector<8x128xf32>, vector<128x16xf32>, vector<8x16xf32> -> vector<8x16xf32>
    %392 = arith.addf %391, %2 : vector<8x16xf32>
    %cst_156 = arith.constant 0xFF800000 : f32
    %393 = vector.broadcast %cst_156 : f32 to vector<8x16xf32>
    %394 = arith.select %12, %392, %393 : vector<8x16xi1>, vector<8x16xf32>
    %cst_157 = arith.constant dense<0xFF800000> : vector<8xf32>
    %395 = vector.multi_reduction <maximumf>, %394, %cst_157 [1] : vector<8x16xf32> to vector<8xf32>
    %396 = vector.shape_cast %395 : vector<8xf32> to vector<8x1xf32>
    %cst_158 = arith.constant 0xFF800000 : f32
    %397 = vector.broadcast %cst_158 : f32 to vector<8x16xf32>
    %398 = arith.select %12, %397, %392 : vector<8x16xi1>, vector<8x16xf32>
    %cst_159 = arith.constant dense<0xFF800000> : vector<8xf32>
    %399 = vector.multi_reduction <maximumf>, %398, %cst_159 [1] : vector<8x16xf32> to vector<8xf32>
    %400 = vector.shape_cast %399 : vector<8xf32> to vector<8x1xf32>
    %401 = vector.shape_cast %396 : vector<8x1xf32> to vector<8x1xf32>
    %402 = vector.broadcast %401 : vector<8x1xf32> to vector<8x16xf32>
    %403 = vector.shape_cast %400 : vector<8x1xf32> to vector<8x1xf32>
    %404 = vector.broadcast %403 : vector<8x1xf32> to vector<8x16xf32>
    %405 = arith.select %12, %402, %404 : vector<8x16xi1>, vector<8x16xf32>
    %406 = arith.subf %392, %405 : vector<8x16xf32>
    %407 = math.exp %406 : vector<8x16xf32>
    %cst_160 = arith.constant 0.000000e+00 : f32
    %408 = vector.broadcast %cst_160 : f32 to vector<8x16xf32>
    %409 = arith.select %12, %407, %408 : vector<8x16xi1>, vector<8x16xf32>
    %cst_161 = arith.constant dense<0.000000e+00> : vector<8xf32>
    %410 = vector.multi_reduction <add>, %409, %cst_161 [1] : vector<8x16xf32> to vector<8xf32>
    %411 = vector.shape_cast %410 : vector<8xf32> to vector<8x1xf32>
    %cst_162 = arith.constant 0.000000e+00 : f32
    %412 = vector.broadcast %cst_162 : f32 to vector<8x16xf32>
    %413 = arith.select %12, %412, %407 : vector<8x16xi1>, vector<8x16xf32>
    %cst_163 = arith.constant dense<0.000000e+00> : vector<8xf32>
    %414 = vector.multi_reduction <add>, %413, %cst_163 [1] : vector<8x16xf32> to vector<8xf32>
    %415 = vector.shape_cast %414 : vector<8xf32> to vector<8x1xf32>
    %416 = vector.shape_cast %411 : vector<8x1xf32> to vector<8x1xf32>
    %417 = vector.broadcast %416 : vector<8x1xf32> to vector<8x16xf32>
    %418 = vector.shape_cast %415 : vector<8x1xf32> to vector<8x1xf32>
    %419 = vector.broadcast %418 : vector<8x1xf32> to vector<8x16xf32>
    %420 = arith.select %12, %417, %419 : vector<8x16xi1>, vector<8x16xf32>
    %421 = arith.divf %407, %420 : vector<8x16xf32>
    %422 = tpu.concatenate %421, %421, %421, %421 in 1 : vector<8x16xf32>, vector<8x16xf32>, vector<8x16xf32>, vector<8x16xf32> -> vector<8x64xf32>
    %423 = arith.mulf %422, %9 : vector<8x64xf32>
    %c0_164 = arith.constant 0 : index
    %c0_165 = arith.constant 0 : index
    %424 = vector.load %arg3[%c0_164, %c0_165] : memref<64x16xf32, #tpu.memory_space<vmem>>, vector<64x16xf32>
    %cst_166 = arith.constant dense<0.000000e+00> : vector<8x16xf32>
    %425 = tpu.matmul %423, %424, %cst_166 {dimension_numbers = #tpu.dot_dimension_numbers<[1], [0], [0], [1], [0, 0, 1, 1], [], []>} : vector<8x64xf32>, vector<64x16xf32>, vector<8x16xf32> -> vector<8x16xf32>
    %c0_167 = arith.constant 0 : index
    %c0_168 = arith.constant 0 : index
    %426 = vector.load %arg9[%c0_167, %c0_168] : memref<16x32xf32, #tpu.memory_space<vmem>>, vector<16x32xf32>
    %cst_169 = arith.constant dense<0.000000e+00> : vector<8x32xf32>
    %427 = tpu.matmul %386, %426, %cst_169 {dimension_numbers = #tpu.dot_dimension_numbers<[1], [0], [0], [1], [0, 0, 1, 1], [], []>} : vector<8x16xf32>, vector<16x32xf32>, vector<8x32xf32> -> vector<8x32xf32>
    %428 = arith.addf %330, %427 : vector<8x32xf32>
    %429 = arith.negf %428 : vector<8x32xf32>
    %430 = math.exp %429 : vector<8x32xf32>
    %cst_170 = arith.constant 1.000000e+00 : f32
    %431 = vector.broadcast %cst_170 : f32 to vector<8x32xf32>
    %432 = arith.addf %431, %430 : vector<8x32xf32>
    %433 = arith.divf %431, %432 : vector<8x32xf32>
    %434 = vector.extract_strided_slice %433 {offsets = [0, 0], sizes = [8, 16], strides = [1, 1]} : vector<8x32xf32> to vector<8x16xf32>
    %435 = vector.extract_strided_slice %433 {offsets = [0, 16], sizes = [8, 16], strides = [1, 1]} : vector<8x32xf32> to vector<8x16xf32>
    %436 = arith.mulf %435, %386 : vector<8x16xf32>
    %c0_171 = arith.constant 0 : index
    %c0_172 = arith.constant 0 : index
    %437 = vector.load %arg10[%c0_171, %c0_172] : memref<16x16xf32, #tpu.memory_space<vmem>>, vector<16x16xf32>
    %cst_173 = arith.constant dense<0.000000e+00> : vector<8x16xf32>
    %438 = tpu.matmul %436, %437, %cst_173 {dimension_numbers = #tpu.dot_dimension_numbers<[1], [0], [0], [1], [0, 0, 1, 1], [], []>} : vector<8x16xf32>, vector<16x16xf32>, vector<8x16xf32> -> vector<8x16xf32>
    %439 = arith.addf %331, %438 : vector<8x16xf32>
    %440 = arith.addf %439, %425 : vector<8x16xf32>
    %441 = math.tanh %440 : vector<8x16xf32>
    %442 = arith.subf %441, %386 : vector<8x16xf32>
    %443 = arith.mulf %434, %442 : vector<8x16xf32>
    %444 = arith.addf %386, %443 : vector<8x16xf32>
    %c112_i32_174 = arith.constant 112 : i32
    %445 = tpu.dynamic_rotate %389 by %c112_i32_174 dim 1 : vector<8x128xf32>, i32 -> vector<8x128xf32>
    %446 = tpu.concatenate %16, %444 in 1 : vector<8x112xf32>, vector<8x16xf32> -> vector<8x128xf32>
    %447 = arith.select %15, %446, %445 : vector<8x128xi1>, vector<8x128xf32>
    %c0_175 = arith.constant 0 : index
    %c0_176 = arith.constant 0 : index
    %448 = vector.load %arg11[%c0_175, %c0_176] : memref<16x32xf32, #tpu.memory_space<vmem>>, vector<16x32xf32>
    %cst_177 = arith.constant dense<0.000000e+00> : vector<8x32xf32>
    %449 = tpu.matmul %444, %448, %cst_177 {dimension_numbers = #tpu.dot_dimension_numbers<[1], [0], [0], [1], [0, 0, 1, 1], [], []>} : vector<8x16xf32>, vector<16x32xf32>, vector<8x32xf32> -> vector<8x32xf32>
    %450 = arith.addf %449, %5 : vector<8x32xf32>
    %c0_178 = arith.constant 0 : index
    %c0_179 = arith.constant 0 : index
    %451 = vector.load %arg13[%c0_178, %c0_179] : memref<16x16xf32, #tpu.memory_space<vmem>>, vector<16x16xf32>
    %cst_180 = arith.constant dense<0.000000e+00> : vector<8x16xf32>
    %452 = tpu.matmul %444, %451, %cst_180 {dimension_numbers = #tpu.dot_dimension_numbers<[1], [0], [0], [1], [0, 0, 1, 1], [], []>} : vector<8x16xf32>, vector<16x16xf32>, vector<8x16xf32> -> vector<8x16xf32>
    %453 = arith.addf %452, %8 : vector<8x16xf32>
    %c0_181 = arith.constant 0 : index
    %c0_182 = arith.constant 0 : index
    %454 = vector.load %arg1[%c0_181, %c0_182] : memref<128x16xf32, #tpu.memory_space<vmem>>, vector<128x16xf32>
    %cst_183 = arith.constant dense<0.000000e+00> : vector<8x16xf32>
    %455 = tpu.matmul %447, %454, %cst_183 {dimension_numbers = #tpu.dot_dimension_numbers<[1], [0], [0], [1], [0, 0, 1, 1], [], []>} : vector<8x128xf32>, vector<128x16xf32>, vector<8x16xf32> -> vector<8x16xf32>
    %456 = arith.addf %455, %2 : vector<8x16xf32>
    %cst_184 = arith.constant 0xFF800000 : f32
    %457 = vector.broadcast %cst_184 : f32 to vector<8x16xf32>
    %458 = arith.select %12, %456, %457 : vector<8x16xi1>, vector<8x16xf32>
    %cst_185 = arith.constant dense<0xFF800000> : vector<8xf32>
    %459 = vector.multi_reduction <maximumf>, %458, %cst_185 [1] : vector<8x16xf32> to vector<8xf32>
    %460 = vector.shape_cast %459 : vector<8xf32> to vector<8x1xf32>
    %cst_186 = arith.constant 0xFF800000 : f32
    %461 = vector.broadcast %cst_186 : f32 to vector<8x16xf32>
    %462 = arith.select %12, %461, %456 : vector<8x16xi1>, vector<8x16xf32>
    %cst_187 = arith.constant dense<0xFF800000> : vector<8xf32>
    %463 = vector.multi_reduction <maximumf>, %462, %cst_187 [1] : vector<8x16xf32> to vector<8xf32>
    %464 = vector.shape_cast %463 : vector<8xf32> to vector<8x1xf32>
    %465 = vector.shape_cast %460 : vector<8x1xf32> to vector<8x1xf32>
    %466 = vector.broadcast %465 : vector<8x1xf32> to vector<8x16xf32>
    %467 = vector.shape_cast %464 : vector<8x1xf32> to vector<8x1xf32>
    %468 = vector.broadcast %467 : vector<8x1xf32> to vector<8x16xf32>
    %469 = arith.select %12, %466, %468 : vector<8x16xi1>, vector<8x16xf32>
    %470 = arith.subf %456, %469 : vector<8x16xf32>
    %471 = math.exp %470 : vector<8x16xf32>
    %cst_188 = arith.constant 0.000000e+00 : f32
    %472 = vector.broadcast %cst_188 : f32 to vector<8x16xf32>
    %473 = arith.select %12, %471, %472 : vector<8x16xi1>, vector<8x16xf32>
    %cst_189 = arith.constant dense<0.000000e+00> : vector<8xf32>
    %474 = vector.multi_reduction <add>, %473, %cst_189 [1] : vector<8x16xf32> to vector<8xf32>
    %475 = vector.shape_cast %474 : vector<8xf32> to vector<8x1xf32>
    %cst_190 = arith.constant 0.000000e+00 : f32
    %476 = vector.broadcast %cst_190 : f32 to vector<8x16xf32>
    %477 = arith.select %12, %476, %471 : vector<8x16xi1>, vector<8x16xf32>
    %cst_191 = arith.constant dense<0.000000e+00> : vector<8xf32>
    %478 = vector.multi_reduction <add>, %477, %cst_191 [1] : vector<8x16xf32> to vector<8xf32>
    %479 = vector.shape_cast %478 : vector<8xf32> to vector<8x1xf32>
    %480 = vector.shape_cast %475 : vector<8x1xf32> to vector<8x1xf32>
    %481 = vector.broadcast %480 : vector<8x1xf32> to vector<8x16xf32>
    %482 = vector.shape_cast %479 : vector<8x1xf32> to vector<8x1xf32>
    %483 = vector.broadcast %482 : vector<8x1xf32> to vector<8x16xf32>
    %484 = arith.select %12, %481, %483 : vector<8x16xi1>, vector<8x16xf32>
    %485 = arith.divf %471, %484 : vector<8x16xf32>
    %486 = tpu.concatenate %485, %485, %485, %485 in 1 : vector<8x16xf32>, vector<8x16xf32>, vector<8x16xf32>, vector<8x16xf32> -> vector<8x64xf32>
    %487 = arith.mulf %486, %9 : vector<8x64xf32>
    %c0_192 = arith.constant 0 : index
    %c0_193 = arith.constant 0 : index
    %488 = vector.load %arg3[%c0_192, %c0_193] : memref<64x16xf32, #tpu.memory_space<vmem>>, vector<64x16xf32>
    %cst_194 = arith.constant dense<0.000000e+00> : vector<8x16xf32>
    %489 = tpu.matmul %487, %488, %cst_194 {dimension_numbers = #tpu.dot_dimension_numbers<[1], [0], [0], [1], [0, 0, 1, 1], [], []>} : vector<8x64xf32>, vector<64x16xf32>, vector<8x16xf32> -> vector<8x16xf32>
    %c0_195 = arith.constant 0 : index
    %c0_196 = arith.constant 0 : index
    %490 = vector.load %arg9[%c0_195, %c0_196] : memref<16x32xf32, #tpu.memory_space<vmem>>, vector<16x32xf32>
    %cst_197 = arith.constant dense<0.000000e+00> : vector<8x32xf32>
    %491 = tpu.matmul %444, %490, %cst_197 {dimension_numbers = #tpu.dot_dimension_numbers<[1], [0], [0], [1], [0, 0, 1, 1], [], []>} : vector<8x16xf32>, vector<16x32xf32>, vector<8x32xf32> -> vector<8x32xf32>
    %492 = arith.addf %450, %491 : vector<8x32xf32>
    %493 = arith.negf %492 : vector<8x32xf32>
    %494 = math.exp %493 : vector<8x32xf32>
    %cst_198 = arith.constant 1.000000e+00 : f32
    %495 = vector.broadcast %cst_198 : f32 to vector<8x32xf32>
    %496 = arith.addf %495, %494 : vector<8x32xf32>
    %497 = arith.divf %495, %496 : vector<8x32xf32>
    %498 = vector.extract_strided_slice %497 {offsets = [0, 0], sizes = [8, 16], strides = [1, 1]} : vector<8x32xf32> to vector<8x16xf32>
    %499 = vector.extract_strided_slice %497 {offsets = [0, 16], sizes = [8, 16], strides = [1, 1]} : vector<8x32xf32> to vector<8x16xf32>
    %500 = arith.mulf %499, %444 : vector<8x16xf32>
    %c0_199 = arith.constant 0 : index
    %c0_200 = arith.constant 0 : index
    %501 = vector.load %arg10[%c0_199, %c0_200] : memref<16x16xf32, #tpu.memory_space<vmem>>, vector<16x16xf32>
    %cst_201 = arith.constant dense<0.000000e+00> : vector<8x16xf32>
    %502 = tpu.matmul %500, %501, %cst_201 {dimension_numbers = #tpu.dot_dimension_numbers<[1], [0], [0], [1], [0, 0, 1, 1], [], []>} : vector<8x16xf32>, vector<16x16xf32>, vector<8x16xf32> -> vector<8x16xf32>
    %503 = arith.addf %453, %502 : vector<8x16xf32>
    %504 = arith.addf %503, %489 : vector<8x16xf32>
    %505 = math.tanh %504 : vector<8x16xf32>
    %506 = arith.subf %505, %444 : vector<8x16xf32>
    %507 = arith.mulf %498, %506 : vector<8x16xf32>
    %508 = arith.addf %444, %507 : vector<8x16xf32>
    %c112_i32_202 = arith.constant 112 : i32
    %509 = tpu.dynamic_rotate %447 by %c112_i32_202 dim 1 : vector<8x128xf32>, i32 -> vector<8x128xf32>
    %510 = tpu.concatenate %16, %508 in 1 : vector<8x112xf32>, vector<8x16xf32> -> vector<8x128xf32>
    %511 = arith.select %15, %510, %509 : vector<8x128xi1>, vector<8x128xf32>
    %c0_203 = arith.constant 0 : index
    %c0_204 = arith.constant 0 : index
    %512 = vector.load %arg11[%c0_203, %c0_204] : memref<16x32xf32, #tpu.memory_space<vmem>>, vector<16x32xf32>
    %cst_205 = arith.constant dense<0.000000e+00> : vector<8x32xf32>
    %513 = tpu.matmul %508, %512, %cst_205 {dimension_numbers = #tpu.dot_dimension_numbers<[1], [0], [0], [1], [0, 0, 1, 1], [], []>} : vector<8x16xf32>, vector<16x32xf32>, vector<8x32xf32> -> vector<8x32xf32>
    %514 = arith.addf %513, %5 : vector<8x32xf32>
    %c0_206 = arith.constant 0 : index
    %c0_207 = arith.constant 0 : index
    %515 = vector.load %arg13[%c0_206, %c0_207] : memref<16x16xf32, #tpu.memory_space<vmem>>, vector<16x16xf32>
    %cst_208 = arith.constant dense<0.000000e+00> : vector<8x16xf32>
    %516 = tpu.matmul %508, %515, %cst_208 {dimension_numbers = #tpu.dot_dimension_numbers<[1], [0], [0], [1], [0, 0, 1, 1], [], []>} : vector<8x16xf32>, vector<16x16xf32>, vector<8x16xf32> -> vector<8x16xf32>
    %517 = arith.addf %516, %8 : vector<8x16xf32>
    %c0_209 = arith.constant 0 : index
    %c0_210 = arith.constant 0 : index
    %518 = vector.load %arg1[%c0_209, %c0_210] : memref<128x16xf32, #tpu.memory_space<vmem>>, vector<128x16xf32>
    %cst_211 = arith.constant dense<0.000000e+00> : vector<8x16xf32>
    %519 = tpu.matmul %511, %518, %cst_211 {dimension_numbers = #tpu.dot_dimension_numbers<[1], [0], [0], [1], [0, 0, 1, 1], [], []>} : vector<8x128xf32>, vector<128x16xf32>, vector<8x16xf32> -> vector<8x16xf32>
    %520 = arith.addf %519, %2 : vector<8x16xf32>
    %cst_212 = arith.constant 0xFF800000 : f32
    %521 = vector.broadcast %cst_212 : f32 to vector<8x16xf32>
    %522 = arith.select %12, %520, %521 : vector<8x16xi1>, vector<8x16xf32>
    %cst_213 = arith.constant dense<0xFF800000> : vector<8xf32>
    %523 = vector.multi_reduction <maximumf>, %522, %cst_213 [1] : vector<8x16xf32> to vector<8xf32>
    %524 = vector.shape_cast %523 : vector<8xf32> to vector<8x1xf32>
    %cst_214 = arith.constant 0xFF800000 : f32
    %525 = vector.broadcast %cst_214 : f32 to vector<8x16xf32>
    %526 = arith.select %12, %525, %520 : vector<8x16xi1>, vector<8x16xf32>
    %cst_215 = arith.constant dense<0xFF800000> : vector<8xf32>
    %527 = vector.multi_reduction <maximumf>, %526, %cst_215 [1] : vector<8x16xf32> to vector<8xf32>
    %528 = vector.shape_cast %527 : vector<8xf32> to vector<8x1xf32>
    %529 = vector.shape_cast %524 : vector<8x1xf32> to vector<8x1xf32>
    %530 = vector.broadcast %529 : vector<8x1xf32> to vector<8x16xf32>
    %531 = vector.shape_cast %528 : vector<8x1xf32> to vector<8x1xf32>
    %532 = vector.broadcast %531 : vector<8x1xf32> to vector<8x16xf32>
    %533 = arith.select %12, %530, %532 : vector<8x16xi1>, vector<8x16xf32>
    %534 = arith.subf %520, %533 : vector<8x16xf32>
    %535 = math.exp %534 : vector<8x16xf32>
    %cst_216 = arith.constant 0.000000e+00 : f32
    %536 = vector.broadcast %cst_216 : f32 to vector<8x16xf32>
    %537 = arith.select %12, %535, %536 : vector<8x16xi1>, vector<8x16xf32>
    %cst_217 = arith.constant dense<0.000000e+00> : vector<8xf32>
    %538 = vector.multi_reduction <add>, %537, %cst_217 [1] : vector<8x16xf32> to vector<8xf32>
    %539 = vector.shape_cast %538 : vector<8xf32> to vector<8x1xf32>
    %cst_218 = arith.constant 0.000000e+00 : f32
    %540 = vector.broadcast %cst_218 : f32 to vector<8x16xf32>
    %541 = arith.select %12, %540, %535 : vector<8x16xi1>, vector<8x16xf32>
    %cst_219 = arith.constant dense<0.000000e+00> : vector<8xf32>
    %542 = vector.multi_reduction <add>, %541, %cst_219 [1] : vector<8x16xf32> to vector<8xf32>
    %543 = vector.shape_cast %542 : vector<8xf32> to vector<8x1xf32>
    %544 = vector.shape_cast %539 : vector<8x1xf32> to vector<8x1xf32>
    %545 = vector.broadcast %544 : vector<8x1xf32> to vector<8x16xf32>
    %546 = vector.shape_cast %543 : vector<8x1xf32> to vector<8x1xf32>
    %547 = vector.broadcast %546 : vector<8x1xf32> to vector<8x16xf32>
    %548 = arith.select %12, %545, %547 : vector<8x16xi1>, vector<8x16xf32>
    %549 = arith.divf %535, %548 : vector<8x16xf32>
    %550 = tpu.concatenate %549, %549, %549, %549 in 1 : vector<8x16xf32>, vector<8x16xf32>, vector<8x16xf32>, vector<8x16xf32> -> vector<8x64xf32>
    %551 = arith.mulf %550, %9 : vector<8x64xf32>
    %c0_220 = arith.constant 0 : index
    %c0_221 = arith.constant 0 : index
    %552 = vector.load %arg3[%c0_220, %c0_221] : memref<64x16xf32, #tpu.memory_space<vmem>>, vector<64x16xf32>
    %cst_222 = arith.constant dense<0.000000e+00> : vector<8x16xf32>
    %553 = tpu.matmul %551, %552, %cst_222 {dimension_numbers = #tpu.dot_dimension_numbers<[1], [0], [0], [1], [0, 0, 1, 1], [], []>} : vector<8x64xf32>, vector<64x16xf32>, vector<8x16xf32> -> vector<8x16xf32>
    %c0_223 = arith.constant 0 : index
    %c0_224 = arith.constant 0 : index
    %554 = vector.load %arg9[%c0_223, %c0_224] : memref<16x32xf32, #tpu.memory_space<vmem>>, vector<16x32xf32>
    %cst_225 = arith.constant dense<0.000000e+00> : vector<8x32xf32>
    %555 = tpu.matmul %508, %554, %cst_225 {dimension_numbers = #tpu.dot_dimension_numbers<[1], [0], [0], [1], [0, 0, 1, 1], [], []>} : vector<8x16xf32>, vector<16x32xf32>, vector<8x32xf32> -> vector<8x32xf32>
    %556 = arith.addf %514, %555 : vector<8x32xf32>
    %557 = arith.negf %556 : vector<8x32xf32>
    %558 = math.exp %557 : vector<8x32xf32>
    %cst_226 = arith.constant 1.000000e+00 : f32
    %559 = vector.broadcast %cst_226 : f32 to vector<8x32xf32>
    %560 = arith.addf %559, %558 : vector<8x32xf32>
    %561 = arith.divf %559, %560 : vector<8x32xf32>
    %562 = vector.extract_strided_slice %561 {offsets = [0, 0], sizes = [8, 16], strides = [1, 1]} : vector<8x32xf32> to vector<8x16xf32>
    %563 = vector.extract_strided_slice %561 {offsets = [0, 16], sizes = [8, 16], strides = [1, 1]} : vector<8x32xf32> to vector<8x16xf32>
    %564 = arith.mulf %563, %508 : vector<8x16xf32>
    %c0_227 = arith.constant 0 : index
    %c0_228 = arith.constant 0 : index
    %565 = vector.load %arg10[%c0_227, %c0_228] : memref<16x16xf32, #tpu.memory_space<vmem>>, vector<16x16xf32>
    %cst_229 = arith.constant dense<0.000000e+00> : vector<8x16xf32>
    %566 = tpu.matmul %564, %565, %cst_229 {dimension_numbers = #tpu.dot_dimension_numbers<[1], [0], [0], [1], [0, 0, 1, 1], [], []>} : vector<8x16xf32>, vector<16x16xf32>, vector<8x16xf32> -> vector<8x16xf32>
    %567 = arith.addf %517, %566 : vector<8x16xf32>
    %568 = arith.addf %567, %553 : vector<8x16xf32>
    %569 = math.tanh %568 : vector<8x16xf32>
    %570 = arith.subf %569, %508 : vector<8x16xf32>
    %571 = arith.mulf %562, %570 : vector<8x16xf32>
    %572 = arith.addf %508, %571 : vector<8x16xf32>
    %573 = tpu.concatenate %444, %508, %572 in 1 : vector<8x16xf32>, vector<8x16xf32>, vector<8x16xf32> -> vector<8x48xf32>
    %c0_230 = arith.constant 0 : index
    %c0_231 = arith.constant 0 : index
    %574 = vector.load %arg15[%c0_230, %c0_231] : memref<48x6xf32, #tpu.memory_space<vmem>>, vector<48x6xf32>
    %cst_232 = arith.constant dense<0.000000e+00> : vector<8x6xf32>
    %575 = tpu.matmul %573, %574, %cst_232 {dimension_numbers = #tpu.dot_dimension_numbers<[1], [0], [0], [1], [0, 0, 1, 1], [], []>} : vector<8x48xf32>, vector<48x6xf32>, vector<8x6xf32> -> vector<8x6xf32>
    %c0_233 = arith.constant 0 : index
    %c0_234 = arith.constant 0 : index
    %576 = vector.load %arg16[%c0_233, %c0_234] : memref<1x6xf32, #tpu.memory_space<vmem>>, vector<1x6xf32>
    %577 = vector.broadcast %576 : vector<1x6xf32> to vector<8x6xf32>
    %578 = arith.addf %575, %577 : vector<8x6xf32>
    %c0_235 = arith.constant 0 : index
    %c0_236 = arith.constant 0 : index
    %579 = vector.load %arg17[%c0_235, %c0_236] : memref<8x6xf32, #tpu.memory_space<vmem>>, vector<8x6xf32>
    tpu.vector_store %arg17[%c0_235, %c0_236], %578 {strides = array<i32>} : memref<8x6xf32, #tpu.memory_space<vmem>>, vector<8x6xf32>,
    return
  }
}

</mosaic_0001>

<llo_original>
// kernel: hdyna_pallas.1
$region0: #{hdyna_pallas.1}
  #allocation0 [shape = 'u32[]', space=smem, size = 0x4, offset = 0x4, fixed_abs, tag = 'smem constant byte address 0x4 - core index']
  #allocation1 [shape = 'u32[144,128]{1,0:T(1,128)}', space=vmem, size = 0x12000, scoped, tag = 'internal scratch']
  %s0 = inlined_call_operand.vmem [shape: f32[48,2], index: 0, kind: input, shape index: {}]
  %s1 = inlined_call_operand.vmem [shape: f32[128,16], index: 1, kind: input, shape index: {}]
  %s2 = inlined_call_operand.vmem [shape: f32[1,16], index: 2, kind: input, shape index: {}]
  %s3 = inlined_call_operand.vmem [shape: f32[64,16], index: 3, kind: input, shape index: {}]
  %s4 = inlined_call_operand.vmem [shape: f32[8,64], index: 4, kind: input, shape index: {}]
  %s5 = inlined_call_operand.vmem [shape: f32[2,32], index: 5, kind: input, shape index: {}]
  %s6 = inlined_call_operand.vmem [shape: f32[1,32], index: 6, kind: input, shape index: {}]
  %s7 = inlined_call_operand.vmem [shape: f32[2,16], index: 7, kind: input, shape index: {}]
  %s8 = inlined_call_operand.vmem [shape: f32[1,16], index: 8, kind: input, shape index: {}]
  %s9 = inlined_call_operand.vmem [shape: f32[16,32], index: 9, kind: input, shape index: {}]
  %s10 = inlined_call_operand.vmem [shape: f32[16,16], index: 10, kind: input, shape index: {}]
  %s11 = inlined_call_operand.vmem [shape: f32[16,32], index: 11, kind: input, shape index: {}]
  %s12 = inlined_call_operand.vmem [shape: f32[1,32], index: 12, kind: input, shape index: {}]
  %s13 = inlined_call_operand.vmem [shape: f32[16,16], index: 13, kind: input, shape index: {}]
  %s14 = inlined_call_operand.vmem [shape: f32[1,16], index: 14, kind: input, shape index: {}]
  %s15 = inlined_call_operand.vmem [shape: f32[48,6], index: 15, kind: input, shape index: {}]
  %s16 = inlined_call_operand.vmem [shape: f32[1,6], index: 16, kind: input, shape index: {}]
  %s17 = inlined_call_operand.vmem [shape: f32[8,6], index: 17, kind: output, shape index: {}]
  %s18 = sld [smem:[#allocation0]]
  $region78: #{hdyna_pallas.1} parent=0
    _
  %s20 = ssub.s32 1, %s18
  %s21 = scalar_select 0, %s20, %s18
  // Predicated region
  $region2: #{hdyna_pallas.1} parent=0 // pred_check
    _
  $region3: #{hdyna_pallas.1} parent=0 // pred_check_branch
    %23 = sbr.rel (0) target = $region5
  $region4: #{hdyna_pallas.1} parent=0 // pred_region
    _
  $region5: #{hdyna_pallas.1} parent=0 // pred_fallthru
    _
  // Predicated region
  $region6: #{hdyna_pallas.1} parent=0 // pred_check
    _
  $region7: #{hdyna_pallas.1} parent=0 // pred_check_branch
    %25 = sbr.rel (0) target = $region9
  $region8: #{hdyna_pallas.1} parent=0 // pred_region
    _
  $region9: #{hdyna_pallas.1} parent=0 // pred_fallthru
    _
  // Predicated region
  $region10: #{hdyna_pallas.1} parent=0 // pred_check
    _
  $region11: #{hdyna_pallas.1} parent=0 // pred_check_branch
    %27 = sbr.rel (0) target = $region13
  $region12: #{hdyna_pallas.1} parent=0 // pred_region
    _
  $region13: #{hdyna_pallas.1} parent=0 // pred_fallthru
    _
  // Predicated region
  $region14: #{hdyna_pallas.1} parent=0 // pred_check
    _
  $region15: #{hdyna_pallas.1} parent=0 // pred_check_branch
    %29 = sbr.rel (0) target = $region17
  $region16: #{hdyna_pallas.1} parent=0 // pred_region
    _
  $region17: #{hdyna_pallas.1} parent=0 // pred_fallthru
    _
  // Predicated region
  $region18: #{hdyna_pallas.1} parent=0 // pred_check
    _
  $region19: #{hdyna_pallas.1} parent=0 // pred_check_branch
    %31 = sbr.rel (0) target = $region21
  $region20: #{hdyna_pallas.1} parent=0 // pred_region
    _
  $region21: #{hdyna_pallas.1} parent=0 // pred_fallthru
    _
  // Predicated region
  $region22: #{hdyna_pallas.1} parent=0 // pred_check
    _
  $region23: #{hdyna_pallas.1} parent=0 // pred_check_branch
    %33 = sbr.rel (0) target = $region25
  $region24: #{hdyna_pallas.1} parent=0 // pred_region
    _
  $region25: #{hdyna_pallas.1} parent=0 // pred_fallthru
    _
  // Predicated region
  $region26: #{hdyna_pallas.1} parent=0 // pred_check
    _
  $region27: #{hdyna_pallas.1} parent=0 // pred_check_branch
    %35 = sbr.rel (0) target = $region29
  $region28: #{hdyna_pallas.1} parent=0 // pred_region
    _
  $region29: #{hdyna_pallas.1} parent=0 // pred_fallthru
    _
  // Predicated region
  $region30: #{hdyna_pallas.1} parent=0 // pred_check
    _
  $region31: #{hdyna_pallas.1} parent=0 // pred_check_branch
    %37 = sbr.rel (0) target = $region33
  $region32: #{hdyna_pallas.1} parent=0 // pred_region
    _
  $region33: #{hdyna_pallas.1} parent=0 // pred_fallthru
    _
  // Predicated region
  $region34: #{hdyna_pallas.1} parent=0 // pred_check
    _
  $region35: #{hdyna_pallas.1} parent=0 // pred_check_branch
    %39 = sbr.rel (0) target = $region37
  $region36: #{hdyna_pallas.1} parent=0 // pred_region
    _
  $region37: #{hdyna_pallas.1} parent=0 // pred_fallthru
    _
  // Predicated region
  $region38: #{hdyna_pallas.1} parent=0 // pred_check
    _
  $region39: #{hdyna_pallas.1} parent=0 // pred_check_branch
    %41 = sbr.rel (0) target = $region41
  $region40: #{hdyna_pallas.1} parent=0 // pred_region
    _
  $region41: #{hdyna_pallas.1} parent=0 // pred_fallthru
    _
  // Predicated region
  $region42: #{hdyna_pallas.1} parent=0 // pred_check
    _
  $region43: #{hdyna_pallas.1} parent=0 // pred_check_branch
    %43 = sbr.rel (0) target = $region45
  $region44: #{hdyna_pallas.1} parent=0 // pred_region
    _
  $region45: #{hdyna_pallas.1} parent=0 // pred_fallthru
    _
  // Predicated region
  $region46: #{hdyna_pallas.1} parent=0 // pred_check
    _
  $region47: #{hdyna_pallas.1} parent=0 // pred_check_branch
    %45 = sbr.rel (0) target = $region49
  $region48: #{hdyna_pallas.1} parent=0 // pred_region
    _
  $region49: #{hdyna_pallas.1} parent=0 // pred_fallthru
    _
  // Predicated region
  $region50: #{hdyna_pallas.1} parent=0 // pred_check
    _
  $region51: #{hdyna_pallas.1} parent=0 // pred_check_branch
    %47 = sbr.rel (0) target = $region53
  $region52: #{hdyna_pallas.1} parent=0 // pred_region
    _
  $region53: #{hdyna_pallas.1} parent=0 // pred_fallthru
    _
  // Predicated region
  $region54: #{hdyna_pallas.1} parent=0 // pred_check
    _
  $region55: #{hdyna_pallas.1} parent=0 // pred_check_branch
    %49 = sbr.rel (0) target = $region57
  $region56: #{hdyna_pallas.1} parent=0 // pred_region
    _
  $region57: #{hdyna_pallas.1} parent=0 // pred_fallthru
    _
  // Predicated region
  $region58: #{hdyna_pallas.1} parent=0 // pred_check
    _
  $region59: #{hdyna_pallas.1} parent=0 // pred_check_branch
    %51 = sbr.rel (0) target = $region61
  $region60: #{hdyna_pallas.1} parent=0 // pred_region
    _
  $region61: #{hdyna_pallas.1} parent=0 // pred_fallthru
    _
  // Predicated region
  $region62: #{hdyna_pallas.1} parent=0 // pred_check
    _
  $region63: #{hdyna_pallas.1} parent=0 // pred_check_branch
    %53 = sbr.rel (0) target = $region65
  $region64: #{hdyna_pallas.1} parent=0 // pred_region
    _
  $region65: #{hdyna_pallas.1} parent=0 // pred_fallthru
    _
  // Predicated region
  $region66: #{hdyna_pallas.1} parent=0 // pred_check
    _
  $region67: #{hdyna_pallas.1} parent=0 // pred_check_branch
    %55 = sbr.rel (0) target = $region69
  $region68: #{hdyna_pallas.1} parent=0 // pred_region
    _
  $region69: #{hdyna_pallas.1} parent=0 // pred_fallthru
    _
  %v56 = vld [vmem:[%s2] sm:$0x1]
  %v58 = vlaneseq
  %v59 = vshrl.u32 %v58, 7
  %v60 = vsub.s32 0, %v59
  %v61 = vrot.slane %v56, %v60
  %v63 = vld [vmem:[%s12] sm:$0x1]
  %v65 = vlaneseq
  %v66 = vshrl.u32 %v65, 7
  %v67 = vsub.s32 0, %v66
  %v68 = vrot.slane %v63, %v67
  %v70 = vld [vmem:[%s14] sm:$0x1]
  %v72 = vlaneseq
  %v73 = vshrl.u32 %v72, 7
  %v74 = vsub.s32 0, %v73
  %v75 = vrot.slane %v70, %v74
  %v77 = vld [vmem:[%s4] sm:$0xff]
  %v78 = vlaneseq
  %v79 = vand.u32 %v78, 127
  %vm80 = vcmp.lt.s32.totalorder %v79, 10
  %vm81 = vcmp.ge.s32.totalorder %v79, 112
  %v82 = vld [vmem:[%s0] sm:$0xff]
  %v83 = vld [vmem:[%s0 + $0x8] sm:$0xff]
  %v84 = vld [vmem:[%s0 + $0x10] sm:$0xff]
  %v85 = vld [vmem:[%s0 + $0x18] sm:$0xff]
  %v86 = vld [vmem:[%s0 + $0x20] sm:$0xff]
  %v87 = vld [vmem:[%s0 + $0x28] sm:$0xff]
  %v88 = vld [vmem:[%s5] sm:$0x3]
  %v89 = vld [vmem:[%s6] sm:$0x1]
  %v91 = vlaneseq
  %v92 = vshrl.u32 %v91, 7
  %v93 = vsub.s32 0, %v92
  %v94 = vrot.slane %v89, %v93
  %vm96 = vcmask 15360
  %v98 = vsel %vm96, %v82, 0
  %v101 = vsel %vm96, %v83, 0
  %v104 = vsel %vm96, %v84, 0
  %v107 = vsel %vm96, %v85, 0
  %v110 = vsel %vm96, %v86, 0
  %v113 = vsel %vm96, %v87, 0
  %vm115 = vcmask 1041408
  %v117 = vsel %vm115, %v88, 0
  %119 = vmatprep.subr.mxu0 0.0
  %120 = vmatpush1.msra.mxu0 0.0
  %121 = vmatprep.subr.mxu0 0.0
  %122 = vmatpush1.msra.mxu0 0.0
  %123 = vmatprep.subr.mxu0 0.0
  %124 = vmatpush1.msra.mxu0 0.0
  %125 = vmatprep.subr.mxu0 0.0
  %126 = vmatpush1.msra.mxu0 0.0
  %127 = vmatprep.subr.mxu0 0.0
  %128 = vmatpush1.msra.mxu0 0.0
  %129 = vmatprep.subr.mxu0 0.0
  %130 = vmatpush1.msra.mxu0 0.0
  %131 = vmatprep.subr.mxu0 0.0
  %132 = vmatpush1.msra.mxu0 0.0
  %133 = vmatprep.subr.mxu0 0.0
  %134 = vmatpush1.msra.mxu0 0.0
  %135 = vmatprep.subr.mxu0 0.0
  %136 = vmatpush1.msra.mxu0 0.0
  %137 = vmatprep.subr.mxu0 0.0
  %138 = vmatpush1.msra.mxu0 0.0
  %139 = vmatprep.subr.mxu0 0.0
  %140 = vmatpush1.msra.mxu0 0.0
  %141 = vmatprep.subr.mxu0 0.0
  %142 = vmatpush1.msra.mxu0 0.0
  %143 = vmatprep.subr.mxu0 0.0
  %144 = vmatpush1.msra.mxu0 0.0
  %145 = vmatprep.subr.mxu0 0.0
  %146 = vmatpush1.msra.mxu0 0.0
  %147 = vmatprep.subr.mxu0 0.0
  %148 = vmatpush1.msra.mxu0 0.0
  %149 = vmatprep.subr.mxu0 0.0
  %150 = vmatpush1.msra.mxu0 %v117
  %151 = vmatprep.subr.mxu0 0.0
  %152 = vmatpush2.msra.mxu0 0.0
  %153 = vmatprep.subr.mxu0 0.0
  %154 = vmatpush2.msra.mxu0 0.0
  %155 = vmatprep.subr.mxu0 0.0
  %156 = vmatpush2.msra.mxu0 0.0
  %157 = vmatprep.subr.mxu0 0.0
  %158 = vmatpush2.msra.mxu0 0.0
  %159 = vmatprep.subr.mxu0 0.0
  %160 = vmatpush2.msra.mxu0 0.0
  %161 = vmatprep.subr.mxu0 0.0
  %162 = vmatpush2.msra.mxu0 0.0
  %163 = vmatprep.subr.mxu0 0.0
  %164 = vmatpush2.msra.mxu0 0.0
  %165 = vmatprep.subr.mxu0 0.0
  %166 = vmatpush2.msra.mxu0 0.0
  %167 = vmatprep.subr.mxu0 0.0
  %168 = vmatpush2.msra.mxu0 0.0
  %169 = vmatprep.subr.mxu0 0.0
  %170 = vmatpush2.msra.mxu0 0.0
  %171 = vmatprep.subr.mxu0 0.0
  %172 = vmatpush2.msra.mxu0 0.0
  %173 = vmatprep.subr.mxu0 0.0
  %174 = vmatpush2.msra.mxu0 0.0
  %175 = vmatprep.subr.mxu0 0.0
  %176 = vmatpush2.msra.mxu0 0.0
  %177 = vmatprep.subr.mxu0 0.0
  %178 = vmatpush2.msra.mxu0 0.0
  %179 = vmatprep.subr.mxu0 0.0
  %180 = vmatpush2.msra.mxu0 0.0
  %181 = vmatprep.subr.mxu0 0.0
  %182 = vmatpush2.msra.mxu0 0.0
  %183 = vmatprep.mubr.f32.mxu0 0.0
  %184 = vmatmul.mubr.f32.gmra.mxu0 %v98
  %v185 = vpop.f32.mrf.mxu0
  %v186 = vadd.f32 %v94, %v185
  %v187 = vpop.f32.mrf.mxu0
  %188 = vmatprep.mubr.f32.mxu0 0.0
  %189 = vmatmul.mubr.f32.gmra.mxu0 %v101
  %v190 = vpop.f32.mrf.mxu0
  %v191 = vadd.f32 %v94, %v190
  %v192 = vpop.f32.mrf.mxu0
  %193 = vmatprep.mubr.f32.mxu0 0.0
  %194 = vmatmul.mubr.f32.gmra.mxu0 %v104
  %v195 = vpop.f32.mrf.mxu0
  %v196 = vadd.f32 %v94, %v195
  %v197 = vpop.f32.mrf.mxu0
  %198 = vmatprep.mubr.f32.mxu0 0.0
  %199 = vmatmul.mubr.f32.gmra.mxu0 %v107
  %v200 = vpop.f32.mrf.mxu0
  %v201 = vadd.f32 %v94, %v200
  %v202 = vpop.f32.mrf.mxu0
  %203 = vmatprep.mubr.f32.mxu0 0.0
  %204 = vmatmul.mubr.f32.gmra.mxu0 %v110
  %v205 = vpop.f32.mrf.mxu0
  %v206 = vadd.f32 %v94, %v205
  %v207 = vpop.f32.mrf.mxu0
  %208 = vmatprep.mubr.f32.mxu0 0.0
  %209 = vmatmul.mubr.f32.gmra.mxu0 %v113
  %v210 = vpop.f32.mrf.mxu0
  %v211 = vadd.f32 %v94, %v210
  %v212 = vpop.f32.mrf.mxu0
  %213 = vdwg.mxu0
  %v214 = vld [vmem:[%s7] sm:$0x3]
  %v215 = vld [vmem:[%s8] sm:$0x1]
  %v217 = vlaneseq
  %v218 = vshrl.u32 %v217, 7
  %v219 = vsub.s32 0, %v218
  %v220 = vrot.slane %v215, %v219
  %v223 = vsel %vm115, %v214, 0
  %225 = vmatprep.subr.mxu0 0.0
  %226 = vmatpush1.msra.mxu0 0.0
  %227 = vmatprep.subr.mxu0 0.0
  %228 = vmatpush1.msra.mxu0 0.0
  %229 = vmatprep.subr.mxu0 0.0
  %230 = vmatpush1.msra.mxu0 0.0
  %231 = vmatprep.subr.mxu0 0.0
  %232 = vmatpush1.msra.mxu0 0.0
  %233 = vmatprep.subr.mxu0 0.0
  %234 = vmatpush1.msra.mxu0 0.0
  %235 = vmatprep.subr.mxu0 0.0
  %236 = vmatpush1.msra.mxu0 0.0
  %237 = vmatprep.subr.mxu0 0.0
  %238 = vmatpush1.msra.mxu0 0.0
  %239 = vmatprep.subr.mxu0 0.0
  %240 = vmatpush1.msra.mxu0 0.0
  %241 = vmatprep.subr.mxu0 0.0
  %242 = vmatpush1.msra.mxu0 0.0
  %243 = vmatprep.subr.mxu0 0.0
  %244 = vmatpush1.msra.mxu0 0.0
  %245 = vmatprep.subr.mxu0 0.0
  %246 = vmatpush1.msra.mxu0 0.0
  %247 = vmatprep.subr.mxu0 0.0
  %248 = vmatpush1.msra.mxu0 0.0
  %249 = vmatprep.subr.mxu0 0.0
  %250 = vmatpush1.msra.mxu0 0.0
  %251 = vmatprep.subr.mxu0 0.0
  %252 = vmatpush1.msra.mxu0 0.0
  %253 = vmatprep.subr.mxu0 0.0
  %254 = vmatpush1.msra.mxu0 0.0
  %255 = vmatprep.subr.mxu0 0.0
  %256 = vmatpush1.msra.mxu0 %v223
  %257 = vmatprep.subr.mxu0 0.0
  %258 = vmatpush2.msra.mxu0 0.0
  %259 = vmatprep.subr.mxu0 0.0
  %260 = vmatpush2.msra.mxu0 0.0
  %261 = vmatprep.subr.mxu0 0.0
  %262 = vmatpush2.msra.mxu0 0.0
  %263 = vmatprep.subr.mxu0 0.0
  %264 = vmatpush2.msra.mxu0 0.0
  %265 = vmatprep.subr.mxu0 0.0
  %266 = vmatpush2.msra.mxu0 0.0
  %267 = vmatprep.subr.mxu0 0.0
  %268 = vmatpush2.msra.mxu0 0.0
  %269 = vmatprep.subr.mxu0 0.0
  %270 = vmatpush2.msra.mxu0 0.0
  %271 = vmatprep.subr.mxu0 0.0
  %272 = vmatpush2.msra.mxu0 0.0
  %273 = vmatprep.subr.mxu0 0.0
  %274 = vmatpush2.msra.mxu0 0.0
  %275 = vmatprep.subr.mxu0 0.0
  %276 = vmatpush2.msra.mxu0 0.0
  %277 = vmatprep.subr.mxu0 0.0
  %278 = vmatpush2.msra.mxu0 0.0
  %279 = vmatprep.subr.mxu0 0.0
  %280 = vmatpush2.msra.mxu0 0.0
  %281 = vmatprep.subr.mxu0 0.0
  %282 = vmatpush2.msra.mxu0 0.0
  %283 = vmatprep.subr.mxu0 0.0
  %284 = vmatpush2.msra.mxu0 0.0
  %285 = vmatprep.subr.mxu0 0.0
  %286 = vmatpush2.msra.mxu0 0.0
  %287 = vmatprep.subr.mxu0 0.0
  %288 = vmatpush2.msra.mxu0 0.0
  %289 = vmatprep.mubr.f32.mxu0 0.0
  %290 = vmatmul.mubr.f32.gmra.mxu0 %v98
  %v291 = vpop.f32.mrf.mxu0
  %v292 = vadd.f32 %v220, %v291
  %v293 = vpop.f32.mrf.mxu0
  %294 = vmatprep.mubr.f32.mxu0 0.0
  %295 = vmatmul.mubr.f32.gmra.mxu0 %v101
  %v296 = vpop.f32.mrf.mxu0
  %v297 = vadd.f32 %v220, %v296
  %v298 = vpop.f32.mrf.mxu0
  %299 = vmatprep.mubr.f32.mxu0 0.0
  %300 = vmatmul.mubr.f32.gmra.mxu0 %v104
  %v301 = vpop.f32.mrf.mxu0
  %v302 = vadd.f32 %v220, %v301
  %v303 = vpop.f32.mrf.mxu0
  %304 = vmatprep.mubr.f32.mxu0 0.0
  %305 = vmatmul.mubr.f32.gmra.mxu0 %v107
  %v306 = vpop.f32.mrf.mxu0
  %v307 = vadd.f32 %v220, %v306
  %v308 = vpop.f32.mrf.mxu0
  %309 = vmatprep.mubr.f32.mxu0 0.0
  %310 = vmatmul.mubr.f32.gmra.mxu0 %v110
  %v311 = vpop.f32.mrf.mxu0
  %v312 = vadd.f32 %v220, %v311
  %v313 = vpop.f32.mrf.mxu0
  %314 = vmatprep.mubr.f32.mxu0 0.0
  %315 = vmatmul.mubr.f32.gmra.mxu0 %v113
  %v316 = vpop.f32.mrf.mxu0
  %v317 = vadd.f32 %v220, %v316
  %v318 = vpop.f32.mrf.mxu0
  %319 = vdwg.mxu0
  %v320 = vld [vmem:[%s1] sm:$0xff]
  %v321 = vld [vmem:[%s1 + $0x8] sm:$0xff]
  %v322 = vld [vmem:[%s1 + $0x10] sm:$0xff]
  %v323 = vld [vmem:[%s1 + $0x18] sm:$0xff]
  %v324 = vld [vmem:[%s1 + $0x20] sm:$0xff]
  %v325 = vld [vmem:[%s1 + $0x28] sm:$0xff]
  %v326 = vld [vmem:[%s1 + $0x30] sm:$0xff]
  %v327 = vld [vmem:[%s1 + $0x38] sm:$0xff]
  %v328 = vld [vmem:[%s1 + $0x40] sm:$0xff]
  %v329 = vld [vmem:[%s1 + $0x48] sm:$0xff]
  %v330 = vld [vmem:[%s1 + $0x50] sm:$0xff]
  %v331 = vld [vmem:[%s1 + $0x58] sm:$0xff]
  %v332 = vld [vmem:[%s1 + $0x60] sm:$0xff]
  %v333 = vld [vmem:[%s1 + $0x68] sm:$0xff]
  %v334 = vld [vmem:[%s1 + $0x70] sm:$0xff]
  %v335 = vld [vmem:[%s1 + $0x78] sm:$0xff]
  %336 = vmatprep.subr.mxu0 0.0
  %337 = vmatpush1.msra.mxu0 %v335
  %338 = vmatprep.subr.mxu0 0.0
  %339 = vmatpush1.msra.mxu0 %v334
  %340 = vmatprep.subr.mxu0 0.0
  %341 = vmatpush1.msra.mxu0 %v333
  %342 = vmatprep.subr.mxu0 0.0
  %343 = vmatpush1.msra.mxu0 %v332
  %344 = vmatprep.subr.mxu0 0.0
  %345 = vmatpush1.msra.mxu0 %v331
  %346 = vmatprep.subr.mxu0 0.0
  %347 = vmatpush1.msra.mxu0 %v330
  %348 = vmatprep.subr.mxu0 0.0
  %349 = vmatpush1.msra.mxu0 %v329
  %350 = vmatprep.subr.mxu0 0.0
  %351 = vmatpush1.msra.mxu0 %v328
  %352 = vmatprep.subr.mxu0 0.0
  %353 = vmatpush1.msra.mxu0 %v327
  %354 = vmatprep.subr.mxu0 0.0
  %355 = vmatpush1.msra.mxu0 %v326
  %356 = vmatprep.subr.mxu0 0.0
  %357 = vmatpush1.msra.mxu0 %v325
  %358 = vmatprep.subr.mxu0 0.0
  %359 = vmatpush1.msra.mxu0 %v324
  %360 = vmatprep.subr.mxu0 0.0
  %361 = vmatpush1.msra.mxu0 %v323
  %362 = vmatprep.subr.mxu0 0.0
  %363 = vmatpush1.msra.mxu0 %v322
  %364 = vmatprep.subr.mxu0 0.0
  %365 = vmatpush1.msra.mxu0 %v321
  %366 = vmatprep.subr.mxu0 0.0
  %367 = vmatpush1.msra.mxu0 %v320
  %368 = vmatprep.subr.mxu0 0.0
  %369 = vmatpush2.msra.mxu0 0.0
  %370 = vmatprep.subr.mxu0 0.0
  %371 = vmatpush2.msra.mxu0 0.0
  %372 = vmatprep.subr.mxu0 0.0
  %373 = vmatpush2.msra.mxu0 0.0
  %374 = vmatprep.subr.mxu0 0.0
  %375 = vmatpush2.msra.mxu0 0.0
  %376 = vmatprep.subr.mxu0 0.0
  %377 = vmatpush2.msra.mxu0 0.0
  %378 = vmatprep.subr.mxu0 0.0
  %379 = vmatpush2.msra.mxu0 0.0
  %380 = vmatprep.subr.mxu0 0.0
  %381 = vmatpush2.msra.mxu0 0.0
  %382 = vmatprep.subr.mxu0 0.0
  %383 = vmatpush2.msra.mxu0 0.0
  %384 = vmatprep.subr.mxu0 0.0
  %385 = vmatpush2.msra.mxu0 0.0
  %386 = vmatprep.subr.mxu0 0.0
  %387 = vmatpush2.msra.mxu0 0.0
  %388 = vmatprep.subr.mxu0 0.0
  %389 = vmatpush2.msra.mxu0 0.0
  %390 = vmatprep.subr.mxu0 0.0
  %391 = vmatpush2.msra.mxu0 0.0
  %392 = vmatprep.subr.mxu0 0.0
  %393 = vmatpush2.msra.mxu0 0.0
  %394 = vmatprep.subr.mxu0 0.0
  %395 = vmatpush2.msra.mxu0 0.0
  %396 = vmatprep.subr.mxu0 0.0
  %397 = vmatpush2.msra.mxu0 0.0
  %398 = vmatprep.subr.mxu0 0.0
  %399 = vmatpush2.msra.mxu0 0.0
  %400 = vmatprep.mubr.f32.mxu0 0.0
  %401 = vmatmul.mubr.f32.gmra.mxu0 0.0
  %v402 = vpop.f32.mrf.mxu0
  %v403 = vadd.f32 %v61, %v402
  %v404 = vpop.f32.mrf.mxu0
  %405 = vdwg.mxu0
  %v406 = vsel %vm80, %v403, -inf
  %vm407 = vcmask 130048
  %v408 = vsel %vm407, %v406, -inf
  %409 = vmax.xlane.f32.xlu0 %v408
  %v410 = vpop.xlane.xlu0 %409
  %v411 = vsel %vm80, -inf, %v403
  %v412 = vsel %vm407, %v411, -inf
  %413 = vmax.xlane.f32.xlu0 %v412
  %v414 = vpop.xlane.xlu0 %413
  %v415 = vsel %vm80, %v410, %v414
  %v416 = vsub.f32 %v403, %v415
  %v417 = vmul.f32 %v416, 1.442695
  %v418 = vpow.pop %v417
  %v419 = vsel %vm80, %v418, 0.0
  %v420 = vsel %vm407, %v419, 0.0
  %421 = vadd.xlane.f32.xlu0 %v420
  %v422 = vpop.xlane.xlu0 %421
  %v423 = vsel %vm80, 0.0, %v418
  %v424 = vsel %vm407, %v423, 0.0
  %425 = vadd.xlane.f32.xlu0 %v424
  %v426 = vpop.xlane.xlu0 %425
  %v427 = vsel %vm80, %v422, %v426
  %v428 = vrcp.pop %v427
  %v429 = vmul.f32 %v418, %v428
  %431 = vrot.lane.b32.xlu0 %v429, 16
  %v432 = vpop.permute.xlu0 %431
  %434 = vrot.lane.b32.xlu0 %v429, 32
  %v435 = vpop.permute.xlu0 %434
  %437 = vrot.lane.b32.xlu0 %v429, 48
  %v438 = vpop.permute.xlu0 %437
  %v440 = vsel %vm407, %v429, %v432
  %vm441 = vcmask 261120
  %v442 = vsel %vm441, %v440, %v435
  %vm443 = vcmask 392192
  %v444 = vsel %vm443, %v442, %v438
  %v445 = vmul.f32 %v444, %v77
  %v446 = vld [vmem:[%s3] sm:$0xff]
  %v447 = vld [vmem:[%s3 + $0x8] sm:$0xff]
  %v448 = vld [vmem:[%s3 + $0x10] sm:$0xff]
  %v449 = vld [vmem:[%s3 + $0x18] sm:$0xff]
  %v450 = vld [vmem:[%s3 + $0x20] sm:$0xff]
  %v451 = vld [vmem:[%s3 + $0x28] sm:$0xff]
  %v452 = vld [vmem:[%s3 + $0x30] sm:$0xff]
  %v453 = vld [vmem:[%s3 + $0x38] sm:$0xff]
  %vm454 = vcmask 523264
  %v456 = vsel %vm454, %v445, 0
  %458 = vmatprep.subr.mxu0 0.0
  %459 = vmatpush1.msra.mxu0 0.0
  %460 = vmatprep.subr.mxu0 0.0
  %461 = vmatpush1.msra.mxu0 0.0
  %462 = vmatprep.subr.mxu0 0.0
  %463 = vmatpush1.msra.mxu0 0.0
  %464 = vmatprep.subr.mxu0 0.0
  %465 = vmatpush1.msra.mxu0 0.0
  %466 = vmatprep.subr.mxu0 0.0
  %467 = vmatpush1.msra.mxu0 0.0
  %468 = vmatprep.subr.mxu0 0.0
  %469 = vmatpush1.msra.mxu0 0.0
  %470 = vmatprep.subr.mxu0 0.0
  %471 = vmatpush1.msra.mxu0 0.0
  %472 = vmatprep.subr.mxu0 0.0
  %473 = vmatpush1.msra.mxu0 0.0
  %474 = vmatprep.subr.mxu0 0.0
  %475 = vmatpush1.msra.mxu0 %v453
  %476 = vmatprep.subr.mxu0 0.0
  %477 = vmatpush1.msra.mxu0 %v452
  %478 = vmatprep.subr.mxu0 0.0
  %479 = vmatpush1.msra.mxu0 %v451
  %480 = vmatprep.subr.mxu0 0.0
  %481 = vmatpush1.msra.mxu0 %v450
  %482 = vmatprep.subr.mxu0 0.0
  %483 = vmatpush1.msra.mxu0 %v449
  %484 = vmatprep.subr.mxu0 0.0
  %485 = vmatpush1.msra.mxu0 %v448
  %486 = vmatprep.subr.mxu0 0.0
  %487 = vmatpush1.msra.mxu0 %v447
  %488 = vmatprep.subr.mxu0 0.0
  %489 = vmatpush1.msra.mxu0 %v446
  %490 = vmatprep.subr.mxu0 0.0
  %491 = vmatpush2.msra.mxu0 0.0
  %492 = vmatprep.subr.mxu0 0.0
  %493 = vmatpush2.msra.mxu0 0.0
  %494 = vmatprep.subr.mxu0 0.0
  %495 = vmatpush2.msra.mxu0 0.0
  %496 = vmatprep.subr.mxu0 0.0
  %497 = vmatpush2.msra.mxu0 0.0
  %498 = vmatprep.subr.mxu0 0.0
  %499 = vmatpush2.msra.mxu0 0.0
  %500 = vmatprep.subr.mxu0 0.0
  %501 = vmatpush2.msra.mxu0 0.0
  %502 = vmatprep.subr.mxu0 0.0
  %503 = vmatpush2.msra.mxu0 0.0
  %504 = vmatprep.subr.mxu0 0.0
  %505 = vmatpush2.msra.mxu0 0.0
  %506 = vmatprep.subr.mxu0 0.0
  %507 = vmatpush2.msra.mxu0 0.0
  %508 = vmatprep.subr.mxu0 0.0
  %509 = vmatpush2.msra.mxu0 0.0
  %510 = vmatprep.subr.mxu0 0.0
  %511 = vmatpush2.msra.mxu0 0.0
  %512 = vmatprep.subr.mxu0 0.0
  %513 = vmatpush2.msra.mxu0 0.0
  %514 = vmatprep.subr.mxu0 0.0
  %515 = vmatpush2.msra.mxu0 0.0
  %516 = vmatprep.subr.mxu0 0.0
  %517 = vmatpush2.msra.mxu0 0.0
  %518 = vmatprep.subr.mxu0 0.0
  %519 = vmatpush2.msra.mxu0 0.0
  %520 = vmatprep.subr.mxu0 0.0
  %521 = vmatpush2.msra.mxu0 0.0
  %522 = vmatprep.mubr.f32.mxu0 0.0
  %523 = vmatmul.mubr.f32.gmra.mxu0 %v456
  %v524 = vpop.f32.mrf.mxu0
  %v525 = vadd.f32 0.0, %v524
  %v526 = vpop.f32.mrf.mxu0
  %527 = vdwg.mxu0
  %v528 = vld [vmem:[%s9] sm:$0xff]
  %v529 = vld [vmem:[%s9 + $0x8] sm:$0xff]
  %v531 = vsel %vm407, 0.0, 0
  %533 = vmatprep.subr.mxu0 0.0
  %534 = vmatpush1.msra.mxu0 0.0
  %535 = vmatprep.subr.mxu0 0.0
  %536 = vmatpush1.msra.mxu0 0.0
  %537 = vmatprep.subr.mxu0 0.0
  %538 = vmatpush1.msra.mxu0 0.0
  %539 = vmatprep.subr.mxu0 0.0
  %540 = vmatpush1.msra.mxu0 0.0
  %541 = vmatprep.subr.mxu0 0.0
  %542 = vmatpush1.msra.mxu0 0.0
  %543 = vmatprep.subr.mxu0 0.0
  %544 = vmatpush1.msra.mxu0 0.0
  %545 = vmatprep.subr.mxu0 0.0
  %546 = vmatpush1.msra.mxu0 0.0
  %547 = vmatprep.subr.mxu0 0.0
  %548 = vmatpush1.msra.mxu0 0.0
  %549 = vmatprep.subr.mxu0 0.0
  %550 = vmatpush1.msra.mxu0 0.0
  %551 = vmatprep.subr.mxu0 0.0
  %552 = vmatpush1.msra.mxu0 0.0
  %553 = vmatprep.subr.mxu0 0.0
  %554 = vmatpush1.msra.mxu0 0.0
  %555 = vmatprep.subr.mxu0 0.0
  %556 = vmatpush1.msra.mxu0 0.0
  %557 = vmatprep.subr.mxu0 0.0
  %558 = vmatpush1.msra.mxu0 0.0
  %559 = vmatprep.subr.mxu0 0.0
  %560 = vmatpush1.msra.mxu0 0.0
  %561 = vmatprep.subr.mxu0 0.0
  %562 = vmatpush1.msra.mxu0 %v529
  %563 = vmatprep.subr.mxu0 0.0
  %564 = vmatpush1.msra.mxu0 %v528
  %565 = vmatprep.subr.mxu0 0.0
  %566 = vmatpush2.msra.mxu0 0.0
  %567 = vmatprep.subr.mxu0 0.0
  %568 = vmatpush2.msra.mxu0 0.0
  %569 = vmatprep.subr.mxu0 0.0
  %570 = vmatpush2.msra.mxu0 0.0
  %571 = vmatprep.subr.mxu0 0.0
  %572 = vmatpush2.msra.mxu0 0.0
  %573 = vmatprep.subr.mxu0 0.0
  %574 = vmatpush2.msra.mxu0 0.0
  %575 = vmatprep.subr.mxu0 0.0
  %576 = vmatpush2.msra.mxu0 0.0
  %577 = vmatprep.subr.mxu0 0.0
  %578 = vmatpush2.msra.mxu0 0.0
  %579 = vmatprep.subr.mxu0 0.0
  %580 = vmatpush2.msra.mxu0 0.0
  %581 = vmatprep.subr.mxu0 0.0
  %582 = vmatpush2.msra.mxu0 0.0
  %583 = vmatprep.subr.mxu0 0.0
  %584 = vmatpush2.msra.mxu0 0.0
  %585 = vmatprep.subr.mxu0 0.0
  %586 = vmatpush2.msra.mxu0 0.0
  %587 = vmatprep.subr.mxu0 0.0
  %588 = vmatpush2.msra.mxu0 0.0
  %589 = vmatprep.subr.mxu0 0.0
  %590 = vmatpush2.msra.mxu0 0.0
  %591 = vmatprep.subr.mxu0 0.0
  %592 = vmatpush2.msra.mxu0 0.0
  %593 = vmatprep.subr.mxu0 0.0
  %594 = vmatpush2.msra.mxu0 0.0
  %595 = vmatprep.subr.mxu0 0.0
  %596 = vmatpush2.msra.mxu0 0.0
  %597 = vmatprep.mubr.f32.mxu0 0.0
  %598 = vmatmul.mubr.f32.gmra.mxu0 %v531
  %v599 = vpop.f32.mrf.mxu0
  %v600 = vadd.f32 0.0, %v599
  %v601 = vpop.f32.mrf.mxu0
  %602 = vdwg.mxu0
  %v603 = vadd.f32 %v186, %v600
  %v604 = vxor.u32 %v603, 2147483648
  %v605 = vmul.f32 %v604, 1.442695
  %v606 = vpow.pop %v605
  %v607 = vadd.f32 %v606, 1.0
  %v608 = vrcp.pop %v607
  %v609 = vmul.f32 1.0, %v608
  %v610 = vmul.f32 %v609, 0.0
  %v611 = vld [vmem:[%s10] sm:$0xff]
  %v612 = vld [vmem:[%s10 + $0x8] sm:$0xff]
  %614 = vrot.lane.b32.xlu0 %v610, 112
  %v615 = vpop.permute.xlu0 %614
  %v616 = vsel %vm407, %v615, 0
  %618 = vmatprep.subr.mxu0 0.0
  %619 = vmatpush1.msra.mxu0 0.0
  %620 = vmatprep.subr.mxu0 0.0
  %621 = vmatpush1.msra.mxu0 0.0
  %622 = vmatprep.subr.mxu0 0.0
  %623 = vmatpush1.msra.mxu0 0.0
  %624 = vmatprep.subr.mxu0 0.0
  %625 = vmatpush1.msra.mxu0 0.0
  %626 = vmatprep.subr.mxu0 0.0
  %627 = vmatpush1.msra.mxu0 0.0
  %628 = vmatprep.subr.mxu0 0.0
  %629 = vmatpush1.msra.mxu0 0.0
  %630 = vmatprep.subr.mxu0 0.0
  %631 = vmatpush1.msra.mxu0 0.0
  %632 = vmatprep.subr.mxu0 0.0
  %633 = vmatpush1.msra.mxu0 0.0
  %634 = vmatprep.subr.mxu0 0.0
  %635 = vmatpush1.msra.mxu0 0.0
  %636 = vmatprep.subr.mxu0 0.0
  %637 = vmatpush1.msra.mxu0 0.0
  %638 = vmatprep.subr.mxu0 0.0
  %639 = vmatpush1.msra.mxu0 0.0
  %640 = vmatprep.subr.mxu0 0.0
  %641 = vmatpush1.msra.mxu0 0.0
  %642 = vmatprep.subr.mxu0 0.0
  %643 = vmatpush1.msra.mxu0 0.0
  %644 = vmatprep.subr.mxu0 0.0
  %645 = vmatpush1.msra.mxu0 0.0
  %646 = vmatprep.subr.mxu0 0.0
  %647 = vmatpush1.msra.mxu0 %v612
  %648 = vmatprep.subr.mxu0 0.0
  %649 = vmatpush1.msra.mxu0 %v611
  %650 = vmatprep.subr.mxu0 0.0
  %651 = vmatpush2.msra.mxu0 0.0
  %652 = vmatprep.subr.mxu0 0.0
  %653 = vmatpush2.msra.mxu0 0.0
  %654 = vmatprep.subr.mxu0 0.0
  %655 = vmatpush2.msra.mxu0 0.0
  %656 = vmatprep.subr.mxu0 0.0
  %657 = vmatpush2.msra.mxu0 0.0
  %658 = vmatprep.subr.mxu0 0.0
  %659 = vmatpush2.msra.mxu0 0.0
  %660 = vmatprep.subr.mxu0 0.0
  %661 = vmatpush2.msra.mxu0 0.0
  %662 = vmatprep.subr.mxu0 0.0
  %663 = vmatpush2.msra.mxu0 0.0
  %664 = vmatprep.subr.mxu0 0.0
  %665 = vmatpush2.msra.mxu0 0.0
  %666 = vmatprep.subr.mxu0 0.0
  %667 = vmatpush2.msra.mxu0 0.0
  %668 = vmatprep.subr.mxu0 0.0
  %669 = vmatpush2.msra.mxu0 0.0
  %670 = vmatprep.subr.mxu0 0.0
  %671 = vmatpush2.msra.mxu0 0.0
  %672 = vmatprep.subr.mxu0 0.0
  %673 = vmatpush2.msra.mxu0 0.0
  %674 = vmatprep.subr.mxu0 0.0
  %675 = vmatpush2.msra.mxu0 0.0
  %676 = vmatprep.subr.mxu0 0.0
  %677 = vmatpush2.msra.mxu0 0.0
  %678 = vmatprep.subr.mxu0 0.0
  %679 = vmatpush2.msra.mxu0 0.0
  %680 = vmatprep.subr.mxu0 0.0
  %681 = vmatpush2.msra.mxu0 0.0
  %682 = vmatprep.mubr.f32.mxu0 0.0
  %683 = vmatmul.mubr.f32.gmra.mxu0 %v616
  %v684 = vpop.f32.mrf.mxu0
  %v685 = vadd.f32 0.0, %v684
  %v686 = vpop.f32.mrf.mxu0
  %687 = vdwg.mxu0
  %v688 = vadd.f32 %v292, %v685
  %v689 = vadd.f32 %v688, %v525
  %v690 = vtanh.pop %v689
  %v691 = vmul.f32 %v609, %v690
  %v692 = vadd.f32 %v691, 0.0
  %693 = vrot.lane.b32.xlu0 0.0, 112
  %v694 = vpop.permute.xlu0 %693
  %696 = vrot.lane.b32.xlu0 %v692, 112
  %v697 = vpop.permute.xlu0 %696
  %vm699 = vcmask 916480
  %v700 = vsel %vm699, 0.0, %v697
  %v701 = vsel %vm81, %v700, %v694
  %702 = vmatprep.subr.mxu0 0.0
  %703 = vmatpush1.msra.mxu0 %v335
  %704 = vmatprep.subr.mxu0 0.0
  %705 = vmatpush1.msra.mxu0 %v334
  %706 = vmatprep.subr.mxu0 0.0
  %707 = vmatpush1.msra.mxu0 %v333
  %708 = vmatprep.subr.mxu0 0.0
  %709 = vmatpush1.msra.mxu0 %v332
  %710 = vmatprep.subr.mxu0 0.0
  %711 = vmatpush1.msra.mxu0 %v331
  %712 = vmatprep.subr.mxu0 0.0
  %713 = vmatpush1.msra.mxu0 %v330
  %714 = vmatprep.subr.mxu0 0.0
  %715 = vmatpush1.msra.mxu0 %v329
  %716 = vmatprep.subr.mxu0 0.0
  %717 = vmatpush1.msra.mxu0 %v328
  %718 = vmatprep.subr.mxu0 0.0
  %719 = vmatpush1.msra.mxu0 %v327
  %720 = vmatprep.subr.mxu0 0.0
  %721 = vmatpush1.msra.mxu0 %v326
  %722 = vmatprep.subr.mxu0 0.0
  %723 = vmatpush1.msra.mxu0 %v325
  %724 = vmatprep.subr.mxu0 0.0
  %725 = vmatpush1.msra.mxu0 %v324
  %726 = vmatprep.subr.mxu0 0.0
  %727 = vmatpush1.msra.mxu0 %v323
  %728 = vmatprep.subr.mxu0 0.0
  %729 = vmatpush1.msra.mxu0 %v322
  %730 = vmatprep.subr.mxu0 0.0
  %731 = vmatpush1.msra.mxu0 %v321
  %732 = vmatprep.subr.mxu0 0.0
  %733 = vmatpush1.msra.mxu0 %v320
  %734 = vmatprep.subr.mxu0 0.0
  %735 = vmatpush2.msra.mxu0 0.0
  %736 = vmatprep.subr.mxu0 0.0
  %737 = vmatpush2.msra.mxu0 0.0
  %738 = vmatprep.subr.mxu0 0.0
  %739 = vmatpush2.msra.mxu0 0.0
  %740 = vmatprep.subr.mxu0 0.0
  %741 = vmatpush2.msra.mxu0 0.0
  %742 = vmatprep.subr.mxu0 0.0
  %743 = vmatpush2.msra.mxu0 0.0
  %744 = vmatprep.subr.mxu0 0.0
  %745 = vmatpush2.msra.mxu0 0.0
  %746 = vmatprep.subr.mxu0 0.0
  %747 = vmatpush2.msra.mxu0 0.0
  %748 = vmatprep.subr.mxu0 0.0
  %749 = vmatpush2.msra.mxu0 0.0
  %750 = vmatprep.subr.mxu0 0.0
  %751 = vmatpush2.msra.mxu0 0.0
  %752 = vmatprep.subr.mxu0 0.0
  %753 = vmatpush2.msra.mxu0 0.0
  %754 = vmatprep.subr.mxu0 0.0
  %755 = vmatpush2.msra.mxu0 0.0
  %756 = vmatprep.subr.mxu0 0.0
  %757 = vmatpush2.msra.mxu0 0.0
  %758 = vmatprep.subr.mxu0 0.0
  %759 = vmatpush2.msra.mxu0 0.0
  %760 = vmatprep.subr.mxu0 0.0
  %761 = vmatpush2.msra.mxu0 0.0
  %762 = vmatprep.subr.mxu0 0.0
  %763 = vmatpush2.msra.mxu0 0.0
  %764 = vmatprep.subr.mxu0 0.0
  %765 = vmatpush2.msra.mxu0 0.0
  %766 = vmatprep.mubr.f32.mxu0 0.0
  %767 = vmatmul.mubr.f32.gmra.mxu0 %v701
  %v768 = vpop.f32.mrf.mxu0
  %v769 = vadd.f32 %v61, %v768
  %v770 = vpop.f32.mrf.mxu0
  %771 = vdwg.mxu0
  %v772 = vsel %vm80, %v769, -inf
  %v773 = vsel %vm407, %v772, -inf
  %774 = vmax.xlane.f32.xlu0 %v773
  %v775 = vpop.xlane.xlu0 %774
  %v776 = vsel %vm80, -inf, %v769
  %v777 = vsel %vm407, %v776, -inf
  %778 = vmax.xlane.f32.xlu0 %v777
  %v779 = vpop.xlane.xlu0 %778
  %v780 = vsel %vm80, %v775, %v779
  %v781 = vsub.f32 %v769, %v780
  %v782 = vmul.f32 %v781, 1.442695
  %v783 = vpow.pop %v782
  %v784 = vsel %vm80, %v783, 0.0
  %v785 = vsel %vm407, %v784, 0.0
  %786 = vadd.xlane.f32.xlu0 %v785
  %v787 = vpop.xlane.xlu0 %786
  %v788 = vsel %vm80, 0.0, %v783
  %v789 = vsel %vm407, %v788, 0.0
  %790 = vadd.xlane.f32.xlu0 %v789
  %v791 = vpop.xlane.xlu0 %790
  %v792 = vsel %vm80, %v787, %v791
  %v793 = vrcp.pop %v792
  %v794 = vmul.f32 %v783, %v793
  %796 = vrot.lane.b32.xlu0 %v794, 16
  %v797 = vpop.permute.xlu0 %796
  %799 = vrot.lane.b32.xlu0 %v794, 32
  %v800 = vpop.permute.xlu0 %799
  %802 = vrot.lane.b32.xlu0 %v794, 48
  %v803 = vpop.permute.xlu0 %802
  %v805 = vsel %vm407, %v794, %v797
  %v806 = vsel %vm441, %v805, %v800
  %v807 = vsel %vm443, %v806, %v803
  %v808 = vmul.f32 %v807, %v77
  %v810 = vsel %vm454, %v808, 0
  %812 = vmatprep.subr.mxu0 0.0
  %813 = vmatpush1.msra.mxu0 0.0
  %814 = vmatprep.subr.mxu0 0.0
  %815 = vmatpush1.msra.mxu0 0.0
  %816 = vmatprep.subr.mxu0 0.0
  %817 = vmatpush1.msra.mxu0 0.0
  %818 = vmatprep.subr.mxu0 0.0
  %819 = vmatpush1.msra.mxu0 0.0
  %820 = vmatprep.subr.mxu0 0.0
  %821 = vmatpush1.msra.mxu0 0.0
  %822 = vmatprep.subr.mxu0 0.0
  %823 = vmatpush1.msra.mxu0 0.0
  %824 = vmatprep.subr.mxu0 0.0
  %825 = vmatpush1.msra.mxu0 0.0
  %826 = vmatprep.subr.mxu0 0.0
  %827 = vmatpush1.msra.mxu0 0.0
  %828 = vmatprep.subr.mxu0 0.0
  %829 = vmatpush1.msra.mxu0 %v453
  %830 = vmatprep.subr.mxu0 0.0
  %831 = vmatpush1.msra.mxu0 %v452
  %832 = vmatprep.subr.mxu0 0.0
  %833 = vmatpush1.msra.mxu0 %v451
  %834 = vmatprep.subr.mxu0 0.0
  %835 = vmatpush1.msra.mxu0 %v450
  %836 = vmatprep.subr.mxu0 0.0
  %837 = vmatpush1.msra.mxu0 %v449
  %838 = vmatprep.subr.mxu0 0.0
  %839 = vmatpush1.msra.mxu0 %v448
  %840 = vmatprep.subr.mxu0 0.0
  %841 = vmatpush1.msra.mxu0 %v447
  %842 = vmatprep.subr.mxu0 0.0
  %843 = vmatpush1.msra.mxu0 %v446
  %844 = vmatprep.subr.mxu0 0.0
  %845 = vmatpush2.msra.mxu0 0.0
  %846 = vmatprep.subr.mxu0 0.0
  %847 = vmatpush2.msra.mxu0 0.0
  %848 = vmatprep.subr.mxu0 0.0
  %849 = vmatpush2.msra.mxu0 0.0
  %850 = vmatprep.subr.mxu0 0.0
  %851 = vmatpush2.msra.mxu0 0.0
  %852 = vmatprep.subr.mxu0 0.0
  %853 = vmatpush2.msra.mxu0 0.0
  %854 = vmatprep.subr.mxu0 0.0
  %855 = vmatpush2.msra.mxu0 0.0
  %856 = vmatprep.subr.mxu0 0.0
  %857 = vmatpush2.msra.mxu0 0.0
  %858 = vmatprep.subr.mxu0 0.0
  %859 = vmatpush2.msra.mxu0 0.0
  %860 = vmatprep.subr.mxu0 0.0
  %861 = vmatpush2.msra.mxu0 0.0
  %862 = vmatprep.subr.mxu0 0.0
  %863 = vmatpush2.msra.mxu0 0.0
  %864 = vmatprep.subr.mxu0 0.0
  %865 = vmatpush2.msra.mxu0 0.0
  %866 = vmatprep.subr.mxu0 0.0
  %867 = vmatpush2.msra.mxu0 0.0
  %868 = vmatprep.subr.mxu0 0.0
  %869 = vmatpush2.msra.mxu0 0.0
  %870 = vmatprep.subr.mxu0 0.0
  %871 = vmatpush2.msra.mxu0 0.0
  %872 = vmatprep.subr.mxu0 0.0
  %873 = vmatpush2.msra.mxu0 0.0
  %874 = vmatprep.subr.mxu0 0.0
  %875 = vmatpush2.msra.mxu0 0.0
  %876 = vmatprep.mubr.f32.mxu0 0.0
  %877 = vmatmul.mubr.f32.gmra.mxu0 %v810
  %v878 = vpop.f32.mrf.mxu0
  %v879 = vadd.f32 0.0, %v878
  %v880 = vpop.f32.mrf.mxu0
  %881 = vdwg.mxu0
  %v882 = vsel %vm407, %v692, 0
  %884 = vmatprep.subr.mxu0 0.0
  %885 = vmatpush1.msra.mxu0 0.0
  %886 = vmatprep.subr.mxu0 0.0
  %887 = vmatpush1.msra.mxu0 0.0
  %888 = vmatprep.subr.mxu0 0.0
  %889 = vmatpush1.msra.mxu0 0.0
  %890 = vmatprep.subr.mxu0 0.0
  %891 = vmatpush1.msra.mxu0 0.0
  %892 = vmatprep.subr.mxu0 0.0
  %893 = vmatpush1.msra.mxu0 0.0
  %894 = vmatprep.subr.mxu0 0.0
  %895 = vmatpush1.msra.mxu0 0.0
  %896 = vmatprep.subr.mxu0 0.0
  %897 = vmatpush1.msra.mxu0 0.0
  %898 = vmatprep.subr.mxu0 0.0
  %899 = vmatpush1.msra.mxu0 0.0
  %900 = vmatprep.subr.mxu0 0.0
  %901 = vmatpush1.msra.mxu0 0.0
  %902 = vmatprep.subr.mxu0 0.0
  %903 = vmatpush1.msra.mxu0 0.0
  %904 = vmatprep.subr.mxu0 0.0
  %905 = vmatpush1.msra.mxu0 0.0
  %906 = vmatprep.subr.mxu0 0.0
  %907 = vmatpush1.msra.mxu0 0.0
  %908 = vmatprep.subr.mxu0 0.0
  %909 = vmatpush1.msra.mxu0 0.0
  %910 = vmatprep.subr.mxu0 0.0
  %911 = vmatpush1.msra.mxu0 0.0
  %912 = vmatprep.subr.mxu0 0.0
  %913 = vmatpush1.msra.mxu0 %v529
  %914 = vmatprep.subr.mxu0 0.0
  %915 = vmatpush1.msra.mxu0 %v528
  %916 = vmatprep.subr.mxu0 0.0
  %917 = vmatpush2.msra.mxu0 0.0
  %918 = vmatprep.subr.mxu0 0.0
  %919 = vmatpush2.msra.mxu0 0.0
  %920 = vmatprep.subr.mxu0 0.0
  %921 = vmatpush2.msra.mxu0 0.0
  %922 = vmatprep.subr.mxu0 0.0
  %923 = vmatpush2.msra.mxu0 0.0
  %924 = vmatprep.subr.mxu0 0.0
  %925 = vmatpush2.msra.mxu0 0.0
  %926 = vmatprep.subr.mxu0 0.0
  %927 = vmatpush2.msra.mxu0 0.0
  %928 = vmatprep.subr.mxu0 0.0
  %929 = vmatpush2.msra.mxu0 0.0
  %930 = vmatprep.subr.mxu0 0.0
  %931 = vmatpush2.msra.mxu0 0.0
  %932 = vmatprep.subr.mxu0 0.0
  %933 = vmatpush2.msra.mxu0 0.0
  %934 = vmatprep.subr.mxu0 0.0
  %935 = vmatpush2.msra.mxu0 0.0
  %936 = vmatprep.subr.mxu0 0.0
  %937 = vmatpush2.msra.mxu0 0.0
  %938 = vmatprep.subr.mxu0 0.0
  %939 = vmatpush2.msra.mxu0 0.0
  %940 = vmatprep.subr.mxu0 0.0
  %941 = vmatpush2.msra.mxu0 0.0
  %942 = vmatprep.subr.mxu0 0.0
  %943 = vmatpush2.msra.mxu0 0.0
  %944 = vmatprep.subr.mxu0 0.0
  %945 = vmatpush2.msra.mxu0 0.0
  %946 = vmatprep.subr.mxu0 0.0
  %947 = vmatpush2.msra.mxu0 0.0
  %948 = vmatprep.mubr.f32.mxu0 0.0
  %949 = vmatmul.mubr.f32.gmra.mxu0 %v882
  %v950 = vpop.f32.mrf.mxu0
  %v951 = vadd.f32 0.0, %v950
  %v952 = vpop.f32.mrf.mxu0
  %953 = vdwg.mxu0
  %v954 = vadd.f32 %v191, %v951
  %v955 = vxor.u32 %v954, 2147483648
  %v956 = vmul.f32 %v955, 1.442695
  %v957 = vpow.pop %v956
  %v958 = vadd.f32 %v957, 1.0
  %v959 = vrcp.pop %v958
  %v960 = vmul.f32 1.0, %v959
  %961 = vrot.lane.b32.xlu0 %v692, 16
  %v962 = vpop.permute.xlu0 %961
  %v964 = vmul.f32 %v960, %v962
  %966 = vrot.lane.b32.xlu0 %v964, 112
  %v967 = vpop.permute.xlu0 %966
  %v968 = vsel %vm407, %v967, 0
  %970 = vmatprep.subr.mxu0 0.0
  %971 = vmatpush1.msra.mxu0 0.0
  %972 = vmatprep.subr.mxu0 0.0
  %973 = vmatpush1.msra.mxu0 0.0
  %974 = vmatprep.subr.mxu0 0.0
  %975 = vmatpush1.msra.mxu0 0.0
  %976 = vmatprep.subr.mxu0 0.0
  %977 = vmatpush1.msra.mxu0 0.0
  %978 = vmatprep.subr.mxu0 0.0
  %979 = vmatpush1.msra.mxu0 0.0
  %980 = vmatprep.subr.mxu0 0.0
  %981 = vmatpush1.msra.mxu0 0.0
  %982 = vmatprep.subr.mxu0 0.0
  %983 = vmatpush1.msra.mxu0 0.0
  %984 = vmatprep.subr.mxu0 0.0
  %985 = vmatpush1.msra.mxu0 0.0
  %986 = vmatprep.subr.mxu0 0.0
  %987 = vmatpush1.msra.mxu0 0.0
  %988 = vmatprep.subr.mxu0 0.0
  %989 = vmatpush1.msra.mxu0 0.0
  %990 = vmatprep.subr.mxu0 0.0
  %991 = vmatpush1.msra.mxu0 0.0
  %992 = vmatprep.subr.mxu0 0.0
  %993 = vmatpush1.msra.mxu0 0.0
  %994 = vmatprep.subr.mxu0 0.0
  %995 = vmatpush1.msra.mxu0 0.0
  %996 = vmatprep.subr.mxu0 0.0
  %997 = vmatpush1.msra.mxu0 0.0
  %998 = vmatprep.subr.mxu0 0.0
  %999 = vmatpush1.msra.mxu0 %v612
  %1000 = vmatprep.subr.mxu0 0.0
  %1001 = vmatpush1.msra.mxu0 %v611
  %1002 = vmatprep.subr.mxu0 0.0
  %1003 = vmatpush2.msra.mxu0 0.0
  %1004 = vmatprep.subr.mxu0 0.0
  %1005 = vmatpush2.msra.mxu0 0.0
  %1006 = vmatprep.subr.mxu0 0.0
  %1007 = vmatpush2.msra.mxu0 0.0
  %1008 = vmatprep.subr.mxu0 0.0
  %1009 = vmatpush2.msra.mxu0 0.0
  %1010 = vmatprep.subr.mxu0 0.0
  %1011 = vmatpush2.msra.mxu0 0.0
  %1012 = vmatprep.subr.mxu0 0.0
  %1013 = vmatpush2.msra.mxu0 0.0
  %1014 = vmatprep.subr.mxu0 0.0
  %1015 = vmatpush2.msra.mxu0 0.0
  %1016 = vmatprep.subr.mxu0 0.0
  %1017 = vmatpush2.msra.mxu0 0.0
  %1018 = vmatprep.subr.mxu0 0.0
  %1019 = vmatpush2.msra.mxu0 0.0
  %1020 = vmatprep.subr.mxu0 0.0
  %1021 = vmatpush2.msra.mxu0 0.0
  %1022 = vmatprep.subr.mxu0 0.0
  %1023 = vmatpush2.msra.mxu0 0.0
  %1024 = vmatprep.subr.mxu0 0.0
  %1025 = vmatpush2.msra.mxu0 0.0
  %1026 = vmatprep.subr.mxu0 0.0
  %1027 = vmatpush2.msra.mxu0 0.0
  %1028 = vmatprep.subr.mxu0 0.0
  %1029 = vmatpush2.msra.mxu0 0.0
  %1030 = vmatprep.subr.mxu0 0.0
  %1031 = vmatpush2.msra.mxu0 0.0
  %1032 = vmatprep.subr.mxu0 0.0
  %1033 = vmatpush2.msra.mxu0 0.0
  %1034 = vmatprep.mubr.f32.mxu0 0.0
  %1035 = vmatmul.mubr.f32.gmra.mxu0 %v968
  %v1036 = vpop.f32.mrf.mxu0
  %v1037 = vadd.f32 0.0, %v1036
  %v1038 = vpop.f32.mrf.mxu0
  %1039 = vdwg.mxu0
  %v1040 = vadd.f32 %v297, %v1037
  %v1041 = vadd.f32 %v1040, %v879
  %v1042 = vtanh.pop %v1041
  %v1043 = vsub.f32 %v1042, %v692
  %v1044 = vmul.f32 %v960, %v1043
  %v1045 = vadd.f32 %v692, %v1044
  %1046 = vrot.lane.b32.xlu0 %v701, 112
  %v1047 = vpop.permute.xlu0 %1046
  %1049 = vrot.lane.b32.xlu0 %v1045, 112
  %v1050 = vpop.permute.xlu0 %1049
  %v1052 = vsel %vm699, 0.0, %v1050
  %v1053 = vsel %vm81, %v1052, %v1047
  %1054 = vmatprep.subr.mxu0 0.0
  %1055 = vmatpush1.msra.mxu0 %v335
  %1056 = vmatprep.subr.mxu0 0.0
  %1057 = vmatpush1.msra.mxu0 %v334
  %1058 = vmatprep.subr.mxu0 0.0
  %1059 = vmatpush1.msra.mxu0 %v333
  %1060 = vmatprep.subr.mxu0 0.0
  %1061 = vmatpush1.msra.mxu0 %v332
  %1062 = vmatprep.subr.mxu0 0.0
  %1063 = vmatpush1.msra.mxu0 %v331
  %1064 = vmatprep.subr.mxu0 0.0
  %1065 = vmatpush1.msra.mxu0 %v330
  %1066 = vmatprep.subr.mxu0 0.0
  %1067 = vmatpush1.msra.mxu0 %v329
  %1068 = vmatprep.subr.mxu0 0.0
  %1069 = vmatpush1.msra.mxu0 %v328
  %1070 = vmatprep.subr.mxu0 0.0
  %1071 = vmatpush1.msra.mxu0 %v327
  %1072 = vmatprep.subr.mxu0 0.0
  %1073 = vmatpush1.msra.mxu0 %v326
  %1074 = vmatprep.subr.mxu0 0.0
  %1075 = vmatpush1.msra.mxu0 %v325
  %1076 = vmatprep.subr.mxu0 0.0
  %1077 = vmatpush1.msra.mxu0 %v324
  %1078 = vmatprep.subr.mxu0 0.0
  %1079 = vmatpush1.msra.mxu0 %v323
  %1080 = vmatprep.subr.mxu0 0.0
  %1081 = vmatpush1.msra.mxu0 %v322
  %1082 = vmatprep.subr.mxu0 0.0
  %1083 = vmatpush1.msra.mxu0 %v321
  %1084 = vmatprep.subr.mxu0 0.0
  %1085 = vmatpush1.msra.mxu0 %v320
  %1086 = vmatprep.subr.mxu0 0.0
  %1087 = vmatpush2.msra.mxu0 0.0
  %1088 = vmatprep.subr.mxu0 0.0
  %1089 = vmatpush2.msra.mxu0 0.0
  %1090 = vmatprep.subr.mxu0 0.0
  %1091 = vmatpush2.msra.mxu0 0.0
  %1092 = vmatprep.subr.mxu0 0.0
  %1093 = vmatpush2.msra.mxu0 0.0
  %1094 = vmatprep.subr.mxu0 0.0
  %1095 = vmatpush2.msra.mxu0 0.0
  %1096 = vmatprep.subr.mxu0 0.0
  %1097 = vmatpush2.msra.mxu0 0.0
  %1098 = vmatprep.subr.mxu0 0.0
  %1099 = vmatpush2.msra.mxu0 0.0
  %1100 = vmatprep.subr.mxu0 0.0
  %1101 = vmatpush2.msra.mxu0 0.0
  %1102 = vmatprep.subr.mxu0 0.0
  %1103 = vmatpush2.msra.mxu0 0.0
  %1104 = vmatprep.subr.mxu0 0.0
  %1105 = vmatpush2.msra.mxu0 0.0
  %1106 = vmatprep.subr.mxu0 0.0
  %1107 = vmatpush2.msra.mxu0 0.0
  %1108 = vmatprep.subr.mxu0 0.0
  %1109 = vmatpush2.msra.mxu0 0.0
  %1110 = vmatprep.subr.mxu0 0.0
  %1111 = vmatpush2.msra.mxu0 0.0
  %1112 = vmatprep.subr.mxu0 0.0
  %1113 = vmatpush2.msra.mxu0 0.0
  %1114 = vmatprep.subr.mxu0 0.0
  %1115 = vmatpush2.msra.mxu0 0.0
  %1116 = vmatprep.subr.mxu0 0.0
  %1117 = vmatpush2.msra.mxu0 0.0
  %1118 = vmatprep.mubr.f32.mxu0 0.0
  %1119 = vmatmul.mubr.f32.gmra.mxu0 %v1053
  %v1120 = vpop.f32.mrf.mxu0
  %v1121 = vadd.f32 %v61, %v1120
  %v1122 = vpop.f32.mrf.mxu0
  %1123 = vdwg.mxu0
  %v1124 = vsel %vm80, %v1121, -inf
  %v1125 = vsel %vm407, %v1124, -inf
  %1126 = vmax.xlane.f32.xlu0 %v1125
  %v1127 = vpop.xlane.xlu0 %1126
  %v1128 = vsel %vm80, -inf, %v1121
  %v1129 = vsel %vm407, %v1128, -inf
  %1130 = vmax.xlane.f32.xlu0 %v1129
  %v1131 = vpop.xlane.xlu0 %1130
  %v1132 = vsel %vm80, %v1127, %v1131
  %v1133 = vsub.f32 %v1121, %v1132
  %v1134 = vmul.f32 %v1133, 1.442695
  %v1135 = vpow.pop %v1134
  %v1136 = vsel %vm80, %v1135, 0.0
  %v1137 = vsel %vm407, %v1136, 0.0
  %1138 = vadd.xlane.f32.xlu0 %v1137
  %v1139 = vpop.xlane.xlu0 %1138
  %v1140 = vsel %vm80, 0.0, %v1135
  %v1141 = vsel %vm407, %v1140, 0.0
  %1142 = vadd.xlane.f32.xlu0 %v1141
  %v1143 = vpop.xlane.xlu0 %1142
  %v1144 = vsel %vm80, %v1139, %v1143
  %v1145 = vrcp.pop %v1144
  %v1146 = vmul.f32 %v1135, %v1145
  %1148 = vrot.lane.b32.xlu0 %v1146, 16
  %v1149 = vpop.permute.xlu0 %1148
  %1151 = vrot.lane.b32.xlu0 %v1146, 32
  %v1152 = vpop.permute.xlu0 %1151
  %1154 = vrot.lane.b32.xlu0 %v1146, 48
  %v1155 = vpop.permute.xlu0 %1154
  %v1157 = vsel %vm407, %v1146, %v1149
  %v1158 = vsel %vm441, %v1157, %v1152
  %v1159 = vsel %vm443, %v1158, %v1155
  %v1160 = vmul.f32 %v1159, %v77
  %v1162 = vsel %vm454, %v1160, 0
  %1164 = vmatprep.subr.mxu0 0.0
  %1165 = vmatpush1.msra.mxu0 0.0
  %1166 = vmatprep.subr.mxu0 0.0
  %1167 = vmatpush1.msra.mxu0 0.0
  %1168 = vmatprep.subr.mxu0 0.0
  %1169 = vmatpush1.msra.mxu0 0.0
  %1170 = vmatprep.subr.mxu0 0.0
  %1171 = vmatpush1.msra.mxu0 0.0
  %1172 = vmatprep.subr.mxu0 0.0
  %1173 = vmatpush1.msra.mxu0 0.0
  %1174 = vmatprep.subr.mxu0 0.0
  %1175 = vmatpush1.msra.mxu0 0.0
  %1176 = vmatprep.subr.mxu0 0.0
  %1177 = vmatpush1.msra.mxu0 0.0
  %1178 = vmatprep.subr.mxu0 0.0
  %1179 = vmatpush1.msra.mxu0 0.0
  %1180 = vmatprep.subr.mxu0 0.0
  %1181 = vmatpush1.msra.mxu0 %v453
  %1182 = vmatprep.subr.mxu0 0.0
  %1183 = vmatpush1.msra.mxu0 %v452
  %1184 = vmatprep.subr.mxu0 0.0
  %1185 = vmatpush1.msra.mxu0 %v451
  %1186 = vmatprep.subr.mxu0 0.0
  %1187 = vmatpush1.msra.mxu0 %v450
  %1188 = vmatprep.subr.mxu0 0.0
  %1189 = vmatpush1.msra.mxu0 %v449
  %1190 = vmatprep.subr.mxu0 0.0
  %1191 = vmatpush1.msra.mxu0 %v448
  %1192 = vmatprep.subr.mxu0 0.0
  %1193 = vmatpush1.msra.mxu0 %v447
  %1194 = vmatprep.subr.mxu0 0.0
  %1195 = vmatpush1.msra.mxu0 %v446
  %1196 = vmatprep.subr.mxu0 0.0
  %1197 = vmatpush2.msra.mxu0 0.0
  %1198 = vmatprep.subr.mxu0 0.0
  %1199 = vmatpush2.msra.mxu0 0.0
  %1200 = vmatprep.subr.mxu0 0.0
  %1201 = vmatpush2.msra.mxu0 0.0
  %1202 = vmatprep.subr.mxu0 0.0
  %1203 = vmatpush2.msra.mxu0 0.0
  %1204 = vmatprep.subr.mxu0 0.0
  %1205 = vmatpush2.msra.mxu0 0.0
  %1206 = vmatprep.subr.mxu0 0.0
  %1207 = vmatpush2.msra.mxu0 0.0
  %1208 = vmatprep.subr.mxu0 0.0
  %1209 = vmatpush2.msra.mxu0 0.0
  %1210 = vmatprep.subr.mxu0 0.0
  %1211 = vmatpush2.msra.mxu0 0.0
  %1212 = vmatprep.subr.mxu0 0.0
  %1213 = vmatpush2.msra.mxu0 0.0
  %1214 = vmatprep.subr.mxu0 0.0
  %1215 = vmatpush2.msra.mxu0 0.0
  %1216 = vmatprep.subr.mxu0 0.0
  %1217 = vmatpush2.msra.mxu0 0.0
  %1218 = vmatprep.subr.mxu0 0.0
  %1219 = vmatpush2.msra.mxu0 0.0
  %1220 = vmatprep.subr.mxu0 0.0
  %1221 = vmatpush2.msra.mxu0 0.0
  %1222 = vmatprep.subr.mxu0 0.0
  %1223 = vmatpush2.msra.mxu0 0.0
  %1224 = vmatprep.subr.mxu0 0.0
  %1225 = vmatpush2.msra.mxu0 0.0
  %1226 = vmatprep.subr.mxu0 0.0
  %1227 = vmatpush2.msra.mxu0 0.0
  %1228 = vmatprep.mubr.f32.mxu0 0.0
  %1229 = vmatmul.mubr.f32.gmra.mxu0 %v1162
  %v1230 = vpop.f32.mrf.mxu0
  %v1231 = vadd.f32 0.0, %v1230
  %v1232 = vpop.f32.mrf.mxu0
  %1233 = vdwg.mxu0
  %v1234 = vsel %vm407, %v1045, 0
  %1236 = vmatprep.subr.mxu0 0.0
  %1237 = vmatpush1.msra.mxu0 0.0
  %1238 = vmatprep.subr.mxu0 0.0
  %1239 = vmatpush1.msra.mxu0 0.0
  %1240 = vmatprep.subr.mxu0 0.0
  %1241 = vmatpush1.msra.mxu0 0.0
  %1242 = vmatprep.subr.mxu0 0.0
  %1243 = vmatpush1.msra.mxu0 0.0
  %1244 = vmatprep.subr.mxu0 0.0
  %1245 = vmatpush1.msra.mxu0 0.0
  %1246 = vmatprep.subr.mxu0 0.0
  %1247 = vmatpush1.msra.mxu0 0.0
  %1248 = vmatprep.subr.mxu0 0.0
  %1249 = vmatpush1.msra.mxu0 0.0
  %1250 = vmatprep.subr.mxu0 0.0
  %1251 = vmatpush1.msra.mxu0 0.0
  %1252 = vmatprep.subr.mxu0 0.0
  %1253 = vmatpush1.msra.mxu0 0.0
  %1254 = vmatprep.subr.mxu0 0.0
  %1255 = vmatpush1.msra.mxu0 0.0
  %1256 = vmatprep.subr.mxu0 0.0
  %1257 = vmatpush1.msra.mxu0 0.0
  %1258 = vmatprep.subr.mxu0 0.0
  %1259 = vmatpush1.msra.mxu0 0.0
  %1260 = vmatprep.subr.mxu0 0.0
  %1261 = vmatpush1.msra.mxu0 0.0
  %1262 = vmatprep.subr.mxu0 0.0
  %1263 = vmatpush1.msra.mxu0 0.0
  %1264 = vmatprep.subr.mxu0 0.0
  %1265 = vmatpush1.msra.mxu0 %v529
  %1266 = vmatprep.subr.mxu0 0.0
  %1267 = vmatpush1.msra.mxu0 %v528
  %1268 = vmatprep.subr.mxu0 0.0
  %1269 = vmatpush2.msra.mxu0 0.0
  %1270 = vmatprep.subr.mxu0 0.0
  %1271 = vmatpush2.msra.mxu0 0.0
  %1272 = vmatprep.subr.mxu0 0.0
  %1273 = vmatpush2.msra.mxu0 0.0
  %1274 = vmatprep.subr.mxu0 0.0
  %1275 = vmatpush2.msra.mxu0 0.0
  %1276 = vmatprep.subr.mxu0 0.0
  %1277 = vmatpush2.msra.mxu0 0.0
  %1278 = vmatprep.subr.mxu0 0.0
  %1279 = vmatpush2.msra.mxu0 0.0
  %1280 = vmatprep.subr.mxu0 0.0
  %1281 = vmatpush2.msra.mxu0 0.0
  %1282 = vmatprep.subr.mxu0 0.0
  %1283 = vmatpush2.msra.mxu0 0.0
  %1284 = vmatprep.subr.mxu0 0.0
  %1285 = vmatpush2.msra.mxu0 0.0
  %1286 = vmatprep.subr.mxu0 0.0
  %1287 = vmatpush2.msra.mxu0 0.0
  %1288 = vmatprep.subr.mxu0 0.0
  %1289 = vmatpush2.msra.mxu0 0.0
  %1290 = vmatprep.subr.mxu0 0.0
  %1291 = vmatpush2.msra.mxu0 0.0
  %1292 = vmatprep.subr.mxu0 0.0
  %1293 = vmatpush2.msra.mxu0 0.0
  %1294 = vmatprep.subr.mxu0 0.0
  %1295 = vmatpush2.msra.mxu0 0.0
  %1296 = vmatprep.subr.mxu0 0.0
  %1297 = vmatpush2.msra.mxu0 0.0
  %1298 = vmatprep.subr.mxu0 0.0
  %1299 = vmatpush2.msra.mxu0 0.0
  %1300 = vmatprep.mubr.f32.mxu0 0.0
  %1301 = vmatmul.mubr.f32.gmra.mxu0 %v1234
  %v1302 = vpop.f32.mrf.mxu0
  %v1303 = vadd.f32 0.0, %v1302
  %v1304 = vpop.f32.mrf.mxu0
  %1305 = vdwg.mxu0
  %v1306 = vadd.f32 %v196, %v1303
  %v1307 = vxor.u32 %v1306, 2147483648
  %v1308 = vmul.f32 %v1307, 1.442695
  %v1309 = vpow.pop %v1308
  %v1310 = vadd.f32 %v1309, 1.0
  %v1311 = vrcp.pop %v1310
  %v1312 = vmul.f32 1.0, %v1311
  %1313 = vrot.lane.b32.xlu0 %v1045, 16
  %v1314 = vpop.permute.xlu0 %1313
  %v1316 = vmul.f32 %v1312, %v1314
  %1318 = vrot.lane.b32.xlu0 %v1316, 112
  %v1319 = vpop.permute.xlu0 %1318
  %v1320 = vsel %vm407, %v1319, 0
  %1322 = vmatprep.subr.mxu0 0.0
  %1323 = vmatpush1.msra.mxu0 0.0
  %1324 = vmatprep.subr.mxu0 0.0
  %1325 = vmatpush1.msra.mxu0 0.0
  %1326 = vmatprep.subr.mxu0 0.0
  %1327 = vmatpush1.msra.mxu0 0.0
  %1328 = vmatprep.subr.mxu0 0.0
  %1329 = vmatpush1.msra.mxu0 0.0
  %1330 = vmatprep.subr.mxu0 0.0
  %1331 = vmatpush1.msra.mxu0 0.0
  %1332 = vmatprep.subr.mxu0 0.0
  %1333 = vmatpush1.msra.mxu0 0.0
  %1334 = vmatprep.subr.mxu0 0.0
  %1335 = vmatpush1.msra.mxu0 0.0
  %1336 = vmatprep.subr.mxu0 0.0
  %1337 = vmatpush1.msra.mxu0 0.0
  %1338 = vmatprep.subr.mxu0 0.0
  %1339 = vmatpush1.msra.mxu0 0.0
  %1340 = vmatprep.subr.mxu0 0.0
  %1341 = vmatpush1.msra.mxu0 0.0
  %1342 = vmatprep.subr.mxu0 0.0
  %1343 = vmatpush1.msra.mxu0 0.0
  %1344 = vmatprep.subr.mxu0 0.0
  %1345 = vmatpush1.msra.mxu0 0.0
  %1346 = vmatprep.subr.mxu0 0.0
  %1347 = vmatpush1.msra.mxu0 0.0
  %1348 = vmatprep.subr.mxu0 0.0
  %1349 = vmatpush1.msra.mxu0 0.0
  %1350 = vmatprep.subr.mxu0 0.0
  %1351 = vmatpush1.msra.mxu0 %v612
  %1352 = vmatprep.subr.mxu0 0.0
  %1353 = vmatpush1.msra.mxu0 %v611
  %1354 = vmatprep.subr.mxu0 0.0
  %1355 = vmatpush2.msra.mxu0 0.0
  %1356 = vmatprep.subr.mxu0 0.0
  %1357 = vmatpush2.msra.mxu0 0.0
  %1358 = vmatprep.subr.mxu0 0.0
  %1359 = vmatpush2.msra.mxu0 0.0
  %1360 = vmatprep.subr.mxu0 0.0
  %1361 = vmatpush2.msra.mxu0 0.0
  %1362 = vmatprep.subr.mxu0 0.0
  %1363 = vmatpush2.msra.mxu0 0.0
  %1364 = vmatprep.subr.mxu0 0.0
  %1365 = vmatpush2.msra.mxu0 0.0
  %1366 = vmatprep.subr.mxu0 0.0
  %1367 = vmatpush2.msra.mxu0 0.0
  %1368 = vmatprep.subr.mxu0 0.0
  %1369 = vmatpush2.msra.mxu0 0.0
  %1370 = vmatprep.subr.mxu0 0.0
  %1371 = vmatpush2.msra.mxu0 0.0
  %1372 = vmatprep.subr.mxu0 0.0
  %1373 = vmatpush2.msra.mxu0 0.0
  %1374 = vmatprep.subr.mxu0 0.0
  %1375 = vmatpush2.msra.mxu0 0.0
  %1376 = vmatprep.subr.mxu0 0.0
  %1377 = vmatpush2.msra.mxu0 0.0
  %1378 = vmatprep.subr.mxu0 0.0
  %1379 = vmatpush2.msra.mxu0 0.0
  %1380 = vmatprep.subr.mxu0 0.0
  %1381 = vmatpush2.msra.mxu0 0.0
  %1382 = vmatprep.subr.mxu0 0.0
  %1383 = vmatpush2.msra.mxu0 0.0
  %1384 = vmatprep.subr.mxu0 0.0
  %1385 = vmatpush2.msra.mxu0 0.0
  %1386 = vmatprep.mubr.f32.mxu0 0.0
  %1387 = vmatmul.mubr.f32.gmra.mxu0 %v1320
  %v1388 = vpop.f32.mrf.mxu0
  %v1389 = vadd.f32 0.0, %v1388
  %v1390 = vpop.f32.mrf.mxu0
  %1391 = vdwg.mxu0
  %v1392 = vadd.f32 %v302, %v1389
  %v1393 = vadd.f32 %v1392, %v1231
  %v1394 = vtanh.pop %v1393
  %v1395 = vsub.f32 %v1394, %v1045
  %v1396 = vmul.f32 %v1312, %v1395
  %v1397 = vadd.f32 %v1045, %v1396
  %1398 = vrot.lane.b32.xlu0 %v1053, 112
  %v1399 = vpop.permute.xlu0 %1398
  %1401 = vrot.lane.b32.xlu0 %v1397, 112
  %v1402 = vpop.permute.xlu0 %1401
  %v1404 = vsel %vm699, 0.0, %v1402
  %v1405 = vsel %vm81, %v1404, %v1399
  %1406 = vmatprep.subr.mxu0 0.0
  %1407 = vmatpush1.msra.mxu0 %v335
  %1408 = vmatprep.subr.mxu0 0.0
  %1409 = vmatpush1.msra.mxu0 %v334
  %1410 = vmatprep.subr.mxu0 0.0
  %1411 = vmatpush1.msra.mxu0 %v333
  %1412 = vmatprep.subr.mxu0 0.0
  %1413 = vmatpush1.msra.mxu0 %v332
  %1414 = vmatprep.subr.mxu0 0.0
  %1415 = vmatpush1.msra.mxu0 %v331
  %1416 = vmatprep.subr.mxu0 0.0
  %1417 = vmatpush1.msra.mxu0 %v330
  %1418 = vmatprep.subr.mxu0 0.0
  %1419 = vmatpush1.msra.mxu0 %v329
  %1420 = vmatprep.subr.mxu0 0.0
  %1421 = vmatpush1.msra.mxu0 %v328
  %1422 = vmatprep.subr.mxu0 0.0
  %1423 = vmatpush1.msra.mxu0 %v327
  %1424 = vmatprep.subr.mxu0 0.0
  %1425 = vmatpush1.msra.mxu0 %v326
  %1426 = vmatprep.subr.mxu0 0.0
  %1427 = vmatpush1.msra.mxu0 %v325
  %1428 = vmatprep.subr.mxu0 0.0
  %1429 = vmatpush1.msra.mxu0 %v324
  %1430 = vmatprep.subr.mxu0 0.0
  %1431 = vmatpush1.msra.mxu0 %v323
  %1432 = vmatprep.subr.mxu0 0.0
  %1433 = vmatpush1.msra.mxu0 %v322
  %1434 = vmatprep.subr.mxu0 0.0
  %1435 = vmatpush1.msra.mxu0 %v321
  %1436 = vmatprep.subr.mxu0 0.0
  %1437 = vmatpush1.msra.mxu0 %v320
  %1438 = vmatprep.subr.mxu0 0.0
  %1439 = vmatpush2.msra.mxu0 0.0
  %1440 = vmatprep.subr.mxu0 0.0
  %1441 = vmatpush2.msra.mxu0 0.0
  %1442 = vmatprep.subr.mxu0 0.0
  %1443 = vmatpush2.msra.mxu0 0.0
  %1444 = vmatprep.subr.mxu0 0.0
  %1445 = vmatpush2.msra.mxu0 0.0
  %1446 = vmatprep.subr.mxu0 0.0
  %1447 = vmatpush2.msra.mxu0 0.0
  %1448 = vmatprep.subr.mxu0 0.0
  %1449 = vmatpush2.msra.mxu0 0.0
  %1450 = vmatprep.subr.mxu0 0.0
  %1451 = vmatpush2.msra.mxu0 0.0
  %1452 = vmatprep.subr.mxu0 0.0
  %1453 = vmatpush2.msra.mxu0 0.0
  %1454 = vmatprep.subr.mxu0 0.0
  %1455 = vmatpush2.msra.mxu0 0.0
  %1456 = vmatprep.subr.mxu0 0.0
  %1457 = vmatpush2.msra.mxu0 0.0
  %1458 = vmatprep.subr.mxu0 0.0
  %1459 = vmatpush2.msra.mxu0 0.0
  %1460 = vmatprep.subr.mxu0 0.0
  %1461 = vmatpush2.msra.mxu0 0.0
  %1462 = vmatprep.subr.mxu0 0.0
  %1463 = vmatpush2.msra.mxu0 0.0
  %1464 = vmatprep.subr.mxu0 0.0
  %1465 = vmatpush2.msra.mxu0 0.0
  %1466 = vmatprep.subr.mxu0 0.0
  %1467 = vmatpush2.msra.mxu0 0.0
  %1468 = vmatprep.subr.mxu0 0.0
  %1469 = vmatpush2.msra.mxu0 0.0
  %1470 = vmatprep.mubr.f32.mxu0 0.0
  %1471 = vmatmul.mubr.f32.gmra.mxu0 %v1405
  %v1472 = vpop.f32.mrf.mxu0
  %v1473 = vadd.f32 %v61, %v1472
  %v1474 = vpop.f32.mrf.mxu0
  %1475 = vdwg.mxu0
  %v1476 = vsel %vm80, %v1473, -inf
  %v1477 = vsel %vm407, %v1476, -inf
  %1478 = vmax.xlane.f32.xlu0 %v1477
  %v1479 = vpop.xlane.xlu0 %1478
  %v1480 = vsel %vm80, -inf, %v1473
  %v1481 = vsel %vm407, %v1480, -inf
  %1482 = vmax.xlane.f32.xlu0 %v1481
  %v1483 = vpop.xlane.xlu0 %1482
  %v1484 = vsel %vm80, %v1479, %v1483
  %v1485 = vsub.f32 %v1473, %v1484
  %v1486 = vmul.f32 %v1485, 1.442695
  %v1487 = vpow.pop %v1486
  %v1488 = vsel %vm80, %v1487, 0.0
  %v1489 = vsel %vm407, %v1488, 0.0
  %1490 = vadd.xlane.f32.xlu0 %v1489
  %v1491 = vpop.xlane.xlu0 %1490
  %v1492 = vsel %vm80, 0.0, %v1487
  %v1493 = vsel %vm407, %v1492, 0.0
  %1494 = vadd.xlane.f32.xlu0 %v1493
  %v1495 = vpop.xlane.xlu0 %1494
  %v1496 = vsel %vm80, %v1491, %v1495
  %v1497 = vrcp.pop %v1496
  %v1498 = vmul.f32 %v1487, %v1497
  %1500 = vrot.lane.b32.xlu0 %v1498, 16
  %v1501 = vpop.permute.xlu0 %1500
  %1503 = vrot.lane.b32.xlu0 %v1498, 32
  %v1504 = vpop.permute.xlu0 %1503
  %1506 = vrot.lane.b32.xlu0 %v1498, 48
  %v1507 = vpop.permute.xlu0 %1506
  %v1509 = vsel %vm407, %v1498, %v1501
  %v1510 = vsel %vm441, %v1509, %v1504
  %v1511 = vsel %vm443, %v1510, %v1507
  %v1512 = vmul.f32 %v1511, %v77
  %v1514 = vsel %vm454, %v1512, 0
  %1516 = vmatprep.subr.mxu0 0.0
  %1517 = vmatpush1.msra.mxu0 0.0
  %1518 = vmatprep.subr.mxu0 0.0
  %1519 = vmatpush1.msra.mxu0 0.0
  %1520 = vmatprep.subr.mxu0 0.0
  %1521 = vmatpush1.msra.mxu0 0.0
  %1522 = vmatprep.subr.mxu0 0.0
  %1523 = vmatpush1.msra.mxu0 0.0
  %1524 = vmatprep.subr.mxu0 0.0
  %1525 = vmatpush1.msra.mxu0 0.0
  %1526 = vmatprep.subr.mxu0 0.0
  %1527 = vmatpush1.msra.mxu0 0.0
  %1528 = vmatprep.subr.mxu0 0.0
  %1529 = vmatpush1.msra.mxu0 0.0
  %1530 = vmatprep.subr.mxu0 0.0
  %1531 = vmatpush1.msra.mxu0 0.0
  %1532 = vmatprep.subr.mxu0 0.0
  %1533 = vmatpush1.msra.mxu0 %v453
  %1534 = vmatprep.subr.mxu0 0.0
  %1535 = vmatpush1.msra.mxu0 %v452
  %1536 = vmatprep.subr.mxu0 0.0
  %1537 = vmatpush1.msra.mxu0 %v451
  %1538 = vmatprep.subr.mxu0 0.0
  %1539 = vmatpush1.msra.mxu0 %v450
  %1540 = vmatprep.subr.mxu0 0.0
  %1541 = vmatpush1.msra.mxu0 %v449
  %1542 = vmatprep.subr.mxu0 0.0
  %1543 = vmatpush1.msra.mxu0 %v448
  %1544 = vmatprep.subr.mxu0 0.0
  %1545 = vmatpush1.msra.mxu0 %v447
  %1546 = vmatprep.subr.mxu0 0.0
  %1547 = vmatpush1.msra.mxu0 %v446
  %1548 = vmatprep.subr.mxu0 0.0
  %1549 = vmatpush2.msra.mxu0 0.0
  %1550 = vmatprep.subr.mxu0 0.0
  %1551 = vmatpush2.msra.mxu0 0.0
  %1552 = vmatprep.subr.mxu0 0.0
  %1553 = vmatpush2.msra.mxu0 0.0
  %1554 = vmatprep.subr.mxu0 0.0
  %1555 = vmatpush2.msra.mxu0 0.0
  %1556 = vmatprep.subr.mxu0 0.0
  %1557 = vmatpush2.msra.mxu0 0.0
  %1558 = vmatprep.subr.mxu0 0.0
  %1559 = vmatpush2.msra.mxu0 0.0
  %1560 = vmatprep.subr.mxu0 0.0
  %1561 = vmatpush2.msra.mxu0 0.0
  %1562 = vmatprep.subr.mxu0 0.0
  %1563 = vmatpush2.msra.mxu0 0.0
  %1564 = vmatprep.subr.mxu0 0.0
  %1565 = vmatpush2.msra.mxu0 0.0
  %1566 = vmatprep.subr.mxu0 0.0
  %1567 = vmatpush2.msra.mxu0 0.0
  %1568 = vmatprep.subr.mxu0 0.0
  %1569 = vmatpush2.msra.mxu0 0.0
  %1570 = vmatprep.subr.mxu0 0.0
  %1571 = vmatpush2.msra.mxu0 0.0
  %1572 = vmatprep.subr.mxu0 0.0
  %1573 = vmatpush2.msra.mxu0 0.0
  %1574 = vmatprep.subr.mxu0 0.0
  %1575 = vmatpush2.msra.mxu0 0.0
  %1576 = vmatprep.subr.mxu0 0.0
  %1577 = vmatpush2.msra.mxu0 0.0
  %1578 = vmatprep.subr.mxu0 0.0
  %1579 = vmatpush2.msra.mxu0 0.0
  %1580 = vmatprep.mubr.f32.mxu0 0.0
  %1581 = vmatmul.mubr.f32.gmra.mxu0 %v1514
  %v1582 = vpop.f32.mrf.mxu0
  %v1583 = vadd.f32 0.0, %v1582
  %v1584 = vpop.f32.mrf.mxu0
  %1585 = vdwg.mxu0
  %v1586 = vsel %vm407, %v1397, 0
  %1588 = vmatprep.subr.mxu0 0.0
  %1589 = vmatpush1.msra.mxu0 0.0
  %1590 = vmatprep.subr.mxu0 0.0
  %1591 = vmatpush1.msra.mxu0 0.0
  %1592 = vmatprep.subr.mxu0 0.0
  %1593 = vmatpush1.msra.mxu0 0.0
  %1594 = vmatprep.subr.mxu0 0.0
  %1595 = vmatpush1.msra.mxu0 0.0
  %1596 = vmatprep.subr.mxu0 0.0
  %1597 = vmatpush1.msra.mxu0 0.0
  %1598 = vmatprep.subr.mxu0 0.0
  %1599 = vmatpush1.msra.mxu0 0.0
  %1600 = vmatprep.subr.mxu0 0.0
  %1601 = vmatpush1.msra.mxu0 0.0
  %1602 = vmatprep.subr.mxu0 0.0
  %1603 = vmatpush1.msra.mxu0 0.0
  %1604 = vmatprep.subr.mxu0 0.0
  %1605 = vmatpush1.msra.mxu0 0.0
  %1606 = vmatprep.subr.mxu0 0.0
  %1607 = vmatpush1.msra.mxu0 0.0
  %1608 = vmatprep.subr.mxu0 0.0
  %1609 = vmatpush1.msra.mxu0 0.0
  %1610 = vmatprep.subr.mxu0 0.0
  %1611 = vmatpush1.msra.mxu0 0.0
  %1612 = vmatprep.subr.mxu0 0.0
  %1613 = vmatpush1.msra.mxu0 0.0
  %1614 = vmatprep.subr.mxu0 0.0
  %1615 = vmatpush1.msra.mxu0 0.0
  %1616 = vmatprep.subr.mxu0 0.0
  %1617 = vmatpush1.msra.mxu0 %v529
  %1618 = vmatprep.subr.mxu0 0.0
  %1619 = vmatpush1.msra.mxu0 %v528
  %1620 = vmatprep.subr.mxu0 0.0
  %1621 = vmatpush2.msra.mxu0 0.0
  %1622 = vmatprep.subr.mxu0 0.0
  %1623 = vmatpush2.msra.mxu0 0.0
  %1624 = vmatprep.subr.mxu0 0.0
  %1625 = vmatpush2.msra.mxu0 0.0
  %1626 = vmatprep.subr.mxu0 0.0
  %1627 = vmatpush2.msra.mxu0 0.0
  %1628 = vmatprep.subr.mxu0 0.0
  %1629 = vmatpush2.msra.mxu0 0.0
  %1630 = vmatprep.subr.mxu0 0.0
  %1631 = vmatpush2.msra.mxu0 0.0
  %1632 = vmatprep.subr.mxu0 0.0
  %1633 = vmatpush2.msra.mxu0 0.0
  %1634 = vmatprep.subr.mxu0 0.0
  %1635 = vmatpush2.msra.mxu0 0.0
  %1636 = vmatprep.subr.mxu0 0.0
  %1637 = vmatpush2.msra.mxu0 0.0
  %1638 = vmatprep.subr.mxu0 0.0
  %1639 = vmatpush2.msra.mxu0 0.0
  %1640 = vmatprep.subr.mxu0 0.0
  %1641 = vmatpush2.msra.mxu0 0.0
  %1642 = vmatprep.subr.mxu0 0.0
  %1643 = vmatpush2.msra.mxu0 0.0
  %1644 = vmatprep.subr.mxu0 0.0
  %1645 = vmatpush2.msra.mxu0 0.0
  %1646 = vmatprep.subr.mxu0 0.0
  %1647 = vmatpush2.msra.mxu0 0.0
  %1648 = vmatprep.subr.mxu0 0.0
  %1649 = vmatpush2.msra.mxu0 0.0
  %1650 = vmatprep.subr.mxu0 0.0
  %1651 = vmatpush2.msra.mxu0 0.0
  %1652 = vmatprep.mubr.f32.mxu0 0.0
  %1653 = vmatmul.mubr.f32.gmra.mxu0 %v1586
  %v1654 = vpop.f32.mrf.mxu0
  %v1655 = vadd.f32 0.0, %v1654
  %v1656 = vpop.f32.mrf.mxu0
  %1657 = vdwg.mxu0
  %v1658 = vadd.f32 %v201, %v1655
  %v1659 = vxor.u32 %v1658, 2147483648
  %v1660 = vmul.f32 %v1659, 1.442695
  %v1661 = vpow.pop %v1660
  %v1662 = vadd.f32 %v1661, 1.0
  %v1663 = vrcp.pop %v1662
  %v1664 = vmul.f32 1.0, %v1663
  %1665 = vrot.lane.b32.xlu0 %v1397, 16
  %v1666 = vpop.permute.xlu0 %1665
  %v1668 = vmul.f32 %v1664, %v1666
  %1670 = vrot.lane.b32.xlu0 %v1668, 112
  %v1671 = vpop.permute.xlu0 %1670
  %v1672 = vsel %vm407, %v1671, 0
  %1674 = vmatprep.subr.mxu0 0.0
  %1675 = vmatpush1.msra.mxu0 0.0
  %1676 = vmatprep.subr.mxu0 0.0
  %1677 = vmatpush1.msra.mxu0 0.0
  %1678 = vmatprep.subr.mxu0 0.0
  %1679 = vmatpush1.msra.mxu0 0.0
  %1680 = vmatprep.subr.mxu0 0.0
  %1681 = vmatpush1.msra.mxu0 0.0
  %1682 = vmatprep.subr.mxu0 0.0
  %1683 = vmatpush1.msra.mxu0 0.0
  %1684 = vmatprep.subr.mxu0 0.0
  %1685 = vmatpush1.msra.mxu0 0.0
  %1686 = vmatprep.subr.mxu0 0.0
  %1687 = vmatpush1.msra.mxu0 0.0
  %1688 = vmatprep.subr.mxu0 0.0
  %1689 = vmatpush1.msra.mxu0 0.0
  %1690 = vmatprep.subr.mxu0 0.0
  %1691 = vmatpush1.msra.mxu0 0.0
  %1692 = vmatprep.subr.mxu0 0.0
  %1693 = vmatpush1.msra.mxu0 0.0
  %1694 = vmatprep.subr.mxu0 0.0
  %1695 = vmatpush1.msra.mxu0 0.0
  %1696 = vmatprep.subr.mxu0 0.0
  %1697 = vmatpush1.msra.mxu0 0.0
  %1698 = vmatprep.subr.mxu0 0.0
  %1699 = vmatpush1.msra.mxu0 0.0
  %1700 = vmatprep.subr.mxu0 0.0
  %1701 = vmatpush1.msra.mxu0 0.0
  %1702 = vmatprep.subr.mxu0 0.0
  %1703 = vmatpush1.msra.mxu0 %v612
  %1704 = vmatprep.subr.mxu0 0.0
  %1705 = vmatpush1.msra.mxu0 %v611
  %1706 = vmatprep.subr.mxu0 0.0
  %1707 = vmatpush2.msra.mxu0 0.0
  %1708 = vmatprep.subr.mxu0 0.0
  %1709 = vmatpush2.msra.mxu0 0.0
  %1710 = vmatprep.subr.mxu0 0.0
  %1711 = vmatpush2.msra.mxu0 0.0
  %1712 = vmatprep.subr.mxu0 0.0
  %1713 = vmatpush2.msra.mxu0 0.0
  %1714 = vmatprep.subr.mxu0 0.0
  %1715 = vmatpush2.msra.mxu0 0.0
  %1716 = vmatprep.subr.mxu0 0.0
  %1717 = vmatpush2.msra.mxu0 0.0
  %1718 = vmatprep.subr.mxu0 0.0
  %1719 = vmatpush2.msra.mxu0 0.0
  %1720 = vmatprep.subr.mxu0 0.0
  %1721 = vmatpush2.msra.mxu0 0.0
  %1722 = vmatprep.subr.mxu0 0.0
  %1723 = vmatpush2.msra.mxu0 0.0
  %1724 = vmatprep.subr.mxu0 0.0
  %1725 = vmatpush2.msra.mxu0 0.0
  %1726 = vmatprep.subr.mxu0 0.0
  %1727 = vmatpush2.msra.mxu0 0.0
  %1728 = vmatprep.subr.mxu0 0.0
  %1729 = vmatpush2.msra.mxu0 0.0
  %1730 = vmatprep.subr.mxu0 0.0
  %1731 = vmatpush2.msra.mxu0 0.0
  %1732 = vmatprep.subr.mxu0 0.0
  %1733 = vmatpush2.msra.mxu0 0.0
  %1734 = vmatprep.subr.mxu0 0.0
  %1735 = vmatpush2.msra.mxu0 0.0
  %1736 = vmatprep.subr.mxu0 0.0
  %1737 = vmatpush2.msra.mxu0 0.0
  %1738 = vmatprep.mubr.f32.mxu0 0.0
  %1739 = vmatmul.mubr.f32.gmra.mxu0 %v1672
  %v1740 = vpop.f32.mrf.mxu0
  %v1741 = vadd.f32 0.0, %v1740
  %v1742 = vpop.f32.mrf.mxu0
  %1743 = vdwg.mxu0
  %v1744 = vadd.f32 %v307, %v1741
  %v1745 = vadd.f32 %v1744, %v1583
  %v1746 = vtanh.pop %v1745
  %v1747 = vsub.f32 %v1746, %v1397
  %v1748 = vmul.f32 %v1664, %v1747
  %v1749 = vadd.f32 %v1397, %v1748
  %1750 = vrot.lane.b32.xlu0 %v1405, 112
  %v1751 = vpop.permute.xlu0 %1750
  %1753 = vrot.lane.b32.xlu0 %v1749, 112
  %v1754 = vpop.permute.xlu0 %1753
  %v1756 = vsel %vm699, 0.0, %v1754
  %v1757 = vsel %vm81, %v1756, %v1751
  %1758 = vmatprep.subr.mxu0 0.0
  %1759 = vmatpush1.msra.mxu0 %v335
  %1760 = vmatprep.subr.mxu0 0.0
  %1761 = vmatpush1.msra.mxu0 %v334
  %1762 = vmatprep.subr.mxu0 0.0
  %1763 = vmatpush1.msra.mxu0 %v333
  %1764 = vmatprep.subr.mxu0 0.0
  %1765 = vmatpush1.msra.mxu0 %v332
  %1766 = vmatprep.subr.mxu0 0.0
  %1767 = vmatpush1.msra.mxu0 %v331
  %1768 = vmatprep.subr.mxu0 0.0
  %1769 = vmatpush1.msra.mxu0 %v330
  %1770 = vmatprep.subr.mxu0 0.0
  %1771 = vmatpush1.msra.mxu0 %v329
  %1772 = vmatprep.subr.mxu0 0.0
  %1773 = vmatpush1.msra.mxu0 %v328
  %1774 = vmatprep.subr.mxu0 0.0
  %1775 = vmatpush1.msra.mxu0 %v327
  %1776 = vmatprep.subr.mxu0 0.0
  %1777 = vmatpush1.msra.mxu0 %v326
  %1778 = vmatprep.subr.mxu0 0.0
  %1779 = vmatpush1.msra.mxu0 %v325
  %1780 = vmatprep.subr.mxu0 0.0
  %1781 = vmatpush1.msra.mxu0 %v324
  %1782 = vmatprep.subr.mxu0 0.0
  %1783 = vmatpush1.msra.mxu0 %v323
  %1784 = vmatprep.subr.mxu0 0.0
  %1785 = vmatpush1.msra.mxu0 %v322
  %1786 = vmatprep.subr.mxu0 0.0
  %1787 = vmatpush1.msra.mxu0 %v321
  %1788 = vmatprep.subr.mxu0 0.0
  %1789 = vmatpush1.msra.mxu0 %v320
  %1790 = vmatprep.subr.mxu0 0.0
  %1791 = vmatpush2.msra.mxu0 0.0
  %1792 = vmatprep.subr.mxu0 0.0
  %1793 = vmatpush2.msra.mxu0 0.0
  %1794 = vmatprep.subr.mxu0 0.0
  %1795 = vmatpush2.msra.mxu0 0.0
  %1796 = vmatprep.subr.mxu0 0.0
  %1797 = vmatpush2.msra.mxu0 0.0
  %1798 = vmatprep.subr.mxu0 0.0
  %1799 = vmatpush2.msra.mxu0 0.0
  %1800 = vmatprep.subr.mxu0 0.0
  %1801 = vmatpush2.msra.mxu0 0.0
  %1802 = vmatprep.subr.mxu0 0.0
  %1803 = vmatpush2.msra.mxu0 0.0
  %1804 = vmatprep.subr.mxu0 0.0
  %1805 = vmatpush2.msra.mxu0 0.0
  %1806 = vmatprep.subr.mxu0 0.0
  %1807 = vmatpush2.msra.mxu0 0.0
  %1808 = vmatprep.subr.mxu0 0.0
  %1809 = vmatpush2.msra.mxu0 0.0
  %1810 = vmatprep.subr.mxu0 0.0
  %1811 = vmatpush2.msra.mxu0 0.0
  %1812 = vmatprep.subr.mxu0 0.0
  %1813 = vmatpush2.msra.mxu0 0.0
  %1814 = vmatprep.subr.mxu0 0.0
  %1815 = vmatpush2.msra.mxu0 0.0
  %1816 = vmatprep.subr.mxu0 0.0
  %1817 = vmatpush2.msra.mxu0 0.0
  %1818 = vmatprep.subr.mxu0 0.0
  %1819 = vmatpush2.msra.mxu0 0.0
  %1820 = vmatprep.subr.mxu0 0.0
  %1821 = vmatpush2.msra.mxu0 0.0
  %1822 = vmatprep.mubr.f32.mxu0 0.0
  %1823 = vmatmul.mubr.f32.gmra.mxu0 %v1757
  %v1824 = vpop.f32.mrf.mxu0
  %v1825 = vadd.f32 %v61, %v1824
  %v1826 = vpop.f32.mrf.mxu0
  %1827 = vdwg.mxu0
  %v1828 = vsel %vm80, %v1825, -inf
  %v1829 = vsel %vm407, %v1828, -inf
  %1830 = vmax.xlane.f32.xlu0 %v1829
  %v1831 = vpop.xlane.xlu0 %1830
  %v1832 = vsel %vm80, -inf, %v1825
  %v1833 = vsel %vm407, %v1832, -inf
  %1834 = vmax.xlane.f32.xlu0 %v1833
  %v1835 = vpop.xlane.xlu0 %1834
  %v1836 = vsel %vm80, %v1831, %v1835
  %v1837 = vsub.f32 %v1825, %v1836
  %v1838 = vmul.f32 %v1837, 1.442695
  %v1839 = vpow.pop %v1838
  %v1840 = vsel %vm80, %v1839, 0.0
  %v1841 = vsel %vm407, %v1840, 0.0
  %1842 = vadd.xlane.f32.xlu0 %v1841
  %v1843 = vpop.xlane.xlu0 %1842
  %v1844 = vsel %vm80, 0.0, %v1839
  %v1845 = vsel %vm407, %v1844, 0.0
  %1846 = vadd.xlane.f32.xlu0 %v1845
  %v1847 = vpop.xlane.xlu0 %1846
  %v1848 = vsel %vm80, %v1843, %v1847
  %v1849 = vrcp.pop %v1848
  %v1850 = vmul.f32 %v1839, %v1849
  %1852 = vrot.lane.b32.xlu0 %v1850, 16
  %v1853 = vpop.permute.xlu0 %1852
  %1855 = vrot.lane.b32.xlu0 %v1850, 32
  %v1856 = vpop.permute.xlu0 %1855
  %1858 = vrot.lane.b32.xlu0 %v1850, 48
  %v1859 = vpop.permute.xlu0 %1858
  %v1861 = vsel %vm407, %v1850, %v1853
  %v1862 = vsel %vm441, %v1861, %v1856
  %v1863 = vsel %vm443, %v1862, %v1859
  %v1864 = vmul.f32 %v1863, %v77
  %v1866 = vsel %vm454, %v1864, 0
  %1868 = vmatprep.subr.mxu0 0.0
  %1869 = vmatpush1.msra.mxu0 0.0
  %1870 = vmatprep.subr.mxu0 0.0
  %1871 = vmatpush1.msra.mxu0 0.0
  %1872 = vmatprep.subr.mxu0 0.0
  %1873 = vmatpush1.msra.mxu0 0.0
  %1874 = vmatprep.subr.mxu0 0.0
  %1875 = vmatpush1.msra.mxu0 0.0
  %1876 = vmatprep.subr.mxu0 0.0
  %1877 = vmatpush1.msra.mxu0 0.0
  %1878 = vmatprep.subr.mxu0 0.0
  %1879 = vmatpush1.msra.mxu0 0.0
  %1880 = vmatprep.subr.mxu0 0.0
  %1881 = vmatpush1.msra.mxu0 0.0
  %1882 = vmatprep.subr.mxu0 0.0
  %1883 = vmatpush1.msra.mxu0 0.0
  %1884 = vmatprep.subr.mxu0 0.0
  %1885 = vmatpush1.msra.mxu0 %v453
  %1886 = vmatprep.subr.mxu0 0.0
  %1887 = vmatpush1.msra.mxu0 %v452
  %1888 = vmatprep.subr.mxu0 0.0
  %1889 = vmatpush1.msra.mxu0 %v451
  %1890 = vmatprep.subr.mxu0 0.0
  %1891 = vmatpush1.msra.mxu0 %v450
  %1892 = vmatprep.subr.mxu0 0.0
  %1893 = vmatpush1.msra.mxu0 %v449
  %1894 = vmatprep.subr.mxu0 0.0
  %1895 = vmatpush1.msra.mxu0 %v448
  %1896 = vmatprep.subr.mxu0 0.0
  %1897 = vmatpush1.msra.mxu0 %v447
  %1898 = vmatprep.subr.mxu0 0.0
  %1899 = vmatpush1.msra.mxu0 %v446
  %1900 = vmatprep.subr.mxu0 0.0
  %1901 = vmatpush2.msra.mxu0 0.0
  %1902 = vmatprep.subr.mxu0 0.0
  %1903 = vmatpush2.msra.mxu0 0.0
  %1904 = vmatprep.subr.mxu0 0.0
  %1905 = vmatpush2.msra.mxu0 0.0
  %1906 = vmatprep.subr.mxu0 0.0
  %1907 = vmatpush2.msra.mxu0 0.0
  %1908 = vmatprep.subr.mxu0 0.0
  %1909 = vmatpush2.msra.mxu0 0.0
  %1910 = vmatprep.subr.mxu0 0.0
  %1911 = vmatpush2.msra.mxu0 0.0
  %1912 = vmatprep.subr.mxu0 0.0
  %1913 = vmatpush2.msra.mxu0 0.0
  %1914 = vmatprep.subr.mxu0 0.0
  %1915 = vmatpush2.msra.mxu0 0.0
  %1916 = vmatprep.subr.mxu0 0.0
  %1917 = vmatpush2.msra.mxu0 0.0
  %1918 = vmatprep.subr.mxu0 0.0
  %1919 = vmatpush2.msra.mxu0 0.0
  %1920 = vmatprep.subr.mxu0 0.0
  %1921 = vmatpush2.msra.mxu0 0.0
  %1922 = vmatprep.subr.mxu0 0.0
  %1923 = vmatpush2.msra.mxu0 0.0
  %1924 = vmatprep.subr.mxu0 0.0
  %1925 = vmatpush2.msra.mxu0 0.0
  %1926 = vmatprep.subr.mxu0 0.0
  %1927 = vmatpush2.msra.mxu0 0.0
  %1928 = vmatprep.subr.mxu0 0.0
  %1929 = vmatpush2.msra.mxu0 0.0
  %1930 = vmatprep.subr.mxu0 0.0
  %1931 = vmatpush2.msra.mxu0 0.0
  %1932 = vmatprep.mubr.f32.mxu0 0.0
  %1933 = vmatmul.mubr.f32.gmra.mxu0 %v1866
  %v1934 = vpop.f32.mrf.mxu0
  %v1935 = vadd.f32 0.0, %v1934
  %v1936 = vpop.f32.mrf.mxu0
  %1937 = vdwg.mxu0
  %v1938 = vsel %vm407, %v1749, 0
  %1940 = vmatprep.subr.mxu0 0.0
  %1941 = vmatpush1.msra.mxu0 0.0
  %1942 = vmatprep.subr.mxu0 0.0
  %1943 = vmatpush1.msra.mxu0 0.0
  %1944 = vmatprep.subr.mxu0 0.0
  %1945 = vmatpush1.msra.mxu0 0.0
  %1946 = vmatprep.subr.mxu0 0.0
  %1947 = vmatpush1.msra.mxu0 0.0
  %1948 = vmatprep.subr.mxu0 0.0
  %1949 = vmatpush1.msra.mxu0 0.0
  %1950 = vmatprep.subr.mxu0 0.0
  %1951 = vmatpush1.msra.mxu0 0.0
  %1952 = vmatprep.subr.mxu0 0.0
  %1953 = vmatpush1.msra.mxu0 0.0
  %1954 = vmatprep.subr.mxu0 0.0
  %1955 = vmatpush1.msra.mxu0 0.0
  %1956 = vmatprep.subr.mxu0 0.0
  %1957 = vmatpush1.msra.mxu0 0.0
  %1958 = vmatprep.subr.mxu0 0.0
  %1959 = vmatpush1.msra.mxu0 0.0
  %1960 = vmatprep.subr.mxu0 0.0
  %1961 = vmatpush1.msra.mxu0 0.0
  %1962 = vmatprep.subr.mxu0 0.0
  %1963 = vmatpush1.msra.mxu0 0.0
  %1964 = vmatprep.subr.mxu0 0.0
  %1965 = vmatpush1.msra.mxu0 0.0
  %1966 = vmatprep.subr.mxu0 0.0
  %1967 = vmatpush1.msra.mxu0 0.0
  %1968 = vmatprep.subr.mxu0 0.0
  %1969 = vmatpush1.msra.mxu0 %v529
  %1970 = vmatprep.subr.mxu0 0.0
  %1971 = vmatpush1.msra.mxu0 %v528
  %1972 = vmatprep.subr.mxu0 0.0
  %1973 = vmatpush2.msra.mxu0 0.0
  %1974 = vmatprep.subr.mxu0 0.0
  %1975 = vmatpush2.msra.mxu0 0.0
  %1976 = vmatprep.subr.mxu0 0.0
  %1977 = vmatpush2.msra.mxu0 0.0
  %1978 = vmatprep.subr.mxu0 0.0
  %1979 = vmatpush2.msra.mxu0 0.0
  %1980 = vmatprep.subr.mxu0 0.0
  %1981 = vmatpush2.msra.mxu0 0.0
  %1982 = vmatprep.subr.mxu0 0.0
  %1983 = vmatpush2.msra.mxu0 0.0
  %1984 = vmatprep.subr.mxu0 0.0
  %1985 = vmatpush2.msra.mxu0 0.0
  %1986 = vmatprep.subr.mxu0 0.0
  %1987 = vmatpush2.msra.mxu0 0.0
  %1988 = vmatprep.subr.mxu0 0.0
  %1989 = vmatpush2.msra.mxu0 0.0
  %1990 = vmatprep.subr.mxu0 0.0
  %1991 = vmatpush2.msra.mxu0 0.0
  %1992 = vmatprep.subr.mxu0 0.0
  %1993 = vmatpush2.msra.mxu0 0.0
  %1994 = vmatprep.subr.mxu0 0.0
  %1995 = vmatpush2.msra.mxu0 0.0
  %1996 = vmatprep.subr.mxu0 0.0
  %1997 = vmatpush2.msra.mxu0 0.0
  %1998 = vmatprep.subr.mxu0 0.0
  %1999 = vmatpush2.msra.mxu0 0.0
  %2000 = vmatprep.subr.mxu0 0.0
  %2001 = vmatpush2.msra.mxu0 0.0
  %2002 = vmatprep.subr.mxu0 0.0
  %2003 = vmatpush2.msra.mxu0 0.0
  %2004 = vmatprep.mubr.f32.mxu0 0.0
  %2005 = vmatmul.mubr.f32.gmra.mxu0 %v1938
  %v2006 = vpop.f32.mrf.mxu0
  %v2007 = vadd.f32 0.0, %v2006
  %v2008 = vpop.f32.mrf.mxu0
  %2009 = vdwg.mxu0
  %v2010 = vadd.f32 %v206, %v2007
  %v2011 = vxor.u32 %v2010, 2147483648
  %v2012 = vmul.f32 %v2011, 1.442695
  %v2013 = vpow.pop %v2012
  %v2014 = vadd.f32 %v2013, 1.0
  %v2015 = vrcp.pop %v2014
  %v2016 = vmul.f32 1.0, %v2015
  %2017 = vrot.lane.b32.xlu0 %v1749, 16
  %v2018 = vpop.permute.xlu0 %2017
  %v2020 = vmul.f32 %v2016, %v2018
  %2022 = vrot.lane.b32.xlu0 %v2020, 112
  %v2023 = vpop.permute.xlu0 %2022
  %v2024 = vsel %vm407, %v2023, 0
  %2026 = vmatprep.subr.mxu0 0.0
  %2027 = vmatpush1.msra.mxu0 0.0
  %2028 = vmatprep.subr.mxu0 0.0
  %2029 = vmatpush1.msra.mxu0 0.0
  %2030 = vmatprep.subr.mxu0 0.0
  %2031 = vmatpush1.msra.mxu0 0.0
  %2032 = vmatprep.subr.mxu0 0.0
  %2033 = vmatpush1.msra.mxu0 0.0
  %2034 = vmatprep.subr.mxu0 0.0
  %2035 = vmatpush1.msra.mxu0 0.0
  %2036 = vmatprep.subr.mxu0 0.0
  %2037 = vmatpush1.msra.mxu0 0.0
  %2038 = vmatprep.subr.mxu0 0.0
  %2039 = vmatpush1.msra.mxu0 0.0
  %2040 = vmatprep.subr.mxu0 0.0
  %2041 = vmatpush1.msra.mxu0 0.0
  %2042 = vmatprep.subr.mxu0 0.0
  %2043 = vmatpush1.msra.mxu0 0.0
  %2044 = vmatprep.subr.mxu0 0.0
  %2045 = vmatpush1.msra.mxu0 0.0
  %2046 = vmatprep.subr.mxu0 0.0
  %2047 = vmatpush1.msra.mxu0 0.0
  %2048 = vmatprep.subr.mxu0 0.0
  %2049 = vmatpush1.msra.mxu0 0.0
  %2050 = vmatprep.subr.mxu0 0.0
  %2051 = vmatpush1.msra.mxu0 0.0
  %2052 = vmatprep.subr.mxu0 0.0
  %2053 = vmatpush1.msra.mxu0 0.0
  %2054 = vmatprep.subr.mxu0 0.0
  %2055 = vmatpush1.msra.mxu0 %v612
  %2056 = vmatprep.subr.mxu0 0.0
  %2057 = vmatpush1.msra.mxu0 %v611
  %2058 = vmatprep.subr.mxu0 0.0
  %2059 = vmatpush2.msra.mxu0 0.0
  %2060 = vmatprep.subr.mxu0 0.0
  %2061 = vmatpush2.msra.mxu0 0.0
  %2062 = vmatprep.subr.mxu0 0.0
  %2063 = vmatpush2.msra.mxu0 0.0
  %2064 = vmatprep.subr.mxu0 0.0
  %2065 = vmatpush2.msra.mxu0 0.0
  %2066 = vmatprep.subr.mxu0 0.0
  %2067 = vmatpush2.msra.mxu0 0.0
  %2068 = vmatprep.subr.mxu0 0.0
  %2069 = vmatpush2.msra.mxu0 0.0
  %2070 = vmatprep.subr.mxu0 0.0
  %2071 = vmatpush2.msra.mxu0 0.0
  %2072 = vmatprep.subr.mxu0 0.0
  %2073 = vmatpush2.msra.mxu0 0.0
  %2074 = vmatprep.subr.mxu0 0.0
  %2075 = vmatpush2.msra.mxu0 0.0
  %2076 = vmatprep.subr.mxu0 0.0
  %2077 = vmatpush2.msra.mxu0 0.0
  %2078 = vmatprep.subr.mxu0 0.0
  %2079 = vmatpush2.msra.mxu0 0.0
  %2080 = vmatprep.subr.mxu0 0.0
  %2081 = vmatpush2.msra.mxu0 0.0
  %2082 = vmatprep.subr.mxu0 0.0
  %2083 = vmatpush2.msra.mxu0 0.0
  %2084 = vmatprep.subr.mxu0 0.0
  %2085 = vmatpush2.msra.mxu0 0.0
  %2086 = vmatprep.subr.mxu0 0.0
  %2087 = vmatpush2.msra.mxu0 0.0
  %2088 = vmatprep.subr.mxu0 0.0
  %2089 = vmatpush2.msra.mxu0 0.0
  %2090 = vmatprep.mubr.f32.mxu0 0.0
  %2091 = vmatmul.mubr.f32.gmra.mxu0 %v2024
  %v2092 = vpop.f32.mrf.mxu0
  %v2093 = vadd.f32 0.0, %v2092
  %v2094 = vpop.f32.mrf.mxu0
  %2095 = vdwg.mxu0
  %v2096 = vadd.f32 %v312, %v2093
  %v2097 = vadd.f32 %v2096, %v1935
  %v2098 = vtanh.pop %v2097
  %v2099 = vsub.f32 %v2098, %v1749
  %v2100 = vmul.f32 %v2016, %v2099
  %v2101 = vadd.f32 %v1749, %v2100
  %2102 = vrot.lane.b32.xlu0 %v1757, 112
  %v2103 = vpop.permute.xlu0 %2102
  %2105 = vrot.lane.b32.xlu0 %v2101, 112
  %v2106 = vpop.permute.xlu0 %2105
  %v2108 = vsel %vm699, 0.0, %v2106
  %v2109 = vsel %vm81, %v2108, %v2103
  %2110 = vmatprep.subr.mxu0 0.0
  %2111 = vmatpush1.msra.mxu0 %v335
  %2112 = vmatprep.subr.mxu0 0.0
  %2113 = vmatpush1.msra.mxu0 %v334
  %2114 = vmatprep.subr.mxu0 0.0
  %2115 = vmatpush1.msra.mxu0 %v333
  %2116 = vmatprep.subr.mxu0 0.0
  %2117 = vmatpush1.msra.mxu0 %v332
  %2118 = vmatprep.subr.mxu0 0.0
  %2119 = vmatpush1.msra.mxu0 %v331
  %2120 = vmatprep.subr.mxu0 0.0
  %2121 = vmatpush1.msra.mxu0 %v330
  %2122 = vmatprep.subr.mxu0 0.0
  %2123 = vmatpush1.msra.mxu0 %v329
  %2124 = vmatprep.subr.mxu0 0.0
  %2125 = vmatpush1.msra.mxu0 %v328
  %2126 = vmatprep.subr.mxu0 0.0
  %2127 = vmatpush1.msra.mxu0 %v327
  %2128 = vmatprep.subr.mxu0 0.0
  %2129 = vmatpush1.msra.mxu0 %v326
  %2130 = vmatprep.subr.mxu0 0.0
  %2131 = vmatpush1.msra.mxu0 %v325
  %2132 = vmatprep.subr.mxu0 0.0
  %2133 = vmatpush1.msra.mxu0 %v324
  %2134 = vmatprep.subr.mxu0 0.0
  %2135 = vmatpush1.msra.mxu0 %v323
  %2136 = vmatprep.subr.mxu0 0.0
  %2137 = vmatpush1.msra.mxu0 %v322
  %2138 = vmatprep.subr.mxu0 0.0
  %2139 = vmatpush1.msra.mxu0 %v321
  %2140 = vmatprep.subr.mxu0 0.0
  %2141 = vmatpush1.msra.mxu0 %v320
  %2142 = vmatprep.subr.mxu0 0.0
  %2143 = vmatpush2.msra.mxu0 0.0
  %2144 = vmatprep.subr.mxu0 0.0
  %2145 = vmatpush2.msra.mxu0 0.0
  %2146 = vmatprep.subr.mxu0 0.0
  %2147 = vmatpush2.msra.mxu0 0.0
  %2148 = vmatprep.subr.mxu0 0.0
  %2149 = vmatpush2.msra.mxu0 0.0
  %2150 = vmatprep.subr.mxu0 0.0
  %2151 = vmatpush2.msra.mxu0 0.0
  %2152 = vmatprep.subr.mxu0 0.0
  %2153 = vmatpush2.msra.mxu0 0.0
  %2154 = vmatprep.subr.mxu0 0.0
  %2155 = vmatpush2.msra.mxu0 0.0
  %2156 = vmatprep.subr.mxu0 0.0
  %2157 = vmatpush2.msra.mxu0 0.0
  %2158 = vmatprep.subr.mxu0 0.0
  %2159 = vmatpush2.msra.mxu0 0.0
  %2160 = vmatprep.subr.mxu0 0.0
  %2161 = vmatpush2.msra.mxu0 0.0
  %2162 = vmatprep.subr.mxu0 0.0
  %2163 = vmatpush2.msra.mxu0 0.0
  %2164 = vmatprep.subr.mxu0 0.0
  %2165 = vmatpush2.msra.mxu0 0.0
  %2166 = vmatprep.subr.mxu0 0.0
  %2167 = vmatpush2.msra.mxu0 0.0
  %2168 = vmatprep.subr.mxu0 0.0
  %2169 = vmatpush2.msra.mxu0 0.0
  %2170 = vmatprep.subr.mxu0 0.0
  %2171 = vmatpush2.msra.mxu0 0.0
  %2172 = vmatprep.subr.mxu0 0.0
  %2173 = vmatpush2.msra.mxu0 0.0
  %2174 = vmatprep.mubr.f32.mxu0 0.0
  %2175 = vmatmul.mubr.f32.gmra.mxu0 %v2109
  %v2176 = vpop.f32.mrf.mxu0
  %v2177 = vadd.f32 %v61, %v2176
  %v2178 = vpop.f32.mrf.mxu0
  %2179 = vdwg.mxu0
  %v2180 = vsel %vm80, %v2177, -inf
  %v2181 = vsel %vm407, %v2180, -inf
  %2182 = vmax.xlane.f32.xlu0 %v2181
  %v2183 = vpop.xlane.xlu0 %2182
  %v2184 = vsel %vm80, -inf, %v2177
  %v2185 = vsel %vm407, %v2184, -inf
  %2186 = vmax.xlane.f32.xlu0 %v2185
  %v2187 = vpop.xlane.xlu0 %2186
  %v2188 = vsel %vm80, %v2183, %v2187
  %v2189 = vsub.f32 %v2177, %v2188
  %v2190 = vmul.f32 %v2189, 1.442695
  %v2191 = vpow.pop %v2190
  %v2192 = vsel %vm80, %v2191, 0.0
  %v2193 = vsel %vm407, %v2192, 0.0
  %2194 = vadd.xlane.f32.xlu0 %v2193
  %v2195 = vpop.xlane.xlu0 %2194
  %v2196 = vsel %vm80, 0.0, %v2191
  %v2197 = vsel %vm407, %v2196, 0.0
  %2198 = vadd.xlane.f32.xlu0 %v2197
  %v2199 = vpop.xlane.xlu0 %2198
  %v2200 = vsel %vm80, %v2195, %v2199
  %v2201 = vrcp.pop %v2200
  %v2202 = vmul.f32 %v2191, %v2201
  %2204 = vrot.lane.b32.xlu0 %v2202, 16
  %v2205 = vpop.permute.xlu0 %2204
  %2207 = vrot.lane.b32.xlu0 %v2202, 32
  %v2208 = vpop.permute.xlu0 %2207
  %2210 = vrot.lane.b32.xlu0 %v2202, 48
  %v2211 = vpop.permute.xlu0 %2210
  %v2213 = vsel %vm407, %v2202, %v2205
  %v2214 = vsel %vm441, %v2213, %v2208
  %v2215 = vsel %vm443, %v2214, %v2211
  %v2216 = vmul.f32 %v2215, %v77
  %v2218 = vsel %vm454, %v2216, 0
  %2220 = vmatprep.subr.mxu0 0.0
  %2221 = vmatpush1.msra.mxu0 0.0
  %2222 = vmatprep.subr.mxu0 0.0
  %2223 = vmatpush1.msra.mxu0 0.0
  %2224 = vmatprep.subr.mxu0 0.0
  %2225 = vmatpush1.msra.mxu0 0.0
  %2226 = vmatprep.subr.mxu0 0.0
  %2227 = vmatpush1.msra.mxu0 0.0
  %2228 = vmatprep.subr.mxu0 0.0
  %2229 = vmatpush1.msra.mxu0 0.0
  %2230 = vmatprep.subr.mxu0 0.0
  %2231 = vmatpush1.msra.mxu0 0.0
  %2232 = vmatprep.subr.mxu0 0.0
  %2233 = vmatpush1.msra.mxu0 0.0
  %2234 = vmatprep.subr.mxu0 0.0
  %2235 = vmatpush1.msra.mxu0 0.0
  %2236 = vmatprep.subr.mxu0 0.0
  %2237 = vmatpush1.msra.mxu0 %v453
  %2238 = vmatprep.subr.mxu0 0.0
  %2239 = vmatpush1.msra.mxu0 %v452
  %2240 = vmatprep.subr.mxu0 0.0
  %2241 = vmatpush1.msra.mxu0 %v451
  %2242 = vmatprep.subr.mxu0 0.0
  %2243 = vmatpush1.msra.mxu0 %v450
  %2244 = vmatprep.subr.mxu0 0.0
  %2245 = vmatpush1.msra.mxu0 %v449
  %2246 = vmatprep.subr.mxu0 0.0
  %2247 = vmatpush1.msra.mxu0 %v448
  %2248 = vmatprep.subr.mxu0 0.0
  %2249 = vmatpush1.msra.mxu0 %v447
  %2250 = vmatprep.subr.mxu0 0.0
  %2251 = vmatpush1.msra.mxu0 %v446
  %2252 = vmatprep.subr.mxu0 0.0
  %2253 = vmatpush2.msra.mxu0 0.0
  %2254 = vmatprep.subr.mxu0 0.0
  %2255 = vmatpush2.msra.mxu0 0.0
  %2256 = vmatprep.subr.mxu0 0.0
  %2257 = vmatpush2.msra.mxu0 0.0
  %2258 = vmatprep.subr.mxu0 0.0
  %2259 = vmatpush2.msra.mxu0 0.0
  %2260 = vmatprep.subr.mxu0 0.0
  %2261 = vmatpush2.msra.mxu0 0.0
  %2262 = vmatprep.subr.mxu0 0.0
  %2263 = vmatpush2.msra.mxu0 0.0
  %2264 = vmatprep.subr.mxu0 0.0
  %2265 = vmatpush2.msra.mxu0 0.0
  %2266 = vmatprep.subr.mxu0 0.0
  %2267 = vmatpush2.msra.mxu0 0.0
  %2268 = vmatprep.subr.mxu0 0.0
  %2269 = vmatpush2.msra.mxu0 0.0
  %2270 = vmatprep.subr.mxu0 0.0
  %2271 = vmatpush2.msra.mxu0 0.0
  %2272 = vmatprep.subr.mxu0 0.0
  %2273 = vmatpush2.msra.mxu0 0.0
  %2274 = vmatprep.subr.mxu0 0.0
  %2275 = vmatpush2.msra.mxu0 0.0
  %2276 = vmatprep.subr.mxu0 0.0
  %2277 = vmatpush2.msra.mxu0 0.0
  %2278 = vmatprep.subr.mxu0 0.0
  %2279 = vmatpush2.msra.mxu0 0.0
  %2280 = vmatprep.subr.mxu0 0.0
  %2281 = vmatpush2.msra.mxu0 0.0
  %2282 = vmatprep.subr.mxu0 0.0
  %2283 = vmatpush2.msra.mxu0 0.0
  %2284 = vmatprep.mubr.f32.mxu0 0.0
  %2285 = vmatmul.mubr.f32.gmra.mxu0 %v2218
  %v2286 = vpop.f32.mrf.mxu0
  %v2287 = vadd.f32 0.0, %v2286
  %v2288 = vpop.f32.mrf.mxu0
  %2289 = vdwg.mxu0
  %v2290 = vsel %vm407, %v2101, 0
  %2292 = vmatprep.subr.mxu0 0.0
  %2293 = vmatpush1.msra.mxu0 0.0
  %2294 = vmatprep.subr.mxu0 0.0
  %2295 = vmatpush1.msra.mxu0 0.0
  %2296 = vmatprep.subr.mxu0 0.0
  %2297 = vmatpush1.msra.mxu0 0.0
  %2298 = vmatprep.subr.mxu0 0.0
  %2299 = vmatpush1.msra.mxu0 0.0
  %2300 = vmatprep.subr.mxu0 0.0
  %2301 = vmatpush1.msra.mxu0 0.0
  %2302 = vmatprep.subr.mxu0 0.0
  %2303 = vmatpush1.msra.mxu0 0.0
  %2304 = vmatprep.subr.mxu0 0.0
  %2305 = vmatpush1.msra.mxu0 0.0
  %2306 = vmatprep.subr.mxu0 0.0
  %2307 = vmatpush1.msra.mxu0 0.0
  %2308 = vmatprep.subr.mxu0 0.0
  %2309 = vmatpush1.msra.mxu0 0.0
  %2310 = vmatprep.subr.mxu0 0.0
  %2311 = vmatpush1.msra.mxu0 0.0
  %2312 = vmatprep.subr.mxu0 0.0
  %2313 = vmatpush1.msra.mxu0 0.0
  %2314 = vmatprep.subr.mxu0 0.0
  %2315 = vmatpush1.msra.mxu0 0.0
  %2316 = vmatprep.subr.mxu0 0.0
  %2317 = vmatpush1.msra.mxu0 0.0
  %2318 = vmatprep.subr.mxu0 0.0
  %2319 = vmatpush1.msra.mxu0 0.0
  %2320 = vmatprep.subr.mxu0 0.0
  %2321 = vmatpush1.msra.mxu0 %v529
  %2322 = vmatprep.subr.mxu0 0.0
  %2323 = vmatpush1.msra.mxu0 %v528
  %2324 = vmatprep.subr.mxu0 0.0
  %2325 = vmatpush2.msra.mxu0 0.0
  %2326 = vmatprep.subr.mxu0 0.0
  %2327 = vmatpush2.msra.mxu0 0.0
  %2328 = vmatprep.subr.mxu0 0.0
  %2329 = vmatpush2.msra.mxu0 0.0
  %2330 = vmatprep.subr.mxu0 0.0
  %2331 = vmatpush2.msra.mxu0 0.0
  %2332 = vmatprep.subr.mxu0 0.0
  %2333 = vmatpush2.msra.mxu0 0.0
  %2334 = vmatprep.subr.mxu0 0.0
  %2335 = vmatpush2.msra.mxu0 0.0
  %2336 = vmatprep.subr.mxu0 0.0
  %2337 = vmatpush2.msra.mxu0 0.0
  %2338 = vmatprep.subr.mxu0 0.0
  %2339 = vmatpush2.msra.mxu0 0.0
  %2340 = vmatprep.subr.mxu0 0.0
  %2341 = vmatpush2.msra.mxu0 0.0
  %2342 = vmatprep.subr.mxu0 0.0
  %2343 = vmatpush2.msra.mxu0 0.0
  %2344 = vmatprep.subr.mxu0 0.0
  %2345 = vmatpush2.msra.mxu0 0.0
  %2346 = vmatprep.subr.mxu0 0.0
  %2347 = vmatpush2.msra.mxu0 0.0
  %2348 = vmatprep.subr.mxu0 0.0
  %2349 = vmatpush2.msra.mxu0 0.0
  %2350 = vmatprep.subr.mxu0 0.0
  %2351 = vmatpush2.msra.mxu0 0.0
  %2352 = vmatprep.subr.mxu0 0.0
  %2353 = vmatpush2.msra.mxu0 0.0
  %2354 = vmatprep.subr.mxu0 0.0
  %2355 = vmatpush2.msra.mxu0 0.0
  %2356 = vmatprep.mubr.f32.mxu0 0.0
  %2357 = vmatmul.mubr.f32.gmra.mxu0 %v2290
  %v2358 = vpop.f32.mrf.mxu0
  %v2359 = vadd.f32 0.0, %v2358
  %v2360 = vpop.f32.mrf.mxu0
  %2361 = vdwg.mxu0
  %v2362 = vadd.f32 %v211, %v2359
  %v2363 = vxor.u32 %v2362, 2147483648
  %v2364 = vmul.f32 %v2363, 1.442695
  %v2365 = vpow.pop %v2364
  %v2366 = vadd.f32 %v2365, 1.0
  %v2367 = vrcp.pop %v2366
  %v2368 = vmul.f32 1.0, %v2367
  %2369 = vrot.lane.b32.xlu0 %v2101, 16
  %v2370 = vpop.permute.xlu0 %2369
  %v2372 = vmul.f32 %v2368, %v2370
  %2374 = vrot.lane.b32.xlu0 %v2372, 112
  %v2375 = vpop.permute.xlu0 %2374
  %v2376 = vsel %vm407, %v2375, 0
  %2378 = vmatprep.subr.mxu0 0.0
  %2379 = vmatpush1.msra.mxu0 0.0
  %2380 = vmatprep.subr.mxu0 0.0
  %2381 = vmatpush1.msra.mxu0 0.0
  %2382 = vmatprep.subr.mxu0 0.0
  %2383 = vmatpush1.msra.mxu0 0.0
  %2384 = vmatprep.subr.mxu0 0.0
  %2385 = vmatpush1.msra.mxu0 0.0
  %2386 = vmatprep.subr.mxu0 0.0
  %2387 = vmatpush1.msra.mxu0 0.0
  %2388 = vmatprep.subr.mxu0 0.0
  %2389 = vmatpush1.msra.mxu0 0.0
  %2390 = vmatprep.subr.mxu0 0.0
  %2391 = vmatpush1.msra.mxu0 0.0
  %2392 = vmatprep.subr.mxu0 0.0
  %2393 = vmatpush1.msra.mxu0 0.0
  %2394 = vmatprep.subr.mxu0 0.0
  %2395 = vmatpush1.msra.mxu0 0.0
  %2396 = vmatprep.subr.mxu0 0.0
  %2397 = vmatpush1.msra.mxu0 0.0
  %2398 = vmatprep.subr.mxu0 0.0
  %2399 = vmatpush1.msra.mxu0 0.0
  %2400 = vmatprep.subr.mxu0 0.0
  %2401 = vmatpush1.msra.mxu0 0.0
  %2402 = vmatprep.subr.mxu0 0.0
  %2403 = vmatpush1.msra.mxu0 0.0
  %2404 = vmatprep.subr.mxu0 0.0
  %2405 = vmatpush1.msra.mxu0 0.0
  %2406 = vmatprep.subr.mxu0 0.0
  %2407 = vmatpush1.msra.mxu0 %v612
  %2408 = vmatprep.subr.mxu0 0.0
  %2409 = vmatpush1.msra.mxu0 %v611
  %2410 = vmatprep.subr.mxu0 0.0
  %2411 = vmatpush2.msra.mxu0 0.0
  %2412 = vmatprep.subr.mxu0 0.0
  %2413 = vmatpush2.msra.mxu0 0.0
  %2414 = vmatprep.subr.mxu0 0.0
  %2415 = vmatpush2.msra.mxu0 0.0
  %2416 = vmatprep.subr.mxu0 0.0
  %2417 = vmatpush2.msra.mxu0 0.0
  %2418 = vmatprep.subr.mxu0 0.0
  %2419 = vmatpush2.msra.mxu0 0.0
  %2420 = vmatprep.subr.mxu0 0.0
  %2421 = vmatpush2.msra.mxu0 0.0
  %2422 = vmatprep.subr.mxu0 0.0
  %2423 = vmatpush2.msra.mxu0 0.0
  %2424 = vmatprep.subr.mxu0 0.0
  %2425 = vmatpush2.msra.mxu0 0.0
  %2426 = vmatprep.subr.mxu0 0.0
  %2427 = vmatpush2.msra.mxu0 0.0
  %2428 = vmatprep.subr.mxu0 0.0
  %2429 = vmatpush2.msra.mxu0 0.0
  %2430 = vmatprep.subr.mxu0 0.0
  %2431 = vmatpush2.msra.mxu0 0.0
  %2432 = vmatprep.subr.mxu0 0.0
  %2433 = vmatpush2.msra.mxu0 0.0
  %2434 = vmatprep.subr.mxu0 0.0
  %2435 = vmatpush2.msra.mxu0 0.0
  %2436 = vmatprep.subr.mxu0 0.0
  %2437 = vmatpush2.msra.mxu0 0.0
  %2438 = vmatprep.subr.mxu0 0.0
  %2439 = vmatpush2.msra.mxu0 0.0
  %2440 = vmatprep.subr.mxu0 0.0
  %2441 = vmatpush2.msra.mxu0 0.0
  %2442 = vmatprep.mubr.f32.mxu0 0.0
  %2443 = vmatmul.mubr.f32.gmra.mxu0 %v2376
  %v2444 = vpop.f32.mrf.mxu0
  %v2445 = vadd.f32 0.0, %v2444
  %v2446 = vpop.f32.mrf.mxu0
  %2447 = vdwg.mxu0
  %v2448 = vadd.f32 %v317, %v2445
  %v2449 = vadd.f32 %v2448, %v2287
  %v2450 = vtanh.pop %v2449
  %v2451 = vsub.f32 %v2450, %v2101
  %v2452 = vmul.f32 %v2368, %v2451
  %v2453 = vadd.f32 %v2101, %v2452
  %2454 = vrot.lane.b32.xlu0 %v2109, 112
  %v2455 = vpop.permute.xlu0 %2454
  %2457 = vrot.lane.b32.xlu0 %v2453, 112
  %v2458 = vpop.permute.xlu0 %2457
  %v2460 = vsel %vm699, 0.0, %v2458
  %v2461 = vsel %vm81, %v2460, %v2455
  %2462 = vmatprep.subr.mxu0 0.0
  %2463 = vmatpush1.msra.mxu0 %v335
  %2464 = vmatprep.subr.mxu0 0.0
  %2465 = vmatpush1.msra.mxu0 %v334
  %2466 = vmatprep.subr.mxu0 0.0
  %2467 = vmatpush1.msra.mxu0 %v333
  %2468 = vmatprep.subr.mxu0 0.0
  %2469 = vmatpush1.msra.mxu0 %v332
  %2470 = vmatprep.subr.mxu0 0.0
  %2471 = vmatpush1.msra.mxu0 %v331
  %2472 = vmatprep.subr.mxu0 0.0
  %2473 = vmatpush1.msra.mxu0 %v330
  %2474 = vmatprep.subr.mxu0 0.0
  %2475 = vmatpush1.msra.mxu0 %v329
  %2476 = vmatprep.subr.mxu0 0.0
  %2477 = vmatpush1.msra.mxu0 %v328
  %2478 = vmatprep.subr.mxu0 0.0
  %2479 = vmatpush1.msra.mxu0 %v327
  %2480 = vmatprep.subr.mxu0 0.0
  %2481 = vmatpush1.msra.mxu0 %v326
  %2482 = vmatprep.subr.mxu0 0.0
  %2483 = vmatpush1.msra.mxu0 %v325
  %2484 = vmatprep.subr.mxu0 0.0
  %2485 = vmatpush1.msra.mxu0 %v324
  %2486 = vmatprep.subr.mxu0 0.0
  %2487 = vmatpush1.msra.mxu0 %v323
  %2488 = vmatprep.subr.mxu0 0.0
  %2489 = vmatpush1.msra.mxu0 %v322
  %2490 = vmatprep.subr.mxu0 0.0
  %2491 = vmatpush1.msra.mxu0 %v321
  %2492 = vmatprep.subr.mxu0 0.0
  %2493 = vmatpush1.msra.mxu0 %v320
  %2494 = vmatprep.subr.mxu0 0.0
  %2495 = vmatpush2.msra.mxu0 0.0
  %2496 = vmatprep.subr.mxu0 0.0
  %2497 = vmatpush2.msra.mxu0 0.0
  %2498 = vmatprep.subr.mxu0 0.0
  %2499 = vmatpush2.msra.mxu0 0.0
  %2500 = vmatprep.subr.mxu0 0.0
  %2501 = vmatpush2.msra.mxu0 0.0
  %2502 = vmatprep.subr.mxu0 0.0
  %2503 = vmatpush2.msra.mxu0 0.0
  %2504 = vmatprep.subr.mxu0 0.0
  %2505 = vmatpush2.msra.mxu0 0.0
  %2506 = vmatprep.subr.mxu0 0.0
  %2507 = vmatpush2.msra.mxu0 0.0
  %2508 = vmatprep.subr.mxu0 0.0
  %2509 = vmatpush2.msra.mxu0 0.0
  %2510 = vmatprep.subr.mxu0 0.0
  %2511 = vmatpush2.msra.mxu0 0.0
  %2512 = vmatprep.subr.mxu0 0.0
  %2513 = vmatpush2.msra.mxu0 0.0
  %2514 = vmatprep.subr.mxu0 0.0
  %2515 = vmatpush2.msra.mxu0 0.0
  %2516 = vmatprep.subr.mxu0 0.0
  %2517 = vmatpush2.msra.mxu0 0.0
  %2518 = vmatprep.subr.mxu0 0.0
  %2519 = vmatpush2.msra.mxu0 0.0
  %2520 = vmatprep.subr.mxu0 0.0
  %2521 = vmatpush2.msra.mxu0 0.0
  %2522 = vmatprep.subr.mxu0 0.0
  %2523 = vmatpush2.msra.mxu0 0.0
  %2524 = vmatprep.subr.mxu0 0.0
  %2525 = vmatpush2.msra.mxu0 0.0
  %2526 = vmatprep.mubr.f32.mxu0 0.0
  %2527 = vmatmul.mubr.f32.gmra.mxu0 %v2461
  %v2528 = vpop.f32.mrf.mxu0
  %v2529 = vadd.f32 %v61, %v2528
  %v2530 = vpop.f32.mrf.mxu0
  %2531 = vdwg.mxu0
  %v2532 = vsel %vm80, %v2529, -inf
  %v2533 = vsel %vm407, %v2532, -inf
  %2534 = vmax.xlane.f32.xlu0 %v2533
  %v2535 = vpop.xlane.xlu0 %2534
  %v2536 = vsel %vm80, -inf, %v2529
  %v2537 = vsel %vm407, %v2536, -inf
  %2538 = vmax.xlane.f32.xlu0 %v2537
  %v2539 = vpop.xlane.xlu0 %2538
  %v2540 = vsel %vm80, %v2535, %v2539
  %v2541 = vsub.f32 %v2529, %v2540
  %v2542 = vmul.f32 %v2541, 1.442695
  %v2543 = vpow.pop %v2542
  %v2544 = vsel %vm80, %v2543, 0.0
  %v2545 = vsel %vm407, %v2544, 0.0
  %2546 = vadd.xlane.f32.xlu0 %v2545
  %v2547 = vpop.xlane.xlu0 %2546
  %v2548 = vsel %vm80, 0.0, %v2543
  %v2549 = vsel %vm407, %v2548, 0.0
  %2550 = vadd.xlane.f32.xlu0 %v2549
  %v2551 = vpop.xlane.xlu0 %2550
  %v2552 = vsel %vm80, %v2547, %v2551
  %v2553 = vrcp.pop %v2552
  %v2554 = vmul.f32 %v2543, %v2553
  %2556 = vrot.lane.b32.xlu0 %v2554, 16
  %v2557 = vpop.permute.xlu0 %2556
  %2559 = vrot.lane.b32.xlu0 %v2554, 32
  %v2560 = vpop.permute.xlu0 %2559
  %2562 = vrot.lane.b32.xlu0 %v2554, 48
  %v2563 = vpop.permute.xlu0 %2562
  %v2565 = vsel %vm407, %v2554, %v2557
  %v2566 = vsel %vm441, %v2565, %v2560
  %v2567 = vsel %vm443, %v2566, %v2563
  %v2568 = vmul.f32 %v2567, %v77
  %v2570 = vsel %vm454, %v2568, 0
  %2572 = vmatprep.subr.mxu0 0.0
  %2573 = vmatpush1.msra.mxu0 0.0
  %2574 = vmatprep.subr.mxu0 0.0
  %2575 = vmatpush1.msra.mxu0 0.0
  %2576 = vmatprep.subr.mxu0 0.0
  %2577 = vmatpush1.msra.mxu0 0.0
  %2578 = vmatprep.subr.mxu0 0.0
  %2579 = vmatpush1.msra.mxu0 0.0
  %2580 = vmatprep.subr.mxu0 0.0
  %2581 = vmatpush1.msra.mxu0 0.0
  %2582 = vmatprep.subr.mxu0 0.0
  %2583 = vmatpush1.msra.mxu0 0.0
  %2584 = vmatprep.subr.mxu0 0.0
  %2585 = vmatpush1.msra.mxu0 0.0
  %2586 = vmatprep.subr.mxu0 0.0
  %2587 = vmatpush1.msra.mxu0 0.0
  %2588 = vmatprep.subr.mxu0 0.0
  %2589 = vmatpush1.msra.mxu0 %v453
  %2590 = vmatprep.subr.mxu0 0.0
  %2591 = vmatpush1.msra.mxu0 %v452
  %2592 = vmatprep.subr.mxu0 0.0
  %2593 = vmatpush1.msra.mxu0 %v451
  %2594 = vmatprep.subr.mxu0 0.0
  %2595 = vmatpush1.msra.mxu0 %v450
  %2596 = vmatprep.subr.mxu0 0.0
  %2597 = vmatpush1.msra.mxu0 %v449
  %2598 = vmatprep.subr.mxu0 0.0
  %2599 = vmatpush1.msra.mxu0 %v448
  %2600 = vmatprep.subr.mxu0 0.0
  %2601 = vmatpush1.msra.mxu0 %v447
  %2602 = vmatprep.subr.mxu0 0.0
  %2603 = vmatpush1.msra.mxu0 %v446
  %2604 = vmatprep.subr.mxu0 0.0
  %2605 = vmatpush2.msra.mxu0 0.0
  %2606 = vmatprep.subr.mxu0 0.0
  %2607 = vmatpush2.msra.mxu0 0.0
  %2608 = vmatprep.subr.mxu0 0.0
  %2609 = vmatpush2.msra.mxu0 0.0
  %2610 = vmatprep.subr.mxu0 0.0
  %2611 = vmatpush2.msra.mxu0 0.0
  %2612 = vmatprep.subr.mxu0 0.0
  %2613 = vmatpush2.msra.mxu0 0.0
  %2614 = vmatprep.subr.mxu0 0.0
  %2615 = vmatpush2.msra.mxu0 0.0
  %2616 = vmatprep.subr.mxu0 0.0
  %2617 = vmatpush2.msra.mxu0 0.0
  %2618 = vmatprep.subr.mxu0 0.0
  %2619 = vmatpush2.msra.mxu0 0.0
  %2620 = vmatprep.subr.mxu0 0.0
  %2621 = vmatpush2.msra.mxu0 0.0
  %2622 = vmatprep.subr.mxu0 0.0
  %2623 = vmatpush2.msra.mxu0 0.0
  %2624 = vmatprep.subr.mxu0 0.0
  %2625 = vmatpush2.msra.mxu0 0.0
  %2626 = vmatprep.subr.mxu0 0.0
  %2627 = vmatpush2.msra.mxu0 0.0
  %2628 = vmatprep.subr.mxu0 0.0
  %2629 = vmatpush2.msra.mxu0 0.0
  %2630 = vmatprep.subr.mxu0 0.0
  %2631 = vmatpush2.msra.mxu0 0.0
  %2632 = vmatprep.subr.mxu0 0.0
  %2633 = vmatpush2.msra.mxu0 0.0
  %2634 = vmatprep.subr.mxu0 0.0
  %2635 = vmatpush2.msra.mxu0 0.0
  %2636 = vmatprep.mubr.f32.mxu0 0.0
  %2637 = vmatmul.mubr.f32.gmra.mxu0 %v2570
  %v2638 = vpop.f32.mrf.mxu0
  %v2639 = vadd.f32 0.0, %v2638
  %v2640 = vpop.f32.mrf.mxu0
  %2641 = vdwg.mxu0
  %v2642 = vsel %vm407, %v2453, 0
  %2644 = vmatprep.subr.mxu0 0.0
  %2645 = vmatpush1.msra.mxu0 0.0
  %2646 = vmatprep.subr.mxu0 0.0
  %2647 = vmatpush1.msra.mxu0 0.0
  %2648 = vmatprep.subr.mxu0 0.0
  %2649 = vmatpush1.msra.mxu0 0.0
  %2650 = vmatprep.subr.mxu0 0.0
  %2651 = vmatpush1.msra.mxu0 0.0
  %2652 = vmatprep.subr.mxu0 0.0
  %2653 = vmatpush1.msra.mxu0 0.0
  %2654 = vmatprep.subr.mxu0 0.0
  %2655 = vmatpush1.msra.mxu0 0.0
  %2656 = vmatprep.subr.mxu0 0.0
  %2657 = vmatpush1.msra.mxu0 0.0
  %2658 = vmatprep.subr.mxu0 0.0
  %2659 = vmatpush1.msra.mxu0 0.0
  %2660 = vmatprep.subr.mxu0 0.0
  %2661 = vmatpush1.msra.mxu0 0.0
  %2662 = vmatprep.subr.mxu0 0.0
  %2663 = vmatpush1.msra.mxu0 0.0
  %2664 = vmatprep.subr.mxu0 0.0
  %2665 = vmatpush1.msra.mxu0 0.0
  %2666 = vmatprep.subr.mxu0 0.0
  %2667 = vmatpush1.msra.mxu0 0.0
  %2668 = vmatprep.subr.mxu0 0.0
  %2669 = vmatpush1.msra.mxu0 0.0
  %2670 = vmatprep.subr.mxu0 0.0
  %2671 = vmatpush1.msra.mxu0 0.0
  %2672 = vmatprep.subr.mxu0 0.0
  %2673 = vmatpush1.msra.mxu0 %v529
  %2674 = vmatprep.subr.mxu0 0.0
  %2675 = vmatpush1.msra.mxu0 %v528
  %2676 = vmatprep.subr.mxu0 0.0
  %2677 = vmatpush2.msra.mxu0 0.0
  %2678 = vmatprep.subr.mxu0 0.0
  %2679 = vmatpush2.msra.mxu0 0.0
  %2680 = vmatprep.subr.mxu0 0.0
  %2681 = vmatpush2.msra.mxu0 0.0
  %2682 = vmatprep.subr.mxu0 0.0
  %2683 = vmatpush2.msra.mxu0 0.0
  %2684 = vmatprep.subr.mxu0 0.0
  %2685 = vmatpush2.msra.mxu0 0.0
  %2686 = vmatprep.subr.mxu0 0.0
  %2687 = vmatpush2.msra.mxu0 0.0
  %2688 = vmatprep.subr.mxu0 0.0
  %2689 = vmatpush2.msra.mxu0 0.0
  %2690 = vmatprep.subr.mxu0 0.0
  %2691 = vmatpush2.msra.mxu0 0.0
  %2692 = vmatprep.subr.mxu0 0.0
  %2693 = vmatpush2.msra.mxu0 0.0
  %2694 = vmatprep.subr.mxu0 0.0
  %2695 = vmatpush2.msra.mxu0 0.0
  %2696 = vmatprep.subr.mxu0 0.0
  %2697 = vmatpush2.msra.mxu0 0.0
  %2698 = vmatprep.subr.mxu0 0.0
  %2699 = vmatpush2.msra.mxu0 0.0
  %2700 = vmatprep.subr.mxu0 0.0
  %2701 = vmatpush2.msra.mxu0 0.0
  %2702 = vmatprep.subr.mxu0 0.0
  %2703 = vmatpush2.msra.mxu0 0.0
  %2704 = vmatprep.subr.mxu0 0.0
  %2705 = vmatpush2.msra.mxu0 0.0
  %2706 = vmatprep.subr.mxu0 0.0
  %2707 = vmatpush2.msra.mxu0 0.0
  %2708 = vmatprep.mubr.f32.mxu0 0.0
  %2709 = vmatmul.mubr.f32.gmra.mxu0 %v2642
  %v2710 = vpop.f32.mrf.mxu0
  %v2711 = vadd.f32 0.0, %v2710
  %v2712 = vpop.f32.mrf.mxu0
  %2713 = vdwg.mxu0
  %v2714 = vadd.f32 %v211, %v2711
  %v2715 = vxor.u32 %v2714, 2147483648
  %v2716 = vmul.f32 %v2715, 1.442695
  %v2717 = vpow.pop %v2716
  %v2718 = vadd.f32 %v2717, 1.0
  %v2719 = vrcp.pop %v2718
  %v2720 = vmul.f32 1.0, %v2719
  %2721 = vrot.lane.b32.xlu0 %v2453, 16
  %v2722 = vpop.permute.xlu0 %2721
  %v2724 = vmul.f32 %v2720, %v2722
  %2726 = vrot.lane.b32.xlu0 %v2724, 112
  %v2727 = vpop.permute.xlu0 %2726
  %v2728 = vsel %vm407, %v2727, 0
  %2730 = vmatprep.subr.mxu0 0.0
  %2731 = vmatpush1.msra.mxu0 0.0
  %2732 = vmatprep.subr.mxu0 0.0
  %2733 = vmatpush1.msra.mxu0 0.0
  %2734 = vmatprep.subr.mxu0 0.0
  %2735 = vmatpush1.msra.mxu0 0.0
  %2736 = vmatprep.subr.mxu0 0.0
  %2737 = vmatpush1.msra.mxu0 0.0
  %2738 = vmatprep.subr.mxu0 0.0
  %2739 = vmatpush1.msra.mxu0 0.0
  %2740 = vmatprep.subr.mxu0 0.0
  %2741 = vmatpush1.msra.mxu0 0.0
  %2742 = vmatprep.subr.mxu0 0.0
  %2743 = vmatpush1.msra.mxu0 0.0
  %2744 = vmatprep.subr.mxu0 0.0
  %2745 = vmatpush1.msra.mxu0 0.0
  %2746 = vmatprep.subr.mxu0 0.0
  %2747 = vmatpush1.msra.mxu0 0.0
  %2748 = vmatprep.subr.mxu0 0.0
  %2749 = vmatpush1.msra.mxu0 0.0
  %2750 = vmatprep.subr.mxu0 0.0
  %2751 = vmatpush1.msra.mxu0 0.0
  %2752 = vmatprep.subr.mxu0 0.0
  %2753 = vmatpush1.msra.mxu0 0.0
  %2754 = vmatprep.subr.mxu0 0.0
  %2755 = vmatpush1.msra.mxu0 0.0
  %2756 = vmatprep.subr.mxu0 0.0
  %2757 = vmatpush1.msra.mxu0 0.0
  %2758 = vmatprep.subr.mxu0 0.0
  %2759 = vmatpush1.msra.mxu0 %v612
  %2760 = vmatprep.subr.mxu0 0.0
  %2761 = vmatpush1.msra.mxu0 %v611
  %2762 = vmatprep.subr.mxu0 0.0
  %2763 = vmatpush2.msra.mxu0 0.0
  %2764 = vmatprep.subr.mxu0 0.0
  %2765 = vmatpush2.msra.mxu0 0.0
  %2766 = vmatprep.subr.mxu0 0.0
  %2767 = vmatpush2.msra.mxu0 0.0
  %2768 = vmatprep.subr.mxu0 0.0
  %2769 = vmatpush2.msra.mxu0 0.0
  %2770 = vmatprep.subr.mxu0 0.0
  %2771 = vmatpush2.msra.mxu0 0.0
  %2772 = vmatprep.subr.mxu0 0.0
  %2773 = vmatpush2.msra.mxu0 0.0
  %2774 = vmatprep.subr.mxu0 0.0
  %2775 = vmatpush2.msra.mxu0 0.0
  %2776 = vmatprep.subr.mxu0 0.0
  %2777 = vmatpush2.msra.mxu0 0.0
  %2778 = vmatprep.subr.mxu0 0.0
  %2779 = vmatpush2.msra.mxu0 0.0
  %2780 = vmatprep.subr.mxu0 0.0
  %2781 = vmatpush2.msra.mxu0 0.0
  %2782 = vmatprep.subr.mxu0 0.0
  %2783 = vmatpush2.msra.mxu0 0.0
  %2784 = vmatprep.subr.mxu0 0.0
  %2785 = vmatpush2.msra.mxu0 0.0
  %2786 = vmatprep.subr.mxu0 0.0
  %2787 = vmatpush2.msra.mxu0 0.0
  %2788 = vmatprep.subr.mxu0 0.0
  %2789 = vmatpush2.msra.mxu0 0.0
  %2790 = vmatprep.subr.mxu0 0.0
  %2791 = vmatpush2.msra.mxu0 0.0
  %2792 = vmatprep.subr.mxu0 0.0
  %2793 = vmatpush2.msra.mxu0 0.0
  %2794 = vmatprep.mubr.f32.mxu0 0.0
  %2795 = vmatmul.mubr.f32.gmra.mxu0 %v2728
  %v2796 = vpop.f32.mrf.mxu0
  %v2797 = vadd.f32 0.0, %v2796
  %v2798 = vpop.f32.mrf.mxu0
  %2799 = vdwg.mxu0
  %v2800 = vadd.f32 %v317, %v2797
  %v2801 = vadd.f32 %v2800, %v2639
  %v2802 = vtanh.pop %v2801
  %v2803 = vsub.f32 %v2802, %v2453
  %v2804 = vmul.f32 %v2720, %v2803
  %v2805 = vadd.f32 %v2453, %v2804
  %2806 = vrot.lane.b32.xlu0 %v2461, 112
  %v2807 = vpop.permute.xlu0 %2806
  %2809 = vrot.lane.b32.xlu0 %v2805, 112
  %v2810 = vpop.permute.xlu0 %2809
  %v2812 = vsel %vm699, 0.0, %v2810
  %v2813 = vsel %vm81, %v2812, %v2807
  %v2814 = vld [vmem:[%s11] sm:$0xff]
  %v2815 = vld [vmem:[%s11 + $0x8] sm:$0xff]
  %v2816 = vsel %vm407, %v2805, 0
  %2818 = vmatprep.subr.mxu0 0.0
  %2819 = vmatpush1.msra.mxu0 0.0
  %2820 = vmatprep.subr.mxu0 0.0
  %2821 = vmatpush1.msra.mxu0 0.0
  %2822 = vmatprep.subr.mxu0 0.0
  %2823 = vmatpush1.msra.mxu0 0.0
  %2824 = vmatprep.subr.mxu0 0.0
  %2825 = vmatpush1.msra.mxu0 0.0
  %2826 = vmatprep.subr.mxu0 0.0
  %2827 = vmatpush1.msra.mxu0 0.0
  %2828 = vmatprep.subr.mxu0 0.0
  %2829 = vmatpush1.msra.mxu0 0.0
  %2830 = vmatprep.subr.mxu0 0.0
  %2831 = vmatpush1.msra.mxu0 0.0
  %2832 = vmatprep.subr.mxu0 0.0
  %2833 = vmatpush1.msra.mxu0 0.0
  %2834 = vmatprep.subr.mxu0 0.0
  %2835 = vmatpush1.msra.mxu0 0.0
  %2836 = vmatprep.subr.mxu0 0.0
  %2837 = vmatpush1.msra.mxu0 0.0
  %2838 = vmatprep.subr.mxu0 0.0
  %2839 = vmatpush1.msra.mxu0 0.0
  %2840 = vmatprep.subr.mxu0 0.0
  %2841 = vmatpush1.msra.mxu0 0.0
  %2842 = vmatprep.subr.mxu0 0.0
  %2843 = vmatpush1.msra.mxu0 0.0
  %2844 = vmatprep.subr.mxu0 0.0
  %2845 = vmatpush1.msra.mxu0 0.0
  %2846 = vmatprep.subr.mxu0 0.0
  %2847 = vmatpush1.msra.mxu0 %v2815
  %2848 = vmatprep.subr.mxu0 0.0
  %2849 = vmatpush1.msra.mxu0 %v2814
  %2850 = vmatprep.subr.mxu0 0.0
  %2851 = vmatpush2.msra.mxu0 0.0
  %2852 = vmatprep.subr.mxu0 0.0
  %2853 = vmatpush2.msra.mxu0 0.0
  %2854 = vmatprep.subr.mxu0 0.0
  %2855 = vmatpush2.msra.mxu0 0.0
  %2856 = vmatprep.subr.mxu0 0.0
  %2857 = vmatpush2.msra.mxu0 0.0
  %2858 = vmatprep.subr.mxu0 0.0
  %2859 = vmatpush2.msra.mxu0 0.0
  %2860 = vmatprep.subr.mxu0 0.0
  %2861 = vmatpush2.msra.mxu0 0.0
  %2862 = vmatprep.subr.mxu0 0.0
  %2863 = vmatpush2.msra.mxu0 0.0
  %2864 = vmatprep.subr.mxu0 0.0
  %2865 = vmatpush2.msra.mxu0 0.0
  %2866 = vmatprep.subr.mxu0 0.0
  %2867 = vmatpush2.msra.mxu0 0.0
  %2868 = vmatprep.subr.mxu0 0.0
  %2869 = vmatpush2.msra.mxu0 0.0
  %2870 = vmatprep.subr.mxu0 0.0
  %2871 = vmatpush2.msra.mxu0 0.0
  %2872 = vmatprep.subr.mxu0 0.0
  %2873 = vmatpush2.msra.mxu0 0.0
  %2874 = vmatprep.subr.mxu0 0.0
  %2875 = vmatpush2.msra.mxu0 0.0
  %2876 = vmatprep.subr.mxu0 0.0
  %2877 = vmatpush2.msra.mxu0 0.0
  %2878 = vmatprep.subr.mxu0 0.0
  %2879 = vmatpush2.msra.mxu0 0.0
  %2880 = vmatprep.subr.mxu0 0.0
  %2881 = vmatpush2.msra.mxu0 0.0
  %2882 = vmatprep.mubr.f32.mxu0 0.0
  %2883 = vmatmul.mubr.f32.gmra.mxu0 %v2816
  %v2884 = vpop.f32.mrf.mxu0
  %v2885 = vadd.f32 %v68, %v2884
  %v2886 = vpop.f32.mrf.mxu0
  %2887 = vdwg.mxu0
  %v2888 = vld [vmem:[%s13] sm:$0xff]
  %v2889 = vld [vmem:[%s13 + $0x8] sm:$0xff]
  %2890 = vmatprep.subr.mxu0 0.0
  %2891 = vmatpush1.msra.mxu0 0.0
  %2892 = vmatprep.subr.mxu0 0.0
  %2893 = vmatpush1.msra.mxu0 0.0
  %2894 = vmatprep.subr.mxu0 0.0
  %2895 = vmatpush1.msra.mxu0 0.0
  %2896 = vmatprep.subr.mxu0 0.0
  %2897 = vmatpush1.msra.mxu0 0.0
  %2898 = vmatprep.subr.mxu0 0.0
  %2899 = vmatpush1.msra.mxu0 0.0
  %2900 = vmatprep.subr.mxu0 0.0
  %2901 = vmatpush1.msra.mxu0 0.0
  %2902 = vmatprep.subr.mxu0 0.0
  %2903 = vmatpush1.msra.mxu0 0.0
  %2904 = vmatprep.subr.mxu0 0.0
  %2905 = vmatpush1.msra.mxu0 0.0
  %2906 = vmatprep.subr.mxu0 0.0
  %2907 = vmatpush1.msra.mxu0 0.0
  %2908 = vmatprep.subr.mxu0 0.0
  %2909 = vmatpush1.msra.mxu0 0.0
  %2910 = vmatprep.subr.mxu0 0.0
  %2911 = vmatpush1.msra.mxu0 0.0
  %2912 = vmatprep.subr.mxu0 0.0
  %2913 = vmatpush1.msra.mxu0 0.0
  %2914 = vmatprep.subr.mxu0 0.0
  %2915 = vmatpush1.msra.mxu0 0.0
  %2916 = vmatprep.subr.mxu0 0.0
  %2917 = vmatpush1.msra.mxu0 0.0
  %2918 = vmatprep.subr.mxu0 0.0
  %2919 = vmatpush1.msra.mxu0 %v2889
  %2920 = vmatprep.subr.mxu0 0.0
  %2921 = vmatpush1.msra.mxu0 %v2888
  %2922 = vmatprep.subr.mxu0 0.0
  %2923 = vmatpush2.msra.mxu0 0.0
  %2924 = vmatprep.subr.mxu0 0.0
  %2925 = vmatpush2.msra.mxu0 0.0
  %2926 = vmatprep.subr.mxu0 0.0
  %2927 = vmatpush2.msra.mxu0 0.0
  %2928 = vmatprep.subr.mxu0 0.0
  %2929 = vmatpush2.msra.mxu0 0.0
  %2930 = vmatprep.subr.mxu0 0.0
  %2931 = vmatpush2.msra.mxu0 0.0
  %2932 = vmatprep.subr.mxu0 0.0
  %2933 = vmatpush2.msra.mxu0 0.0
  %2934 = vmatprep.subr.mxu0 0.0
  %2935 = vmatpush2.msra.mxu0 0.0
  %2936 = vmatprep.subr.mxu0 0.0
  %2937 = vmatpush2.msra.mxu0 0.0
  %2938 = vmatprep.subr.mxu0 0.0
  %2939 = vmatpush2.msra.mxu0 0.0
  %2940 = vmatprep.subr.mxu0 0.0
  %2941 = vmatpush2.msra.mxu0 0.0
  %2942 = vmatprep.subr.mxu0 0.0
  %2943 = vmatpush2.msra.mxu0 0.0
  %2944 = vmatprep.subr.mxu0 0.0
  %2945 = vmatpush2.msra.mxu0 0.0
  %2946 = vmatprep.subr.mxu0 0.0
  %2947 = vmatpush2.msra.mxu0 0.0
  %2948 = vmatprep.subr.mxu0 0.0
  %2949 = vmatpush2.msra.mxu0 0.0
  %2950 = vmatprep.subr.mxu0 0.0
  %2951 = vmatpush2.msra.mxu0 0.0
  %2952 = vmatprep.subr.mxu0 0.0
  %2953 = vmatpush2.msra.mxu0 0.0
  %2954 = vmatprep.mubr.f32.mxu0 0.0
  %2955 = vmatmul.mubr.f32.gmra.mxu0 %v2816
  %v2956 = vpop.f32.mrf.mxu0
  %v2957 = vadd.f32 %v75, %v2956
  %v2958 = vpop.f32.mrf.mxu0
  %2959 = vdwg.mxu0
  %2960 = vmatprep.subr.mxu0 0.0
  %2961 = vmatpush1.msra.mxu0 %v335
  %2962 = vmatprep.subr.mxu0 0.0
  %2963 = vmatpush1.msra.mxu0 %v334
  %2964 = vmatprep.subr.mxu0 0.0
  %2965 = vmatpush1.msra.mxu0 %v333
  %2966 = vmatprep.subr.mxu0 0.0
  %2967 = vmatpush1.msra.mxu0 %v332
  %2968 = vmatprep.subr.mxu0 0.0
  %2969 = vmatpush1.msra.mxu0 %v331
  %2970 = vmatprep.subr.mxu0 0.0
  %2971 = vmatpush1.msra.mxu0 %v330
  %2972 = vmatprep.subr.mxu0 0.0
  %2973 = vmatpush1.msra.mxu0 %v329
  %2974 = vmatprep.subr.mxu0 0.0
  %2975 = vmatpush1.msra.mxu0 %v328
  %2976 = vmatprep.subr.mxu0 0.0
  %2977 = vmatpush1.msra.mxu0 %v327
  %2978 = vmatprep.subr.mxu0 0.0
  %2979 = vmatpush1.msra.mxu0 %v326
  %2980 = vmatprep.subr.mxu0 0.0
  %2981 = vmatpush1.msra.mxu0 %v325
  %2982 = vmatprep.subr.mxu0 0.0
  %2983 = vmatpush1.msra.mxu0 %v324
  %2984 = vmatprep.subr.mxu0 0.0
  %2985 = vmatpush1.msra.mxu0 %v323
  %2986 = vmatprep.subr.mxu0 0.0
  %2987 = vmatpush1.msra.mxu0 %v322
  %2988 = vmatprep.subr.mxu0 0.0
  %2989 = vmatpush1.msra.mxu0 %v321
  %2990 = vmatprep.subr.mxu0 0.0
  %2991 = vmatpush1.msra.mxu0 %v320
  %2992 = vmatprep.subr.mxu0 0.0
  %2993 = vmatpush2.msra.mxu0 0.0
  %2994 = vmatprep.subr.mxu0 0.0
  %2995 = vmatpush2.msra.mxu0 0.0
  %2996 = vmatprep.subr.mxu0 0.0
  %2997 = vmatpush2.msra.mxu0 0.0
  %2998 = vmatprep.subr.mxu0 0.0
  %2999 = vmatpush2.msra.mxu0 0.0
  %3000 = vmatprep.subr.mxu0 0.0
  %3001 = vmatpush2.msra.mxu0 0.0
  %3002 = vmatprep.subr.mxu0 0.0
  %3003 = vmatpush2.msra.mxu0 0.0
  %3004 = vmatprep.subr.mxu0 0.0
  %3005 = vmatpush2.msra.mxu0 0.0
  %3006 = vmatprep.subr.mxu0 0.0
  %3007 = vmatpush2.msra.mxu0 0.0
  %3008 = vmatprep.subr.mxu0 0.0
  %3009 = vmatpush2.msra.mxu0 0.0
  %3010 = vmatprep.subr.mxu0 0.0
  %3011 = vmatpush2.msra.mxu0 0.0
  %3012 = vmatprep.subr.mxu0 0.0
  %3013 = vmatpush2.msra.mxu0 0.0
  %3014 = vmatprep.subr.mxu0 0.0
  %3015 = vmatpush2.msra.mxu0 0.0
  %3016 = vmatprep.subr.mxu0 0.0
  %3017 = vmatpush2.msra.mxu0 0.0
  %3018 = vmatprep.subr.mxu0 0.0
  %3019 = vmatpush2.msra.mxu0 0.0
  %3020 = vmatprep.subr.mxu0 0.0
  %3021 = vmatpush2.msra.mxu0 0.0
  %3022 = vmatprep.subr.mxu0 0.0
  %3023 = vmatpush2.msra.mxu0 0.0
  %3024 = vmatprep.mubr.f32.mxu0 0.0
  %3025 = vmatmul.mubr.f32.gmra.mxu0 %v2813
  %v3026 = vpop.f32.mrf.mxu0
  %v3027 = vadd.f32 %v61, %v3026
  %v3028 = vpop.f32.mrf.mxu0
  %3029 = vdwg.mxu0
  %v3030 = vsel %vm80, %v3027, -inf
  %v3031 = vsel %vm407, %v3030, -inf
  %3032 = vmax.xlane.f32.xlu0 %v3031
  %v3033 = vpop.xlane.xlu0 %3032
  %v3034 = vsel %vm80, -inf, %v3027
  %v3035 = vsel %vm407, %v3034, -inf
  %3036 = vmax.xlane.f32.xlu0 %v3035
  %v3037 = vpop.xlane.xlu0 %3036
  %v3038 = vsel %vm80, %v3033, %v3037
  %v3039 = vsub.f32 %v3027, %v3038
  %v3040 = vmul.f32 %v3039, 1.442695
  %v3041 = vpow.pop %v3040
  %v3042 = vsel %vm80, %v3041, 0.0
  %v3043 = vsel %vm407, %v3042, 0.0
  %3044 = vadd.xlane.f32.xlu0 %v3043
  %v3045 = vpop.xlane.xlu0 %3044
  %v3046 = vsel %vm80, 0.0, %v3041
  %v3047 = vsel %vm407, %v3046, 0.0
  %3048 = vadd.xlane.f32.xlu0 %v3047
  %v3049 = vpop.xlane.xlu0 %3048
  %v3050 = vsel %vm80, %v3045, %v3049
  %v3051 = vrcp.pop %v3050
  %v3052 = vmul.f32 %v3041, %v3051
  %3054 = vrot.lane.b32.xlu0 %v3052, 16
  %v3055 = vpop.permute.xlu0 %3054
  %3057 = vrot.lane.b32.xlu0 %v3052, 32
  %v3058 = vpop.permute.xlu0 %3057
  %3060 = vrot.lane.b32.xlu0 %v3052, 48
  %v3061 = vpop.permute.xlu0 %3060
  %v3063 = vsel %vm407, %v3052, %v3055
  %v3064 = vsel %vm441, %v3063, %v3058
  %v3065 = vsel %vm443, %v3064, %v3061
  %v3066 = vmul.f32 %v3065, %v77
  %v3068 = vsel %vm454, %v3066, 0
  %3070 = vmatprep.subr.mxu0 0.0
  %3071 = vmatpush1.msra.mxu0 0.0
  %3072 = vmatprep.subr.mxu0 0.0
  %3073 = vmatpush1.msra.mxu0 0.0
  %3074 = vmatprep.subr.mxu0 0.0
  %3075 = vmatpush1.msra.mxu0 0.0
  %3076 = vmatprep.subr.mxu0 0.0
  %3077 = vmatpush1.msra.mxu0 0.0
  %3078 = vmatprep.subr.mxu0 0.0
  %3079 = vmatpush1.msra.mxu0 0.0
  %3080 = vmatprep.subr.mxu0 0.0
  %3081 = vmatpush1.msra.mxu0 0.0
  %3082 = vmatprep.subr.mxu0 0.0
  %3083 = vmatpush1.msra.mxu0 0.0
  %3084 = vmatprep.subr.mxu0 0.0
  %3085 = vmatpush1.msra.mxu0 0.0
  %3086 = vmatprep.subr.mxu0 0.0
  %3087 = vmatpush1.msra.mxu0 %v453
  %3088 = vmatprep.subr.mxu0 0.0
  %3089 = vmatpush1.msra.mxu0 %v452
  %3090 = vmatprep.subr.mxu0 0.0
  %3091 = vmatpush1.msra.mxu0 %v451
  %3092 = vmatprep.subr.mxu0 0.0
  %3093 = vmatpush1.msra.mxu0 %v450
  %3094 = vmatprep.subr.mxu0 0.0
  %3095 = vmatpush1.msra.mxu0 %v449
  %3096 = vmatprep.subr.mxu0 0.0
  %3097 = vmatpush1.msra.mxu0 %v448
  %3098 = vmatprep.subr.mxu0 0.0
  %3099 = vmatpush1.msra.mxu0 %v447
  %3100 = vmatprep.subr.mxu0 0.0
  %3101 = vmatpush1.msra.mxu0 %v446
  %3102 = vmatprep.subr.mxu0 0.0
  %3103 = vmatpush2.msra.mxu0 0.0
  %3104 = vmatprep.subr.mxu0 0.0
  %3105 = vmatpush2.msra.mxu0 0.0
  %3106 = vmatprep.subr.mxu0 0.0
  %3107 = vmatpush2.msra.mxu0 0.0
  %3108 = vmatprep.subr.mxu0 0.0
  %3109 = vmatpush2.msra.mxu0 0.0
  %3110 = vmatprep.subr.mxu0 0.0
  %3111 = vmatpush2.msra.mxu0 0.0
  %3112 = vmatprep.subr.mxu0 0.0
  %3113 = vmatpush2.msra.mxu0 0.0
  %3114 = vmatprep.subr.mxu0 0.0
  %3115 = vmatpush2.msra.mxu0 0.0
  %3116 = vmatprep.subr.mxu0 0.0
  %3117 = vmatpush2.msra.mxu0 0.0
  %3118 = vmatprep.subr.mxu0 0.0
  %3119 = vmatpush2.msra.mxu0 0.0
  %3120 = vmatprep.subr.mxu0 0.0
  %3121 = vmatpush2.msra.mxu0 0.0
  %3122 = vmatprep.subr.mxu0 0.0
  %3123 = vmatpush2.msra.mxu0 0.0
  %3124 = vmatprep.subr.mxu0 0.0
  %3125 = vmatpush2.msra.mxu0 0.0
  %3126 = vmatprep.subr.mxu0 0.0
  %3127 = vmatpush2.msra.mxu0 0.0
  %3128 = vmatprep.subr.mxu0 0.0
  %3129 = vmatpush2.msra.mxu0 0.0
  %3130 = vmatprep.subr.mxu0 0.0
  %3131 = vmatpush2.msra.mxu0 0.0
  %3132 = vmatprep.subr.mxu0 0.0
  %3133 = vmatpush2.msra.mxu0 0.0
  %3134 = vmatprep.mubr.f32.mxu0 0.0
  %3135 = vmatmul.mubr.f32.gmra.mxu0 %v3068
  %v3136 = vpop.f32.mrf.mxu0
  %v3137 = vadd.f32 0.0, %v3136
  %v3138 = vpop.f32.mrf.mxu0
  %3139 = vdwg.mxu0
  %3140 = vmatprep.subr.mxu0 0.0
  %3141 = vmatpush1.msra.mxu0 0.0
  %3142 = vmatprep.subr.mxu0 0.0
  %3143 = vmatpush1.msra.mxu0 0.0
  %3144 = vmatprep.subr.mxu0 0.0
  %3145 = vmatpush1.msra.mxu0 0.0
  %3146 = vmatprep.subr.mxu0 0.0
  %3147 = vmatpush1.msra.mxu0 0.0
  %3148 = vmatprep.subr.mxu0 0.0
  %3149 = vmatpush1.msra.mxu0 0.0
  %3150 = vmatprep.subr.mxu0 0.0
  %3151 = vmatpush1.msra.mxu0 0.0
  %3152 = vmatprep.subr.mxu0 0.0
  %3153 = vmatpush1.msra.mxu0 0.0
  %3154 = vmatprep.subr.mxu0 0.0
  %3155 = vmatpush1.msra.mxu0 0.0
  %3156 = vmatprep.subr.mxu0 0.0
  %3157 = vmatpush1.msra.mxu0 0.0
  %3158 = vmatprep.subr.mxu0 0.0
  %3159 = vmatpush1.msra.mxu0 0.0
  %3160 = vmatprep.subr.mxu0 0.0
  %3161 = vmatpush1.msra.mxu0 0.0
  %3162 = vmatprep.subr.mxu0 0.0
  %3163 = vmatpush1.msra.mxu0 0.0
  %3164 = vmatprep.subr.mxu0 0.0
  %3165 = vmatpush1.msra.mxu0 0.0
  %3166 = vmatprep.subr.mxu0 0.0
  %3167 = vmatpush1.msra.mxu0 0.0
  %3168 = vmatprep.subr.mxu0 0.0
  %3169 = vmatpush1.msra.mxu0 %v529
  %3170 = vmatprep.subr.mxu0 0.0
  %3171 = vmatpush1.msra.mxu0 %v528
  %3172 = vmatprep.subr.mxu0 0.0
  %3173 = vmatpush2.msra.mxu0 0.0
  %3174 = vmatprep.subr.mxu0 0.0
  %3175 = vmatpush2.msra.mxu0 0.0
  %3176 = vmatprep.subr.mxu0 0.0
  %3177 = vmatpush2.msra.mxu0 0.0
  %3178 = vmatprep.subr.mxu0 0.0
  %3179 = vmatpush2.msra.mxu0 0.0
  %3180 = vmatprep.subr.mxu0 0.0
  %3181 = vmatpush2.msra.mxu0 0.0
  %3182 = vmatprep.subr.mxu0 0.0
  %3183 = vmatpush2.msra.mxu0 0.0
  %3184 = vmatprep.subr.mxu0 0.0
  %3185 = vmatpush2.msra.mxu0 0.0
  %3186 = vmatprep.subr.mxu0 0.0
  %3187 = vmatpush2.msra.mxu0 0.0
  %3188 = vmatprep.subr.mxu0 0.0
  %3189 = vmatpush2.msra.mxu0 0.0
  %3190 = vmatprep.subr.mxu0 0.0
  %3191 = vmatpush2.msra.mxu0 0.0
  %3192 = vmatprep.subr.mxu0 0.0
  %3193 = vmatpush2.msra.mxu0 0.0
  %3194 = vmatprep.subr.mxu0 0.0
  %3195 = vmatpush2.msra.mxu0 0.0
  %3196 = vmatprep.subr.mxu0 0.0
  %3197 = vmatpush2.msra.mxu0 0.0
  %3198 = vmatprep.subr.mxu0 0.0
  %3199 = vmatpush2.msra.mxu0 0.0
  %3200 = vmatprep.subr.mxu0 0.0
  %3201 = vmatpush2.msra.mxu0 0.0
  %3202 = vmatprep.subr.mxu0 0.0
  %3203 = vmatpush2.msra.mxu0 0.0
  %3204 = vmatprep.mubr.f32.mxu0 0.0
  %3205 = vmatmul.mubr.f32.gmra.mxu0 %v2816
  %v3206 = vpop.f32.mrf.mxu0
  %v3207 = vadd.f32 0.0, %v3206
  %v3208 = vpop.f32.mrf.mxu0
  %3209 = vdwg.mxu0
  %v3210 = vadd.f32 %v2885, %v3207
  %v3211 = vxor.u32 %v3210, 2147483648
  %v3212 = vmul.f32 %v3211, 1.442695
  %v3213 = vpow.pop %v3212
  %v3214 = vadd.f32 %v3213, 1.0
  %v3215 = vrcp.pop %v3214
  %v3216 = vmul.f32 1.0, %v3215
  %3217 = vrot.lane.b32.xlu0 %v2805, 16
  %v3218 = vpop.permute.xlu0 %3217
  %v3220 = vmul.f32 %v3216, %v3218
  %3222 = vrot.lane.b32.xlu0 %v3220, 112
  %v3223 = vpop.permute.xlu0 %3222
  %v3224 = vsel %vm407, %v3223, 0
  %3226 = vmatprep.subr.mxu0 0.0
  %3227 = vmatpush1.msra.mxu0 0.0
  %3228 = vmatprep.subr.mxu0 0.0
  %3229 = vmatpush1.msra.mxu0 0.0
  %3230 = vmatprep.subr.mxu0 0.0
  %3231 = vmatpush1.msra.mxu0 0.0
  %3232 = vmatprep.subr.mxu0 0.0
  %3233 = vmatpush1.msra.mxu0 0.0
  %3234 = vmatprep.subr.mxu0 0.0
  %3235 = vmatpush1.msra.mxu0 0.0
  %3236 = vmatprep.subr.mxu0 0.0
  %3237 = vmatpush1.msra.mxu0 0.0
  %3238 = vmatprep.subr.mxu0 0.0
  %3239 = vmatpush1.msra.mxu0 0.0
  %3240 = vmatprep.subr.mxu0 0.0
  %3241 = vmatpush1.msra.mxu0 0.0
  %3242 = vmatprep.subr.mxu0 0.0
  %3243 = vmatpush1.msra.mxu0 0.0
  %3244 = vmatprep.subr.mxu0 0.0
  %3245 = vmatpush1.msra.mxu0 0.0
  %3246 = vmatprep.subr.mxu0 0.0
  %3247 = vmatpush1.msra.mxu0 0.0
  %3248 = vmatprep.subr.mxu0 0.0
  %3249 = vmatpush1.msra.mxu0 0.0
  %3250 = vmatprep.subr.mxu0 0.0
  %3251 = vmatpush1.msra.mxu0 0.0
  %3252 = vmatprep.subr.mxu0 0.0
  %3253 = vmatpush1.msra.mxu0 0.0
  %3254 = vmatprep.subr.mxu0 0.0
  %3255 = vmatpush1.msra.mxu0 %v612
  %3256 = vmatprep.subr.mxu0 0.0
  %3257 = vmatpush1.msra.mxu0 %v611
  %3258 = vmatprep.subr.mxu0 0.0
  %3259 = vmatpush2.msra.mxu0 0.0
  %3260 = vmatprep.subr.mxu0 0.0
  %3261 = vmatpush2.msra.mxu0 0.0
  %3262 = vmatprep.subr.mxu0 0.0
  %3263 = vmatpush2.msra.mxu0 0.0
  %3264 = vmatprep.subr.mxu0 0.0
  %3265 = vmatpush2.msra.mxu0 0.0
  %3266 = vmatprep.subr.mxu0 0.0
  %3267 = vmatpush2.msra.mxu0 0.0
  %3268 = vmatprep.subr.mxu0 0.0
  %3269 = vmatpush2.msra.mxu0 0.0
  %3270 = vmatprep.subr.mxu0 0.0
  %3271 = vmatpush2.msra.mxu0 0.0
  %3272 = vmatprep.subr.mxu0 0.0
  %3273 = vmatpush2.msra.mxu0 0.0
  %3274 = vmatprep.subr.mxu0 0.0
  %3275 = vmatpush2.msra.mxu0 0.0
  %3276 = vmatprep.subr.mxu0 0.0
  %3277 = vmatpush2.msra.mxu0 0.0
  %3278 = vmatprep.subr.mxu0 0.0
  %3279 = vmatpush2.msra.mxu0 0.0
  %3280 = vmatprep.subr.mxu0 0.0
  %3281 = vmatpush2.msra.mxu0 0.0
  %3282 = vmatprep.subr.mxu0 0.0
  %3283 = vmatpush2.msra.mxu0 0.0
  %3284 = vmatprep.subr.mxu0 0.0
  %3285 = vmatpush2.msra.mxu0 0.0
  %3286 = vmatprep.subr.mxu0 0.0
  %3287 = vmatpush2.msra.mxu0 0.0
  %3288 = vmatprep.subr.mxu0 0.0
  %3289 = vmatpush2.msra.mxu0 0.0
  %3290 = vmatprep.mubr.f32.mxu0 0.0
  %3291 = vmatmul.mubr.f32.gmra.mxu0 %v3224
  %v3292 = vpop.f32.mrf.mxu0
  %v3293 = vadd.f32 0.0, %v3292
  %v3294 = vpop.f32.mrf.mxu0
  %3295 = vdwg.mxu0
  %v3296 = vadd.f32 %v2957, %v3293
  %v3297 = vadd.f32 %v3296, %v3137
  %v3298 = vtanh.pop %v3297
  %v3299 = vsub.f32 %v3298, %v2805
  %v3300 = vmul.f32 %v3216, %v3299
  %v3301 = vadd.f32 %v2805, %v3300
  %3302 = vrot.lane.b32.xlu0 %v2813, 112
  %v3303 = vpop.permute.xlu0 %3302
  %3305 = vrot.lane.b32.xlu0 %v3301, 112
  %v3306 = vpop.permute.xlu0 %3305
  %v3308 = vsel %vm699, 0.0, %v3306
  %v3309 = vsel %vm81, %v3308, %v3303
  %v3310 = vsel %vm407, %v3301, 0
  %3312 = vmatprep.subr.mxu0 0.0
  %3313 = vmatpush1.msra.mxu0 0.0
  %3314 = vmatprep.subr.mxu0 0.0
  %3315 = vmatpush1.msra.mxu0 0.0
  %3316 = vmatprep.subr.mxu0 0.0
  %3317 = vmatpush1.msra.mxu0 0.0
  %3318 = vmatprep.subr.mxu0 0.0
  %3319 = vmatpush1.msra.mxu0 0.0
  %3320 = vmatprep.subr.mxu0 0.0
  %3321 = vmatpush1.msra.mxu0 0.0
  %3322 = vmatprep.subr.mxu0 0.0
  %3323 = vmatpush1.msra.mxu0 0.0
  %3324 = vmatprep.subr.mxu0 0.0
  %3325 = vmatpush1.msra.mxu0 0.0
  %3326 = vmatprep.subr.mxu0 0.0
  %3327 = vmatpush1.msra.mxu0 0.0
  %3328 = vmatprep.subr.mxu0 0.0
  %3329 = vmatpush1.msra.mxu0 0.0
  %3330 = vmatprep.subr.mxu0 0.0
  %3331 = vmatpush1.msra.mxu0 0.0
  %3332 = vmatprep.subr.mxu0 0.0
  %3333 = vmatpush1.msra.mxu0 0.0
  %3334 = vmatprep.subr.mxu0 0.0
  %3335 = vmatpush1.msra.mxu0 0.0
  %3336 = vmatprep.subr.mxu0 0.0
  %3337 = vmatpush1.msra.mxu0 0.0
  %3338 = vmatprep.subr.mxu0 0.0
  %3339 = vmatpush1.msra.mxu0 0.0
  %3340 = vmatprep.subr.mxu0 0.0
  %3341 = vmatpush1.msra.mxu0 %v2815
  %3342 = vmatprep.subr.mxu0 0.0
  %3343 = vmatpush1.msra.mxu0 %v2814
  %3344 = vmatprep.subr.mxu0 0.0
  %3345 = vmatpush2.msra.mxu0 0.0
  %3346 = vmatprep.subr.mxu0 0.0
  %3347 = vmatpush2.msra.mxu0 0.0
  %3348 = vmatprep.subr.mxu0 0.0
  %3349 = vmatpush2.msra.mxu0 0.0
  %3350 = vmatprep.subr.mxu0 0.0
  %3351 = vmatpush2.msra.mxu0 0.0
  %3352 = vmatprep.subr.mxu0 0.0
  %3353 = vmatpush2.msra.mxu0 0.0
  %3354 = vmatprep.subr.mxu0 0.0
  %3355 = vmatpush2.msra.mxu0 0.0
  %3356 = vmatprep.subr.mxu0 0.0
  %3357 = vmatpush2.msra.mxu0 0.0
  %3358 = vmatprep.subr.mxu0 0.0
  %3359 = vmatpush2.msra.mxu0 0.0
  %3360 = vmatprep.subr.mxu0 0.0
  %3361 = vmatpush2.msra.mxu0 0.0
  %3362 = vmatprep.subr.mxu0 0.0
  %3363 = vmatpush2.msra.mxu0 0.0
  %3364 = vmatprep.subr.mxu0 0.0
  %3365 = vmatpush2.msra.mxu0 0.0
  %3366 = vmatprep.subr.mxu0 0.0
  %3367 = vmatpush2.msra.mxu0 0.0
  %3368 = vmatprep.subr.mxu0 0.0
  %3369 = vmatpush2.msra.mxu0 0.0
  %3370 = vmatprep.subr.mxu0 0.0
  %3371 = vmatpush2.msra.mxu0 0.0
  %3372 = vmatprep.subr.mxu0 0.0
  %3373 = vmatpush2.msra.mxu0 0.0
  %3374 = vmatprep.subr.mxu0 0.0
  %3375 = vmatpush2.msra.mxu0 0.0
  %3376 = vmatprep.mubr.f32.mxu0 0.0
  %3377 = vmatmul.mubr.f32.gmra.mxu0 %v3310
  %v3378 = vpop.f32.mrf.mxu0
  %v3379 = vadd.f32 %v68, %v3378
  %v3380 = vpop.f32.mrf.mxu0
  %3381 = vdwg.mxu0
  %3382 = vmatprep.subr.mxu0 0.0
  %3383 = vmatpush1.msra.mxu0 0.0
  %3384 = vmatprep.subr.mxu0 0.0
  %3385 = vmatpush1.msra.mxu0 0.0
  %3386 = vmatprep.subr.mxu0 0.0
  %3387 = vmatpush1.msra.mxu0 0.0
  %3388 = vmatprep.subr.mxu0 0.0
  %3389 = vmatpush1.msra.mxu0 0.0
  %3390 = vmatprep.subr.mxu0 0.0
  %3391 = vmatpush1.msra.mxu0 0.0
  %3392 = vmatprep.subr.mxu0 0.0
  %3393 = vmatpush1.msra.mxu0 0.0
  %3394 = vmatprep.subr.mxu0 0.0
  %3395 = vmatpush1.msra.mxu0 0.0
  %3396 = vmatprep.subr.mxu0 0.0
  %3397 = vmatpush1.msra.mxu0 0.0
  %3398 = vmatprep.subr.mxu0 0.0
  %3399 = vmatpush1.msra.mxu0 0.0
  %3400 = vmatprep.subr.mxu0 0.0
  %3401 = vmatpush1.msra.mxu0 0.0
  %3402 = vmatprep.subr.mxu0 0.0
  %3403 = vmatpush1.msra.mxu0 0.0
  %3404 = vmatprep.subr.mxu0 0.0
  %3405 = vmatpush1.msra.mxu0 0.0
  %3406 = vmatprep.subr.mxu0 0.0
  %3407 = vmatpush1.msra.mxu0 0.0
  %3408 = vmatprep.subr.mxu0 0.0
  %3409 = vmatpush1.msra.mxu0 0.0
  %3410 = vmatprep.subr.mxu0 0.0
  %3411 = vmatpush1.msra.mxu0 %v2889
  %3412 = vmatprep.subr.mxu0 0.0
  %3413 = vmatpush1.msra.mxu0 %v2888
  %3414 = vmatprep.subr.mxu0 0.0
  %3415 = vmatpush2.msra.mxu0 0.0
  %3416 = vmatprep.subr.mxu0 0.0
  %3417 = vmatpush2.msra.mxu0 0.0
  %3418 = vmatprep.subr.mxu0 0.0
  %3419 = vmatpush2.msra.mxu0 0.0
  %3420 = vmatprep.subr.mxu0 0.0
  %3421 = vmatpush2.msra.mxu0 0.0
  %3422 = vmatprep.subr.mxu0 0.0
  %3423 = vmatpush2.msra.mxu0 0.0
  %3424 = vmatprep.subr.mxu0 0.0
  %3425 = vmatpush2.msra.mxu0 0.0
  %3426 = vmatprep.subr.mxu0 0.0
  %3427 = vmatpush2.msra.mxu0 0.0
  %3428 = vmatprep.subr.mxu0 0.0
  %3429 = vmatpush2.msra.mxu0 0.0
  %3430 = vmatprep.subr.mxu0 0.0
  %3431 = vmatpush2.msra.mxu0 0.0
  %3432 = vmatprep.subr.mxu0 0.0
  %3433 = vmatpush2.msra.mxu0 0.0
  %3434 = vmatprep.subr.mxu0 0.0
  %3435 = vmatpush2.msra.mxu0 0.0
  %3436 = vmatprep.subr.mxu0 0.0
  %3437 = vmatpush2.msra.mxu0 0.0
  %3438 = vmatprep.subr.mxu0 0.0
  %3439 = vmatpush2.msra.mxu0 0.0
  %3440 = vmatprep.subr.mxu0 0.0
  %3441 = vmatpush2.msra.mxu0 0.0
  %3442 = vmatprep.subr.mxu0 0.0
  %3443 = vmatpush2.msra.mxu0 0.0
  %3444 = vmatprep.subr.mxu0 0.0
  %3445 = vmatpush2.msra.mxu0 0.0
  %3446 = vmatprep.mubr.f32.mxu0 0.0
  %3447 = vmatmul.mubr.f32.gmra.mxu0 %v3310
  %v3448 = vpop.f32.mrf.mxu0
  %v3449 = vadd.f32 %v75, %v3448
  %v3450 = vpop.f32.mrf.mxu0
  %3451 = vdwg.mxu0
  %3452 = vmatprep.subr.mxu0 0.0
  %3453 = vmatpush1.msra.mxu0 %v335
  %3454 = vmatprep.subr.mxu0 0.0
  %3455 = vmatpush1.msra.mxu0 %v334
  %3456 = vmatprep.subr.mxu0 0.0
  %3457 = vmatpush1.msra.mxu0 %v333
  %3458 = vmatprep.subr.mxu0 0.0
  %3459 = vmatpush1.msra.mxu0 %v332
  %3460 = vmatprep.subr.mxu0 0.0
  %3461 = vmatpush1.msra.mxu0 %v331
  %3462 = vmatprep.subr.mxu0 0.0
  %3463 = vmatpush1.msra.mxu0 %v330
  %3464 = vmatprep.subr.mxu0 0.0
  %3465 = vmatpush1.msra.mxu0 %v329
  %3466 = vmatprep.subr.mxu0 0.0
  %3467 = vmatpush1.msra.mxu0 %v328
  %3468 = vmatprep.subr.mxu0 0.0
  %3469 = vmatpush1.msra.mxu0 %v327
  %3470 = vmatprep.subr.mxu0 0.0
  %3471 = vmatpush1.msra.mxu0 %v326
  %3472 = vmatprep.subr.mxu0 0.0
  %3473 = vmatpush1.msra.mxu0 %v325
  %3474 = vmatprep.subr.mxu0 0.0
  %3475 = vmatpush1.msra.mxu0 %v324
  %3476 = vmatprep.subr.mxu0 0.0
  %3477 = vmatpush1.msra.mxu0 %v323
  %3478 = vmatprep.subr.mxu0 0.0
  %3479 = vmatpush1.msra.mxu0 %v322
  %3480 = vmatprep.subr.mxu0 0.0
  %3481 = vmatpush1.msra.mxu0 %v321
  %3482 = vmatprep.subr.mxu0 0.0
  %3483 = vmatpush1.msra.mxu0 %v320
  %3484 = vmatprep.subr.mxu0 0.0
  %3485 = vmatpush2.msra.mxu0 0.0
  %3486 = vmatprep.subr.mxu0 0.0
  %3487 = vmatpush2.msra.mxu0 0.0
  %3488 = vmatprep.subr.mxu0 0.0
  %3489 = vmatpush2.msra.mxu0 0.0
  %3490 = vmatprep.subr.mxu0 0.0
  %3491 = vmatpush2.msra.mxu0 0.0
  %3492 = vmatprep.subr.mxu0 0.0
  %3493 = vmatpush2.msra.mxu0 0.0
  %3494 = vmatprep.subr.mxu0 0.0
  %3495 = vmatpush2.msra.mxu0 0.0
  %3496 = vmatprep.subr.mxu0 0.0
  %3497 = vmatpush2.msra.mxu0 0.0
  %3498 = vmatprep.subr.mxu0 0.0
  %3499 = vmatpush2.msra.mxu0 0.0
  %3500 = vmatprep.subr.mxu0 0.0
  %3501 = vmatpush2.msra.mxu0 0.0
  %3502 = vmatprep.subr.mxu0 0.0
  %3503 = vmatpush2.msra.mxu0 0.0
  %3504 = vmatprep.subr.mxu0 0.0
  %3505 = vmatpush2.msra.mxu0 0.0
  %3506 = vmatprep.subr.mxu0 0.0
  %3507 = vmatpush2.msra.mxu0 0.0
  %3508 = vmatprep.subr.mxu0 0.0
  %3509 = vmatpush2.msra.mxu0 0.0
  %3510 = vmatprep.subr.mxu0 0.0
  %3511 = vmatpush2.msra.mxu0 0.0
  %3512 = vmatprep.subr.mxu0 0.0
  %3513 = vmatpush2.msra.mxu0 0.0
  %3514 = vmatprep.subr.mxu0 0.0
  %3515 = vmatpush2.msra.mxu0 0.0
  %3516 = vmatprep.mubr.f32.mxu0 0.0
  %3517 = vmatmul.mubr.f32.gmra.mxu0 %v3309
  %v3518 = vpop.f32.mrf.mxu0
  %v3519 = vadd.f32 %v61, %v3518
  %v3520 = vpop.f32.mrf.mxu0
  %3521 = vdwg.mxu0
  %v3522 = vsel %vm80, %v3519, -inf
  %v3523 = vsel %vm407, %v3522, -inf
  %3524 = vmax.xlane.f32.xlu0 %v3523
  %v3525 = vpop.xlane.xlu0 %3524
  %v3526 = vsel %vm80, -inf, %v3519
  %v3527 = vsel %vm407, %v3526, -inf
  %3528 = vmax.xlane.f32.xlu0 %v3527
  %v3529 = vpop.xlane.xlu0 %3528
  %v3530 = vsel %vm80, %v3525, %v3529
  %v3531 = vsub.f32 %v3519, %v3530
  %v3532 = vmul.f32 %v3531, 1.442695
  %v3533 = vpow.pop %v3532
  %v3534 = vsel %vm80, %v3533, 0.0
  %v3535 = vsel %vm407, %v3534, 0.0
  %3536 = vadd.xlane.f32.xlu0 %v3535
  %v3537 = vpop.xlane.xlu0 %3536
  %v3538 = vsel %vm80, 0.0, %v3533
  %v3539 = vsel %vm407, %v3538, 0.0
  %3540 = vadd.xlane.f32.xlu0 %v3539
  %v3541 = vpop.xlane.xlu0 %3540
  %v3542 = vsel %vm80, %v3537, %v3541
  %v3543 = vrcp.pop %v3542
  %v3544 = vmul.f32 %v3533, %v3543
  %3546 = vrot.lane.b32.xlu0 %v3544, 16
  %v3547 = vpop.permute.xlu0 %3546
  %3549 = vrot.lane.b32.xlu0 %v3544, 32
  %v3550 = vpop.permute.xlu0 %3549
  %3552 = vrot.lane.b32.xlu0 %v3544, 48
  %v3553 = vpop.permute.xlu0 %3552
  %v3555 = vsel %vm407, %v3544, %v3547
  %v3556 = vsel %vm441, %v3555, %v3550
  %v3557 = vsel %vm443, %v3556, %v3553
  %v3558 = vmul.f32 %v3557, %v77
  %v3560 = vsel %vm454, %v3558, 0
  %3562 = vmatprep.subr.mxu0 0.0
  %3563 = vmatpush1.msra.mxu0 0.0
  %3564 = vmatprep.subr.mxu0 0.0
  %3565 = vmatpush1.msra.mxu0 0.0
  %3566 = vmatprep.subr.mxu0 0.0
  %3567 = vmatpush1.msra.mxu0 0.0
  %3568 = vmatprep.subr.mxu0 0.0
  %3569 = vmatpush1.msra.mxu0 0.0
  %3570 = vmatprep.subr.mxu0 0.0
  %3571 = vmatpush1.msra.mxu0 0.0
  %3572 = vmatprep.subr.mxu0 0.0
  %3573 = vmatpush1.msra.mxu0 0.0
  %3574 = vmatprep.subr.mxu0 0.0
  %3575 = vmatpush1.msra.mxu0 0.0
  %3576 = vmatprep.subr.mxu0 0.0
  %3577 = vmatpush1.msra.mxu0 0.0
  %3578 = vmatprep.subr.mxu0 0.0
  %3579 = vmatpush1.msra.mxu0 %v453
  %3580 = vmatprep.subr.mxu0 0.0
  %3581 = vmatpush1.msra.mxu0 %v452
  %3582 = vmatprep.subr.mxu0 0.0
  %3583 = vmatpush1.msra.mxu0 %v451
  %3584 = vmatprep.subr.mxu0 0.0
  %3585 = vmatpush1.msra.mxu0 %v450
  %3586 = vmatprep.subr.mxu0 0.0
  %3587 = vmatpush1.msra.mxu0 %v449
  %3588 = vmatprep.subr.mxu0 0.0
  %3589 = vmatpush1.msra.mxu0 %v448
  %3590 = vmatprep.subr.mxu0 0.0
  %3591 = vmatpush1.msra.mxu0 %v447
  %3592 = vmatprep.subr.mxu0 0.0
  %3593 = vmatpush1.msra.mxu0 %v446
  %3594 = vmatprep.subr.mxu0 0.0
  %3595 = vmatpush2.msra.mxu0 0.0
  %3596 = vmatprep.subr.mxu0 0.0
  %3597 = vmatpush2.msra.mxu0 0.0
  %3598 = vmatprep.subr.mxu0 0.0
  %3599 = vmatpush2.msra.mxu0 0.0
  %3600 = vmatprep.subr.mxu0 0.0
  %3601 = vmatpush2.msra.mxu0 0.0
  %3602 = vmatprep.subr.mxu0 0.0
  %3603 = vmatpush2.msra.mxu0 0.0
  %3604 = vmatprep.subr.mxu0 0.0
  %3605 = vmatpush2.msra.mxu0 0.0
  %3606 = vmatprep.subr.mxu0 0.0
  %3607 = vmatpush2.msra.mxu0 0.0
  %3608 = vmatprep.subr.mxu0 0.0
  %3609 = vmatpush2.msra.mxu0 0.0
  %3610 = vmatprep.subr.mxu0 0.0
  %3611 = vmatpush2.msra.mxu0 0.0
  %3612 = vmatprep.subr.mxu0 0.0
  %3613 = vmatpush2.msra.mxu0 0.0
  %3614 = vmatprep.subr.mxu0 0.0
  %3615 = vmatpush2.msra.mxu0 0.0
  %3616 = vmatprep.subr.mxu0 0.0
  %3617 = vmatpush2.msra.mxu0 0.0
  %3618 = vmatprep.subr.mxu0 0.0
  %3619 = vmatpush2.msra.mxu0 0.0
  %3620 = vmatprep.subr.mxu0 0.0
  %3621 = vmatpush2.msra.mxu0 0.0
  %3622 = vmatprep.subr.mxu0 0.0
  %3623 = vmatpush2.msra.mxu0 0.0
  %3624 = vmatprep.subr.mxu0 0.0
  %3625 = vmatpush2.msra.mxu0 0.0
  %3626 = vmatprep.mubr.f32.mxu0 0.0
  %3627 = vmatmul.mubr.f32.gmra.mxu0 %v3560
  %v3628 = vpop.f32.mrf.mxu0
  %v3629 = vadd.f32 0.0, %v3628
  %v3630 = vpop.f32.mrf.mxu0
  %3631 = vdwg.mxu0
  %3632 = vmatprep.subr.mxu0 0.0
  %3633 = vmatpush1.msra.mxu0 0.0
  %3634 = vmatprep.subr.mxu0 0.0
  %3635 = vmatpush1.msra.mxu0 0.0
  %3636 = vmatprep.subr.mxu0 0.0
  %3637 = vmatpush1.msra.mxu0 0.0
  %3638 = vmatprep.subr.mxu0 0.0
  %3639 = vmatpush1.msra.mxu0 0.0
  %3640 = vmatprep.subr.mxu0 0.0
  %3641 = vmatpush1.msra.mxu0 0.0
  %3642 = vmatprep.subr.mxu0 0.0
  %3643 = vmatpush1.msra.mxu0 0.0
  %3644 = vmatprep.subr.mxu0 0.0
  %3645 = vmatpush1.msra.mxu0 0.0
  %3646 = vmatprep.subr.mxu0 0.0
  %3647 = vmatpush1.msra.mxu0 0.0
  %3648 = vmatprep.subr.mxu0 0.0
  %3649 = vmatpush1.msra.mxu0 0.0
  %3650 = vmatprep.subr.mxu0 0.0
  %3651 = vmatpush1.msra.mxu0 0.0
  %3652 = vmatprep.subr.mxu0 0.0
  %3653 = vmatpush1.msra.mxu0 0.0
  %3654 = vmatprep.subr.mxu0 0.0
  %3655 = vmatpush1.msra.mxu0 0.0
  %3656 = vmatprep.subr.mxu0 0.0
  %3657 = vmatpush1.msra.mxu0 0.0
  %3658 = vmatprep.subr.mxu0 0.0
  %3659 = vmatpush1.msra.mxu0 0.0
  %3660 = vmatprep.subr.mxu0 0.0
  %3661 = vmatpush1.msra.mxu0 %v529
  %3662 = vmatprep.subr.mxu0 0.0
  %3663 = vmatpush1.msra.mxu0 %v528
  %3664 = vmatprep.subr.mxu0 0.0
  %3665 = vmatpush2.msra.mxu0 0.0
  %3666 = vmatprep.subr.mxu0 0.0
  %3667 = vmatpush2.msra.mxu0 0.0
  %3668 = vmatprep.subr.mxu0 0.0
  %3669 = vmatpush2.msra.mxu0 0.0
  %3670 = vmatprep.subr.mxu0 0.0
  %3671 = vmatpush2.msra.mxu0 0.0
  %3672 = vmatprep.subr.mxu0 0.0
  %3673 = vmatpush2.msra.mxu0 0.0
  %3674 = vmatprep.subr.mxu0 0.0
  %3675 = vmatpush2.msra.mxu0 0.0
  %3676 = vmatprep.subr.mxu0 0.0
  %3677 = vmatpush2.msra.mxu0 0.0
  %3678 = vmatprep.subr.mxu0 0.0
  %3679 = vmatpush2.msra.mxu0 0.0
  %3680 = vmatprep.subr.mxu0 0.0
  %3681 = vmatpush2.msra.mxu0 0.0
  %3682 = vmatprep.subr.mxu0 0.0
  %3683 = vmatpush2.msra.mxu0 0.0
  %3684 = vmatprep.subr.mxu0 0.0
  %3685 = vmatpush2.msra.mxu0 0.0
  %3686 = vmatprep.subr.mxu0 0.0
  %3687 = vmatpush2.msra.mxu0 0.0
  %3688 = vmatprep.subr.mxu0 0.0
  %3689 = vmatpush2.msra.mxu0 0.0
  %3690 = vmatprep.subr.mxu0 0.0
  %3691 = vmatpush2.msra.mxu0 0.0
  %3692 = vmatprep.subr.mxu0 0.0
  %3693 = vmatpush2.msra.mxu0 0.0
  %3694 = vmatprep.subr.mxu0 0.0
  %3695 = vmatpush2.msra.mxu0 0.0
  %3696 = vmatprep.mubr.f32.mxu0 0.0
  %3697 = vmatmul.mubr.f32.gmra.mxu0 %v3310
  %v3698 = vpop.f32.mrf.mxu0
  %v3699 = vadd.f32 0.0, %v3698
  %v3700 = vpop.f32.mrf.mxu0
  %3701 = vdwg.mxu0
  %v3702 = vadd.f32 %v3379, %v3699
  %v3703 = vxor.u32 %v3702, 2147483648
  %v3704 = vmul.f32 %v3703, 1.442695
  %v3705 = vpow.pop %v3704
  %v3706 = vadd.f32 %v3705, 1.0
  %v3707 = vrcp.pop %v3706
  %v3708 = vmul.f32 1.0, %v3707
  %3709 = vrot.lane.b32.xlu0 %v3301, 16
  %v3710 = vpop.permute.xlu0 %3709
  %v3712 = vmul.f32 %v3708, %v3710
  %3714 = vrot.lane.b32.xlu0 %v3712, 112
  %v3715 = vpop.permute.xlu0 %3714
  %v3716 = vsel %vm407, %v3715, 0
  %3718 = vmatprep.subr.mxu0 0.0
  %3719 = vmatpush1.msra.mxu0 0.0
  %3720 = vmatprep.subr.mxu0 0.0
  %3721 = vmatpush1.msra.mxu0 0.0
  %3722 = vmatprep.subr.mxu0 0.0
  %3723 = vmatpush1.msra.mxu0 0.0
  %3724 = vmatprep.subr.mxu0 0.0
  %3725 = vmatpush1.msra.mxu0 0.0
  %3726 = vmatprep.subr.mxu0 0.0
  %3727 = vmatpush1.msra.mxu0 0.0
  %3728 = vmatprep.subr.mxu0 0.0
  %3729 = vmatpush1.msra.mxu0 0.0
  %3730 = vmatprep.subr.mxu0 0.0
  %3731 = vmatpush1.msra.mxu0 0.0
  %3732 = vmatprep.subr.mxu0 0.0
  %3733 = vmatpush1.msra.mxu0 0.0
  %3734 = vmatprep.subr.mxu0 0.0
  %3735 = vmatpush1.msra.mxu0 0.0
  %3736 = vmatprep.subr.mxu0 0.0
  %3737 = vmatpush1.msra.mxu0 0.0
  %3738 = vmatprep.subr.mxu0 0.0
  %3739 = vmatpush1.msra.mxu0 0.0
  %3740 = vmatprep.subr.mxu0 0.0
  %3741 = vmatpush1.msra.mxu0 0.0
  %3742 = vmatprep.subr.mxu0 0.0
  %3743 = vmatpush1.msra.mxu0 0.0
  %3744 = vmatprep.subr.mxu0 0.0
  %3745 = vmatpush1.msra.mxu0 0.0
  %3746 = vmatprep.subr.mxu0 0.0
  %3747 = vmatpush1.msra.mxu0 %v612
  %3748 = vmatprep.subr.mxu0 0.0
  %3749 = vmatpush1.msra.mxu0 %v611
  %3750 = vmatprep.subr.mxu0 0.0
  %3751 = vmatpush2.msra.mxu0 0.0
  %3752 = vmatprep.subr.mxu0 0.0
  %3753 = vmatpush2.msra.mxu0 0.0
  %3754 = vmatprep.subr.mxu0 0.0
  %3755 = vmatpush2.msra.mxu0 0.0
  %3756 = vmatprep.subr.mxu0 0.0
  %3757 = vmatpush2.msra.mxu0 0.0
  %3758 = vmatprep.subr.mxu0 0.0
  %3759 = vmatpush2.msra.mxu0 0.0
  %3760 = vmatprep.subr.mxu0 0.0
  %3761 = vmatpush2.msra.mxu0 0.0
  %3762 = vmatprep.subr.mxu0 0.0
  %3763 = vmatpush2.msra.mxu0 0.0
  %3764 = vmatprep.subr.mxu0 0.0
  %3765 = vmatpush2.msra.mxu0 0.0
  %3766 = vmatprep.subr.mxu0 0.0
  %3767 = vmatpush2.msra.mxu0 0.0
  %3768 = vmatprep.subr.mxu0 0.0
  %3769 = vmatpush2.msra.mxu0 0.0
  %3770 = vmatprep.subr.mxu0 0.0
  %3771 = vmatpush2.msra.mxu0 0.0
  %3772 = vmatprep.subr.mxu0 0.0
  %3773 = vmatpush2.msra.mxu0 0.0
  %3774 = vmatprep.subr.mxu0 0.0
  %3775 = vmatpush2.msra.mxu0 0.0
  %3776 = vmatprep.subr.mxu0 0.0
  %3777 = vmatpush2.msra.mxu0 0.0
  %3778 = vmatprep.subr.mxu0 0.0
  %3779 = vmatpush2.msra.mxu0 0.0
  %3780 = vmatprep.subr.mxu0 0.0
  %3781 = vmatpush2.msra.mxu0 0.0
  %3782 = vmatprep.mubr.f32.mxu0 0.0
  %3783 = vmatmul.mubr.f32.gmra.mxu0 %v3716
  %v3784 = vpop.f32.mrf.mxu0
  %v3785 = vadd.f32 0.0, %v3784
  %v3786 = vpop.f32.mrf.mxu0
  %3787 = vdwg.mxu0
  %v3788 = vadd.f32 %v3449, %v3785
  %v3789 = vadd.f32 %v3788, %v3629
  %v3790 = vtanh.pop %v3789
  %v3791 = vsub.f32 %v3790, %v3301
  %v3792 = vmul.f32 %v3708, %v3791
  %v3793 = vadd.f32 %v3301, %v3792
  %3795 = vrot.lane.b32.xlu0 %v3793, 32
  %v3796 = vpop.permute.xlu0 %3795
  %v3798 = vsel %vm407, %v2805, %v3710
  %v3799 = vsel %vm441, %v3798, %v3796
  %v3800 = vld [vmem:[%s15] sm:$0xff]
  %v3801 = vld [vmem:[%s15 + $0x8] sm:$0xff]
  %v3802 = vld [vmem:[%s15 + $0x10] sm:$0xff]
  %v3803 = vld [vmem:[%s15 + $0x18] sm:$0xff]
  %v3804 = vld [vmem:[%s15 + $0x20] sm:$0xff]
  %v3805 = vld [vmem:[%s15 + $0x28] sm:$0xff]
  %v3806 = vld [vmem:[%s16] sm:$0x1]
  %v3808 = vlaneseq
  %v3809 = vshrl.u32 %v3808, 7
  %v3810 = vsub.s32 0, %v3809
  %v3811 = vrot.slane %v3806, %v3810
  %v3814 = vsel %vm443, %v3799, 0
  %3816 = vmatprep.subr.mxu0 0.0
  %3817 = vmatpush1.msra.mxu0 0.0
  %3818 = vmatprep.subr.mxu0 0.0
  %3819 = vmatpush1.msra.mxu0 0.0
  %3820 = vmatprep.subr.mxu0 0.0
  %3821 = vmatpush1.msra.mxu0 0.0
  %3822 = vmatprep.subr.mxu0 0.0
  %3823 = vmatpush1.msra.mxu0 0.0
  %3824 = vmatprep.subr.mxu0 0.0
  %3825 = vmatpush1.msra.mxu0 0.0
  %3826 = vmatprep.subr.mxu0 0.0
  %3827 = vmatpush1.msra.mxu0 0.0
  %3828 = vmatprep.subr.mxu0 0.0
  %3829 = vmatpush1.msra.mxu0 0.0
  %3830 = vmatprep.subr.mxu0 0.0
  %3831 = vmatpush1.msra.mxu0 0.0
  %3832 = vmatprep.subr.mxu0 0.0
  %3833 = vmatpush1.msra.mxu0 0.0
  %3834 = vmatprep.subr.mxu0 0.0
  %3835 = vmatpush1.msra.mxu0 0.0
  %3836 = vmatprep.subr.mxu0 0.0
  %3837 = vmatpush1.msra.mxu0 %v3805
  %3838 = vmatprep.subr.mxu0 0.0
  %3839 = vmatpush1.msra.mxu0 %v3804
  %3840 = vmatprep.subr.mxu0 0.0
  %3841 = vmatpush1.msra.mxu0 %v3803
  %3842 = vmatprep.subr.mxu0 0.0
  %3843 = vmatpush1.msra.mxu0 %v3802
  %3844 = vmatprep.subr.mxu0 0.0
  %3845 = vmatpush1.msra.mxu0 %v3801
  %3846 = vmatprep.subr.mxu0 0.0
  %3847 = vmatpush1.msra.mxu0 %v3800
  %3848 = vmatprep.subr.mxu0 0.0
  %3849 = vmatpush2.msra.mxu0 0.0
  %3850 = vmatprep.subr.mxu0 0.0
  %3851 = vmatpush2.msra.mxu0 0.0
  %3852 = vmatprep.subr.mxu0 0.0
  %3853 = vmatpush2.msra.mxu0 0.0
  %3854 = vmatprep.subr.mxu0 0.0
  %3855 = vmatpush2.msra.mxu0 0.0
  %3856 = vmatprep.subr.mxu0 0.0
  %3857 = vmatpush2.msra.mxu0 0.0
  %3858 = vmatprep.subr.mxu0 0.0
  %3859 = vmatpush2.msra.mxu0 0.0
  %3860 = vmatprep.subr.mxu0 0.0
  %3861 = vmatpush2.msra.mxu0 0.0
  %3862 = vmatprep.subr.mxu0 0.0
  %3863 = vmatpush2.msra.mxu0 0.0
  %3864 = vmatprep.subr.mxu0 0.0
  %3865 = vmatpush2.msra.mxu0 0.0
  %3866 = vmatprep.subr.mxu0 0.0
  %3867 = vmatpush2.msra.mxu0 0.0
  %3868 = vmatprep.subr.mxu0 0.0
  %3869 = vmatpush2.msra.mxu0 0.0
  %3870 = vmatprep.subr.mxu0 0.0
  %3871 = vmatpush2.msra.mxu0 0.0
  %3872 = vmatprep.subr.mxu0 0.0
  %3873 = vmatpush2.msra.mxu0 0.0
  %3874 = vmatprep.subr.mxu0 0.0
  %3875 = vmatpush2.msra.mxu0 0.0
  %3876 = vmatprep.subr.mxu0 0.0
  %3877 = vmatpush2.msra.mxu0 0.0
  %3878 = vmatprep.subr.mxu0 0.0
  %3879 = vmatpush2.msra.mxu0 0.0
  %3880 = vmatprep.mubr.f32.mxu0 0.0
  %3881 = vmatmul.mubr.f32.gmra.mxu0 %v3814
  %v3882 = vpop.f32.mrf.mxu0
  %v3883 = vadd.f32 %v3811, %v3882
  %v3884 = vpop.f32.mrf.mxu0
  %3885 = vdwg.mxu0
  %vm3886 = vcmask 48128
  %3887 = vst.msk [vmem:[%s17] sm:$0xff] %vm3886, %v3883
  // Predicated region
  $region70: #{hdyna_pallas.1} parent=0 // pred_check
    _
  $region71: #{hdyna_pallas.1} parent=0 // pred_check_branch
    %3889 = sbr.rel (0) target = $region73
  $region72: #{hdyna_pallas.1} parent=0 // pred_region
    _
  $region73: #{hdyna_pallas.1} parent=0 // pred_fallthru
    _
  // Predicated region
  $region74: #{hdyna_pallas.1} parent=0 // pred_check
    _
  $region75: #{hdyna_pallas.1} parent=0 // pred_check_branch
    %3891 = sbr.rel (0) target = $region77
  $region76: #{hdyna_pallas.1} parent=0 // pred_region
    _
  $region77: #{hdyna_pallas.1} parent=0 // pred_fallthru
    _

</llo_original>
